<compile_context>
chip_gen: v7x
topology: tpu7x:2x2x1
jax: 0.10.0
libtpu: 0.0.40
codegen_flags: <defaults>
</compile_context>

<pallas_src>
import jax
import jax.numpy as jnp
from jax.experimental import pallas as pl
from jax.experimental.pallas import tpu as pltpu


def _round_up(x, m):
    return (x + m - 1) // m * m


def _spectral_normalize(w):
    """weight / sigma_max of the (O, I*kh*kw) matrix (converged power-iteration value)."""
    w2d = w.reshape(w.shape[0], -1)
    sigma = jnp.linalg.svd(w2d, compute_uv=False)[0]
    return w / sigma


def _const_spec(shape):
    """Full-array, constant-index BlockSpec; single-buffered when supported."""
    idx = lambda n: (0,) * len(shape)
    try:
        return pl.BlockSpec(shape, idx, pipeline_mode=pl.Buffered(1))
    except (AttributeError, TypeError):   # pragma: no cover - older pallas
        return pl.BlockSpec(shape, idx)


def _make_resblockd_kernel(bb, H, W, Cin_p, Cout_p, downsample, SH):
    Hp, Wp = H + 2, W + 2
    Ho, Wo = (H // 2, W // 2) if downsample else (H, W)
    bf16 = jnp.bfloat16
    n_strips = H // SH
    Ms = bb * SH * W                      # matmul M rows per strip

    def im2col_taps(src_ref, h0, C):
        # 3 kx-shifted (sublane relayout) reads, reused across ky via cheap
        # leading-dim value slices -> 3 instead of 9 relayout copies per conv/strip.
        xks = [src_ref[:, h0:h0 + SH + 2, kx:kx + W, :] for kx in range(3)]
        taps = []
        for ky in range(3):
            for kx in range(3):
                taps.append(xks[kx][:, ky:ky + SH].reshape(Ms, C))
        return taps

    def kernel(xp_ref, w1_ref, b1_ref, wc2_ref, bc2_ref, out_ref, h1_ref, *maybe_hp):
        hp_ref = maybe_hp[0] if downsample else None

        # zero only the 1-pixel border of the padded relu(conv1) scratch
        zr = jnp.zeros((bb, 1, Wp, Cout_p), bf16)
        zc = jnp.zeros((bb, Hp, 1, Cout_p), bf16)
        h1_ref[:, 0:1, :, :] = zr
        h1_ref[:, H + 1:H + 2, :, :] = zr
        h1_ref[:, :, 0:1, :] = zc
        h1_ref[:, :, W + 1:W + 2, :] = zc

        # ---- conv1: per H-strip, one im2col dot with K = 9*Cin_p (MXU accumulates) ----
        for s in range(n_strips):
            h0 = s * SH
            slab = jnp.concatenate(im2col_taps(xp_ref, h0, Cin_p), axis=1)   # bf16
            acc = jnp.dot(slab, w1_ref[...], preferred_element_type=jnp.float32)
            h1 = jnp.maximum(acc + b1_ref[...], 0.0).astype(bf16)
            h1_ref[:, h0 + 1:h0 + 1 + SH, 1:W + 1, :] = h1.reshape(bb, SH, W, Cout_p)

        # ---- conv2 + 1x1 skip fused into one dot (K = 9*Cout_p + Cin_p) + fused pool ----
        for s in range(n_strips):
            h0 = s * SH
            taps = im2col_taps(h1_ref, h0, Cout_p)
            xc = xp_ref[:, h0 + 1:h0 + 1 + SH, 1:W + 1, :].reshape(Ms, Cin_p)
            slab = jnp.concatenate(taps + [xc], axis=1)                      # bf16
            t = jnp.dot(slab, wc2_ref[...],
                        preferred_element_type=jnp.float32) + bc2_ref[...]
            if downsample:
                # H-pool: row-pair add via contiguous sublane slices
                th = t.reshape(bb, SH // 2, 2 * W, Cout_p)
                hs = th[:, :, 0:W, :] + th[:, :, W:2 * W, :]     # (bb, SH//2, W, C)
                r0 = (h0 // 2) * W
                hp_ref[:, r0:r0 + (SH // 2) * W, :] = hs.reshape(bb, (SH // 2) * W, Cout_p)
            else:
                out_ref[:, h0 * W:(h0 + SH) * W, :] = (
                    t.astype(out_ref.dtype).reshape(bb, SH * W, Cout_p))

        if downsample:
            # W-pool: even/odd strided sublane reads + scale; single lane-dense store
            even = hp_ref[:, pl.ds(0, Ho * Wo, stride=2), :]
            odd = hp_ref[:, pl.ds(1, Ho * Wo, stride=2), :]
            out_ref[...] = ((even + odd) * 0.25).astype(out_ref.dtype)

    return kernel, (Hp, Wp, Ho, Wo)


def resblock_d_forward(x_nchw, params, downsample=True, batch_block=None):
    """Pallas implementation of ResBlockD.forward. x_nchw: (N, Cin, H, W) f32 -> NCHW."""
    N, Cin, H, W = x_nchw.shape
    Cout = params["w1"].shape[0]
    if downsample:
        assert H % 2 == 0 and W % 2 == 0

    Cin_p, Cout_p = _round_up(Cin, 128), _round_up(Cout, 128)     # lane-dense channels
    Hp, Wp = H + 2, W + 2
    Ho, Wo = (H // 2, W // 2) if downsample else (H, W)
    P = Ho * Wo
    k2 = 9 * Cout_p + Cin_p                                       # conv2+skip fused K

    # ---- weights: spectral norm, channel pad, taps folded into K, bf16 ----
    w1 = _spectral_normalize(params["w1"].astype(jnp.float32))    # (Cout, Cin, 3, 3)
    w2 = _spectral_normalize(params["w2"].astype(jnp.float32))    # (Cout, Cout, 3, 3)
    ws = _spectral_normalize(params["ws"].astype(jnp.float32))    # (Cout, Cin, 1, 1)

    def conv_weight(w, ci, ci_p):
        wt = jnp.transpose(w, (2, 3, 1, 0))                       # (3, 3, ci, Cout)
        wt = jnp.pad(wt, ((0, 0), (0, 0), (0, ci_p - ci), (0, Cout_p - Cout)))
        return wt.reshape(9 * ci_p, Cout_p)

    w1k = conv_weight(w1, Cin, Cin_p).astype(jnp.bfloat16)        # (9*Cin_p, Cout_p)
    w2k = conv_weight(w2, Cout, Cout_p)                           # (9*Cout_p, Cout_p)
    wsk = jnp.pad(jnp.transpose(ws[:, :, 0, 0], (1, 0)),
                  ((0, Cin_p - Cin), (0, Cout_p - Cout)))         # (Cin_p, Cout_p)
    wc2 = jnp.concatenate([w2k, wsk], axis=0).astype(jnp.bfloat16)

    pad_c = lambda b: jnp.pad(b.astype(jnp.float32),
                              (0, Cout_p - Cout)).reshape(1, Cout_p)
    b1 = pad_c(params["b1"])
    bc2 = pad_c(params["b2"] + params["bs"])                      # conv2+skip bias, once

    # ---- input: NHWC, spatial pad 1, channel pad, bf16 (halves DMA / VMEM) ----
    x = jnp.transpose(x_nchw, (0, 2, 3, 1)).astype(jnp.float32)
    xp = jnp.pad(x, ((0, 0), (1, 1), (1, 1), (0, Cin_p - Cin))).astype(jnp.bfloat16)

    # ---- strip / batch-block / VMEM sizing ----
    def pick_strip(bb):
        step = 2 if downsample else 1
        cands = [sh for sh in range(H, 0, -1) if H % sh == 0 and sh % step == 0]
        for sh in cands:
            if bb * sh * W * (k2 * 2 + Cout_p * 4) <= (4 << 20):  # slab + accumulator
                return sh
        return cands[-1]

    def vmem_bytes(bb, sh):
        xp_blk = 2 * bb * Hp * Wp * Cin_p * 2                     # double-buffered input
        out_blk = 2 * bb * P * Cout_p * 4                         # double-buffered output
        h1 = bb * Hp * Wp * Cout_p * 2                            # bf16 scratch
        hp = bb * Ho * W * Cout_p * 4 if downsample else 0        # H-pooled staging
        wgt = (9 * Cin_p + k2) * Cout_p * 2 + 2 * Cout_p * 4
        live = bb * sh * W * (k2 * 2 + 2 * Cout_p * 4)            # slab + acc + staging
        return xp_blk + out_blk + h1 + hp + wgt + live

    if batch_block is None:
        batch_block = 1
        for b in (8, 4, 2, 1):
            # grid >= 2 keeps both v7x TensorCores busy and gives the pipeline overlap
            if N % b == 0 and N // b >= 2 and vmem_bytes(b, pick_strip(b)) <= (40 << 20):
                batch_block = b
                break
    bb = batch_block
    assert N % bb == 0
    SH = pick_strip(bb)
    vlimit = int(min(112 << 20, max(32 << 20, 2 * vmem_bytes(bb, SH))))

    kernel, _ = _make_resblockd_kernel(bb, H, W, Cin_p, Cout_p, downsample, SH)

    in_specs = [
        pl.BlockSpec((bb, Hp, Wp, Cin_p), lambda n: (n, 0, 0, 0)),  # padded bf16 x
        _const_spec((9 * Cin_p, Cout_p)),                           # conv1 weight
        _const_spec((1, Cout_p)),                                   # conv1 bias
        _const_spec((k2, Cout_p)),                                  # conv2+skip weight
        _const_spec((1, Cout_p)),                                   # conv2+skip bias
    ]
    out_specs = pl.BlockSpec((bb, P, Cout_p), lambda n: (n, 0, 0))
    scratch = [pltpu.VMEM((bb, Hp, Wp, Cout_p), jnp.bfloat16)]      # padded relu(conv1)
    if downsample:
        scratch.append(pltpu.VMEM((bb, Ho * W, Cout_p), jnp.float32))  # H-pooled staging

    out = pl.pallas_call(
        kernel,
        grid=(N // bb,),
        in_specs=in_specs,
        out_specs=out_specs,
        out_shape=jax.ShapeDtypeStruct((N, P, Cout_p), jnp.float32),
        scratch_shapes=scratch,
        compiler_params=pltpu.CompilerParams(
            dimension_semantics=("parallel",),
            vmem_limit_bytes=vlimit),
    )(xp, w1k, b1, wc2, bc2)

    out = out[..., :Cout].reshape(N, Ho, Wo, Cout)
    return jnp.transpose(out, (0, 3, 1, 2))                         # back to NCHW


def resblock_d_reference(x_nchw, params, downsample=True):
    """Pure-JAX reference (mirrors the PyTorch forward, f32 throughout)."""
    dn = ("NCHW", "OIHW", "NCHW")
    w1 = _spectral_normalize(params["w1"].astype(jnp.float32))
    w2 = _spectral_normalize(params["w2"].astype(jnp.float32))
    ws = _spectral_normalize(params["ws"].astype(jnp.float32))
    h = jax.lax.conv_general_dilated(x_nchw, w1, (1, 1), ((1, 1), (1, 1)),
                                     dimension_numbers=dn)
    h = jnp.maximum(h + params["b1"][None, :, None, None], 0.0)
    h = jax.lax.conv_general_dilated(h, w2, (1, 1), ((1, 1), (1, 1)),
                                     dimension_numbers=dn)
    h = h + params["b2"][None, :, None, None]
    s = jax.lax.conv_general_dilated(x_nchw, ws, (1, 1), ((0, 0), (0, 0)),
                                     dimension_numbers=dn)
    s = s + params["bs"][None, :, None, None]
    if downsample:
        pool = lambda a: jax.lax.reduce_window(
            a, 0.0, jax.lax.add, (1, 1, 2, 2), (1, 1, 2, 2), "VALID") / 4.0
        h, s = pool(h), pool(s)
    return h + s


if __name__ == "__main__":
    key = jax.random.PRNGKey(0)
    N, Cin, Cout, H, W = 2, 4, 8, 16, 16
    ks = jax.random.split(key, 7)
    params = {
        "w1": jax.random.normal(ks[0], (Cout, Cin, 3, 3), jnp.float32) * 0.2,
        "b1": jax.random.normal(ks[1], (Cout,), jnp.float32) * 0.1,
        "w2": jax.random.normal(ks[2], (Cout, Cout, 3, 3), jnp.float32) * 0.2,
        "b2": jax.random.normal(ks[3], (Cout,), jnp.float32) * 0.1,
        "ws": jax.random.normal(ks[4], (Cout, Cin, 1, 1), jnp.float32) * 0.2,
        "bs": jax.random.normal(ks[5], (Cout,), jnp.float32) * 0.1,
    }
    x = jax.random.normal(ks[6], (N, Cin, H, W), jnp.float32)

    out = jax.block_until_ready(resblock_d_forward(x, params, downsample=True))
    ref = jax.block_until_ready(resblock_d_reference(x, params, downsample=True))

    assert out.shape == (N, Cout, H // 2, W // 2), out.shape
    err = float(jnp.max(jnp.abs(out - ref)))
    # bf16 MXU inputs (f32 accumulate) vs. f32 reference -> loose-but-bug-catching tol
    assert err < 5e-2, f"max abs err {err}"
    print("KERNEL_OK")
</pallas_src>

<mosaic_0001>
module attributes {stable_mosaic.version = 11 : i64} {
  func.func @kernel(%arg0: i32, %arg1: memref<1x18x18x128xbf16, #tpu.memory_space<vmem>>, %arg2: memref<1152x128xbf16, #tpu.memory_space<vmem>>, %arg3: memref<1x128xf32, #tpu.memory_space<vmem>>, %arg4: memref<1280x128xbf16, #tpu.memory_space<vmem>>, %arg5: memref<1x128xf32, #tpu.memory_space<vmem>>, %arg6: memref<1x64x128xf32, #tpu.memory_space<vmem>>, %arg7: memref<1x18x18x128xbf16, #tpu.memory_space<vmem>>, %arg8: memref<1x128x128xf32, #tpu.memory_space<vmem>>) attributes {dimension_semantics = [#tpu.dimension_semantics<parallel>], iteration_bounds = array<i64: 2>, scalar_prefetch = 0 : i64, scratch_operands = 2 : i64, tpu.core_type = #tpu.core_type<tc>, window_params = [{transform_indices = @transform_0, window_bounds = array<i64: 1, 18, 18, 128>}, {pipeline_mode = #tpu.pipeline_mode<synchronous>, transform_indices = @transform_1, window_bounds = array<i64: 1152, 128>}, {pipeline_mode = #tpu.pipeline_mode<synchronous>, transform_indices = @transform_2, window_bounds = array<i64: 1, 128>}, {pipeline_mode = #tpu.pipeline_mode<synchronous>, transform_indices = @transform_3, window_bounds = array<i64: 1280, 128>}, {pipeline_mode = #tpu.pipeline_mode<synchronous>, transform_indices = @transform_4, window_bounds = array<i64: 1, 128>}, {transform_indices = @transform_5, window_bounds = array<i64: 1, 64, 128>}]} {
    %cst = arith.constant 0.000000e+00 : bf16
    %0 = vector.broadcast %cst : bf16 to vector<1x1x18x128xbf16>
    %cst_0 = arith.constant 0.000000e+00 : bf16
    %1 = vector.broadcast %cst_0 : bf16 to vector<1x18x1x128xbf16>
    %c0 = arith.constant 0 : index
    %c0_1 = arith.constant 0 : index
    %c0_2 = arith.constant 0 : index
    %c0_3 = arith.constant 0 : index
    %2 = vector.load %arg7[%c0, %c0_1, %c0_2, %c0_3] : memref<1x18x18x128xbf16, #tpu.memory_space<vmem>>, vector<1x1x18x128xbf16>
    tpu.vector_store %arg7[%c0, %c0_1, %c0_2, %c0_3], %0 {strides = array<i32>} : memref<1x18x18x128xbf16, #tpu.memory_space<vmem>>, vector<1x1x18x128xbf16>,
    %c0_4 = arith.constant 0 : index
    %c17 = arith.constant 17 : index
    %c0_5 = arith.constant 0 : index
    %c0_6 = arith.constant 0 : index
    %3 = vector.load %arg7[%c0_4, %c17, %c0_5, %c0_6] : memref<1x18x18x128xbf16, #tpu.memory_space<vmem>>, vector<1x1x18x128xbf16>
    tpu.vector_store %arg7[%c0_4, %c17, %c0_5, %c0_6], %0 {strides = array<i32>} : memref<1x18x18x128xbf16, #tpu.memory_space<vmem>>, vector<1x1x18x128xbf16>,
    %c0_7 = arith.constant 0 : index
    %c0_8 = arith.constant 0 : index
    %c0_9 = arith.constant 0 : index
    %c0_10 = arith.constant 0 : index
    %4 = vector.load %arg7[%c0_7, %c0_8, %c0_9, %c0_10] : memref<1x18x18x128xbf16, #tpu.memory_space<vmem>>, vector<1x18x1x128xbf16>
    tpu.vector_store %arg7[%c0_7, %c0_8, %c0_9, %c0_10], %1 {strides = array<i32>} : memref<1x18x18x128xbf16, #tpu.memory_space<vmem>>, vector<1x18x1x128xbf16>,
    %c0_11 = arith.constant 0 : index
    %c0_12 = arith.constant 0 : index
    %c17_13 = arith.constant 17 : index
    %c0_14 = arith.constant 0 : index
    %5 = vector.load %arg7[%c0_11, %c0_12, %c17_13, %c0_14] : memref<1x18x18x128xbf16, #tpu.memory_space<vmem>>, vector<1x18x1x128xbf16>
    tpu.vector_store %arg7[%c0_11, %c0_12, %c17_13, %c0_14], %1 {strides = array<i32>} : memref<1x18x18x128xbf16, #tpu.memory_space<vmem>>, vector<1x18x1x128xbf16>,
    %c0_15 = arith.constant 0 : index
    %c0_16 = arith.constant 0 : index
    %c0_17 = arith.constant 0 : index
    %c0_18 = arith.constant 0 : index
    %6 = vector.load %arg1[%c0_15, %c0_16, %c0_17, %c0_18] : memref<1x18x18x128xbf16, #tpu.memory_space<vmem>>, vector<1x18x16x128xbf16>
    %c0_19 = arith.constant 0 : index
    %c0_20 = arith.constant 0 : index
    %c1 = arith.constant 1 : index
    %c0_21 = arith.constant 0 : index
    %7 = vector.load %arg1[%c0_19, %c0_20, %c1, %c0_21] : memref<1x18x18x128xbf16, #tpu.memory_space<vmem>>, vector<1x18x16x128xbf16>
    %c0_22 = arith.constant 0 : index
    %c0_23 = arith.constant 0 : index
    %c2 = arith.constant 2 : index
    %c0_24 = arith.constant 0 : index
    %8 = vector.load %arg1[%c0_22, %c0_23, %c2, %c0_24] : memref<1x18x18x128xbf16, #tpu.memory_space<vmem>>, vector<1x18x16x128xbf16>
    %9 = vector.extract_strided_slice %6 {offsets = [0, 0, 0, 0], sizes = [1, 16, 16, 128], strides = [1, 1, 1, 1]} : vector<1x18x16x128xbf16> to vector<1x16x16x128xbf16>
    %10 = vector.shape_cast %9 : vector<1x16x16x128xbf16> to vector<256x128xbf16>
    %11 = vector.extract_strided_slice %7 {offsets = [0, 0, 0, 0], sizes = [1, 16, 16, 128], strides = [1, 1, 1, 1]} : vector<1x18x16x128xbf16> to vector<1x16x16x128xbf16>
    %12 = vector.shape_cast %11 : vector<1x16x16x128xbf16> to vector<256x128xbf16>
    %13 = vector.extract_strided_slice %8 {offsets = [0, 0, 0, 0], sizes = [1, 16, 16, 128], strides = [1, 1, 1, 1]} : vector<1x18x16x128xbf16> to vector<1x16x16x128xbf16>
    %14 = vector.shape_cast %13 : vector<1x16x16x128xbf16> to vector<256x128xbf16>
    %15 = vector.extract_strided_slice %6 {offsets = [0, 1, 0, 0], sizes = [1, 16, 16, 128], strides = [1, 1, 1, 1]} : vector<1x18x16x128xbf16> to vector<1x16x16x128xbf16>
    %16 = vector.shape_cast %15 : vector<1x16x16x128xbf16> to vector<256x128xbf16>
    %17 = vector.extract_strided_slice %7 {offsets = [0, 1, 0, 0], sizes = [1, 16, 16, 128], strides = [1, 1, 1, 1]} : vector<1x18x16x128xbf16> to vector<1x16x16x128xbf16>
    %18 = vector.shape_cast %17 : vector<1x16x16x128xbf16> to vector<256x128xbf16>
    %19 = vector.extract_strided_slice %8 {offsets = [0, 1, 0, 0], sizes = [1, 16, 16, 128], strides = [1, 1, 1, 1]} : vector<1x18x16x128xbf16> to vector<1x16x16x128xbf16>
    %20 = vector.shape_cast %19 : vector<1x16x16x128xbf16> to vector<256x128xbf16>
    %21 = vector.extract_strided_slice %6 {offsets = [0, 2, 0, 0], sizes = [1, 16, 16, 128], strides = [1, 1, 1, 1]} : vector<1x18x16x128xbf16> to vector<1x16x16x128xbf16>
    %22 = vector.shape_cast %21 : vector<1x16x16x128xbf16> to vector<256x128xbf16>
    %23 = vector.extract_strided_slice %7 {offsets = [0, 2, 0, 0], sizes = [1, 16, 16, 128], strides = [1, 1, 1, 1]} : vector<1x18x16x128xbf16> to vector<1x16x16x128xbf16>
    %24 = vector.shape_cast %23 : vector<1x16x16x128xbf16> to vector<256x128xbf16>
    %25 = vector.extract_strided_slice %8 {offsets = [0, 2, 0, 0], sizes = [1, 16, 16, 128], strides = [1, 1, 1, 1]} : vector<1x18x16x128xbf16> to vector<1x16x16x128xbf16>
    %26 = vector.shape_cast %25 : vector<1x16x16x128xbf16> to vector<256x128xbf16>
    %27 = tpu.concatenate %10, %12, %14, %16, %18, %20, %22, %24, %26 in 1 : vector<256x128xbf16>, vector<256x128xbf16>, vector<256x128xbf16>, vector<256x128xbf16>, vector<256x128xbf16>, vector<256x128xbf16>, vector<256x128xbf16>, vector<256x128xbf16>, vector<256x128xbf16> -> vector<256x1152xbf16>
    %c0_25 = arith.constant 0 : index
    %c0_26 = arith.constant 0 : index
    %28 = vector.load %arg2[%c0_25, %c0_26] : memref<1152x128xbf16, #tpu.memory_space<vmem>>, vector<1152x128xbf16>
    %cst_27 = arith.constant dense<0.000000e+00> : vector<256x128xf32>
    %29 = tpu.matmul %27, %28, %cst_27 {dimension_numbers = #tpu.dot_dimension_numbers<[1], [0], [0], [1], [0, 0, 1, 1], [], []>} : vector<256x1152xbf16>, vector<1152x128xbf16>, vector<256x128xf32> -> vector<256x128xf32>
    %c0_28 = arith.constant 0 : index
    %c0_29 = arith.constant 0 : index
    %30 = vector.load %arg3[%c0_28, %c0_29] : memref<1x128xf32, #tpu.memory_space<vmem>>, vector<1x128xf32>
    %31 = vector.broadcast %30 : vector<1x128xf32> to vector<256x128xf32>
    %32 = arith.addf %29, %31 : vector<256x128xf32>
    %cst_30 = arith.constant 0.000000e+00 : f32
    %33 = vector.broadcast %cst_30 : f32 to vector<256x128xf32>
    %34 = arith.maximumf %32, %33 : vector<256x128xf32>
    %35 = arith.truncf %34 : vector<256x128xf32> to vector<256x128xbf16>
    %36 = vector.shape_cast %35 : vector<256x128xbf16> to vector<1x16x16x128xbf16>
    %c0_31 = arith.constant 0 : index
    %c1_32 = arith.constant 1 : index
    %c1_33 = arith.constant 1 : index
    %c0_34 = arith.constant 0 : index
    %37 = vector.load %arg7[%c0_31, %c1_32, %c1_33, %c0_34] : memref<1x18x18x128xbf16, #tpu.memory_space<vmem>>, vector<1x16x16x128xbf16>
    tpu.vector_store %arg7[%c0_31, %c1_32, %c1_33, %c0_34], %36 {strides = array<i32>} : memref<1x18x18x128xbf16, #tpu.memory_space<vmem>>, vector<1x16x16x128xbf16>,
    %c0_35 = arith.constant 0 : index
    %c0_36 = arith.constant 0 : index
    %c0_37 = arith.constant 0 : index
    %c0_38 = arith.constant 0 : index
    %38 = vector.load %arg7[%c0_35, %c0_36, %c0_37, %c0_38] : memref<1x18x18x128xbf16, #tpu.memory_space<vmem>>, vector<1x18x16x128xbf16>
    %c0_39 = arith.constant 0 : index
    %c0_40 = arith.constant 0 : index
    %c1_41 = arith.constant 1 : index
    %c0_42 = arith.constant 0 : index
    %39 = vector.load %arg7[%c0_39, %c0_40, %c1_41, %c0_42] : memref<1x18x18x128xbf16, #tpu.memory_space<vmem>>, vector<1x18x16x128xbf16>
    %c0_43 = arith.constant 0 : index
    %c0_44 = arith.constant 0 : index
    %c2_45 = arith.constant 2 : index
    %c0_46 = arith.constant 0 : index
    %40 = vector.load %arg7[%c0_43, %c0_44, %c2_45, %c0_46] : memref<1x18x18x128xbf16, #tpu.memory_space<vmem>>, vector<1x18x16x128xbf16>
    %41 = vector.extract_strided_slice %38 {offsets = [0, 0, 0, 0], sizes = [1, 16, 16, 128], strides = [1, 1, 1, 1]} : vector<1x18x16x128xbf16> to vector<1x16x16x128xbf16>
    %42 = vector.shape_cast %41 : vector<1x16x16x128xbf16> to vector<256x128xbf16>
    %43 = vector.extract_strided_slice %39 {offsets = [0, 0, 0, 0], sizes = [1, 16, 16, 128], strides = [1, 1, 1, 1]} : vector<1x18x16x128xbf16> to vector<1x16x16x128xbf16>
    %44 = vector.shape_cast %43 : vector<1x16x16x128xbf16> to vector<256x128xbf16>
    %45 = vector.extract_strided_slice %40 {offsets = [0, 0, 0, 0], sizes = [1, 16, 16, 128], strides = [1, 1, 1, 1]} : vector<1x18x16x128xbf16> to vector<1x16x16x128xbf16>
    %46 = vector.shape_cast %45 : vector<1x16x16x128xbf16> to vector<256x128xbf16>
    %47 = vector.extract_strided_slice %38 {offsets = [0, 1, 0, 0], sizes = [1, 16, 16, 128], strides = [1, 1, 1, 1]} : vector<1x18x16x128xbf16> to vector<1x16x16x128xbf16>
    %48 = vector.shape_cast %47 : vector<1x16x16x128xbf16> to vector<256x128xbf16>
    %49 = vector.extract_strided_slice %39 {offsets = [0, 1, 0, 0], sizes = [1, 16, 16, 128], strides = [1, 1, 1, 1]} : vector<1x18x16x128xbf16> to vector<1x16x16x128xbf16>
    %50 = vector.shape_cast %49 : vector<1x16x16x128xbf16> to vector<256x128xbf16>
    %51 = vector.extract_strided_slice %40 {offsets = [0, 1, 0, 0], sizes = [1, 16, 16, 128], strides = [1, 1, 1, 1]} : vector<1x18x16x128xbf16> to vector<1x16x16x128xbf16>
    %52 = vector.shape_cast %51 : vector<1x16x16x128xbf16> to vector<256x128xbf16>
    %53 = vector.extract_strided_slice %38 {offsets = [0, 2, 0, 0], sizes = [1, 16, 16, 128], strides = [1, 1, 1, 1]} : vector<1x18x16x128xbf16> to vector<1x16x16x128xbf16>
    %54 = vector.shape_cast %53 : vector<1x16x16x128xbf16> to vector<256x128xbf16>
    %55 = vector.extract_strided_slice %39 {offsets = [0, 2, 0, 0], sizes = [1, 16, 16, 128], strides = [1, 1, 1, 1]} : vector<1x18x16x128xbf16> to vector<1x16x16x128xbf16>
    %56 = vector.shape_cast %55 : vector<1x16x16x128xbf16> to vector<256x128xbf16>
    %57 = vector.extract_strided_slice %40 {offsets = [0, 2, 0, 0], sizes = [1, 16, 16, 128], strides = [1, 1, 1, 1]} : vector<1x18x16x128xbf16> to vector<1x16x16x128xbf16>
    %58 = vector.shape_cast %57 : vector<1x16x16x128xbf16> to vector<256x128xbf16>
    %c0_47 = arith.constant 0 : index
    %c1_48 = arith.constant 1 : index
    %c1_49 = arith.constant 1 : index
    %c0_50 = arith.constant 0 : index
    %59 = vector.load %arg1[%c0_47, %c1_48, %c1_49, %c0_50] : memref<1x18x18x128xbf16, #tpu.memory_space<vmem>>, vector<1x16x16x128xbf16>
    %60 = vector.shape_cast %59 : vector<1x16x16x128xbf16> to vector<256x128xbf16>
    %61 = tpu.concatenate %42, %44, %46, %48, %50, %52, %54, %56, %58, %60 in 1 : vector<256x128xbf16>, vector<256x128xbf16>, vector<256x128xbf16>, vector<256x128xbf16>, vector<256x128xbf16>, vector<256x128xbf16>, vector<256x128xbf16>, vector<256x128xbf16>, vector<256x128xbf16>, vector<256x128xbf16> -> vector<256x1280xbf16>
    %c0_51 = arith.constant 0 : index
    %c0_52 = arith.constant 0 : index
    %62 = vector.load %arg4[%c0_51, %c0_52] : memref<1280x128xbf16, #tpu.memory_space<vmem>>, vector<1280x128xbf16>
    %cst_53 = arith.constant dense<0.000000e+00> : vector<256x128xf32>
    %63 = tpu.matmul %61, %62, %cst_53 {dimension_numbers = #tpu.dot_dimension_numbers<[1], [0], [0], [1], [0, 0, 1, 1], [], []>} : vector<256x1280xbf16>, vector<1280x128xbf16>, vector<256x128xf32> -> vector<256x128xf32>
    %c0_54 = arith.constant 0 : index
    %c0_55 = arith.constant 0 : index
    %64 = vector.load %arg5[%c0_54, %c0_55] : memref<1x128xf32, #tpu.memory_space<vmem>>, vector<1x128xf32>
    %65 = vector.broadcast %64 : vector<1x128xf32> to vector<256x128xf32>
    %66 = arith.addf %63, %65 : vector<256x128xf32>
    %67 = vector.shape_cast %66 : vector<256x128xf32> to vector<1x8x32x128xf32>
    %68 = vector.extract_strided_slice %67 {offsets = [0, 0, 0, 0], sizes = [1, 8, 16, 128], strides = [1, 1, 1, 1]} : vector<1x8x32x128xf32> to vector<1x8x16x128xf32>
    %69 = vector.extract_strided_slice %67 {offsets = [0, 0, 16, 0], sizes = [1, 8, 16, 128], strides = [1, 1, 1, 1]} : vector<1x8x32x128xf32> to vector<1x8x16x128xf32>
    %70 = arith.addf %68, %69 : vector<1x8x16x128xf32>
    %71 = vector.shape_cast %70 : vector<1x8x16x128xf32> to vector<1x128x128xf32>
    %c0_56 = arith.constant 0 : index
    %c0_57 = arith.constant 0 : index
    %c0_58 = arith.constant 0 : index
    %72 = vector.load %arg8[%c0_56, %c0_57, %c0_58] : memref<1x128x128xf32, #tpu.memory_space<vmem>>, vector<1x128x128xf32>
    tpu.vector_store %arg8[%c0_56, %c0_57, %c0_58], %71 {strides = array<i32>} : memref<1x128x128xf32, #tpu.memory_space<vmem>>, vector<1x128x128xf32>,
    %c0_59 = arith.constant 0 : index
    %c0_60 = arith.constant 0 : index
    %c0_61 = arith.constant 0 : index
    %73 = tpu.strided_load %arg8[%c0_59, %c0_60, %c0_61] {strides = array<i32: 1, 2, 1>} : memref<1x128x128xf32, #tpu.memory_space<vmem>>, vector<1x64x128xf32>
    %c0_62 = arith.constant 0 : index
    %c1_63 = arith.constant 1 : index
    %c0_64 = arith.constant 0 : index
    %74 = tpu.strided_load %arg8[%c0_62, %c1_63, %c0_64] {strides = array<i32: 1, 2, 1>} : memref<1x128x128xf32, #tpu.memory_space<vmem>>, vector<1x64x128xf32>
    %75 = arith.addf %73, %74 : vector<1x64x128xf32>
    %cst_65 = arith.constant 2.500000e-01 : f32
    %76 = vector.broadcast %cst_65 : f32 to vector<1x64x128xf32>
    %77 = arith.mulf %75, %76 : vector<1x64x128xf32>
    %c0_66 = arith.constant 0 : index
    %c0_67 = arith.constant 0 : index
    %c0_68 = arith.constant 0 : index
    %78 = vector.load %arg6[%c0_66, %c0_67, %c0_68] : memref<1x64x128xf32, #tpu.memory_space<vmem>>, vector<1x64x128xf32>
    tpu.vector_store %arg6[%c0_66, %c0_67, %c0_68], %77 {strides = array<i32>} : memref<1x64x128xf32, #tpu.memory_space<vmem>>, vector<1x64x128xf32>,
    return
  }
  func.func @transform_0(%arg0: i32) -> (i32, i32, i32, i32) {
    %c0_i32 = arith.constant 0 : i32
    %c0_i32_0 = arith.constant 0 : i32
    %c0_i32_1 = arith.constant 0 : i32
    %c0_i32_2 = arith.constant 0 : i32
    return %arg0, %c0_i32, %c0_i32_0, %c0_i32_1 : i32, i32, i32, i32
  }
  func.func @transform_1(%arg0: i32) -> (i32, i32) {
    %c0_i32 = arith.constant 0 : i32
    %c0_i32_0 = arith.constant 0 : i32
    %c0_i32_1 = arith.constant 0 : i32
    return %c0_i32, %c0_i32_0 : i32, i32
  }
  func.func @transform_2(%arg0: i32) -> (i32, i32) {
    %c0_i32 = arith.constant 0 : i32
    %c0_i32_0 = arith.constant 0 : i32
    %c0_i32_1 = arith.constant 0 : i32
    return %c0_i32, %c0_i32_0 : i32, i32
  }
  func.func @transform_3(%arg0: i32) -> (i32, i32) {
    %c0_i32 = arith.constant 0 : i32
    %c0_i32_0 = arith.constant 0 : i32
    %c0_i32_1 = arith.constant 0 : i32
    return %c0_i32, %c0_i32_0 : i32, i32
  }
  func.func @transform_4(%arg0: i32) -> (i32, i32) {
    %c0_i32 = arith.constant 0 : i32
    %c0_i32_0 = arith.constant 0 : i32
    %c0_i32_1 = arith.constant 0 : i32
    return %c0_i32, %c0_i32_0 : i32, i32
  }
  func.func @transform_5(%arg0: i32) -> (i32, i32, i32) {
    %c0_i32 = arith.constant 0 : i32
    %c0_i32_0 = arith.constant 0 : i32
    %c0_i32_1 = arith.constant 0 : i32
    return %arg0, %c0_i32, %c0_i32_0 : i32, i32, i32
  }
}

</mosaic_0001>

<llo_original>
// kernel: tpu_custom_call.1
$region0: #{tpu_custom_call.1}
  #allocation0 [shape = 'u32[]', space=smem, size = 0x4, offset = 0x4, fixed_abs, tag = 'smem constant byte address 0x4 - core index']
  #allocation1 [shape = 'u32[144,128]{1,0:T(1,128)}', space=vmem, size = 0x12000, scoped, tag = 'internal scratch']
  #allocation2 [shape = 'bf16[1,18,18,128]{3,2,1,0:T(8,128)(2,1)}', space=vmem, size = 0x1b000, scoped, tag = 'scratch operand']
  #allocation3 [shape = 'f32[1,128,128]{2,1,0:T(8,128)}', space=vmem, size = 0x10000, scoped, tag = 'scratch operand']
  %s0 = inlined_call_operand.vmem [shape: bf16[2,18,18,128], index: 0, kind: input, shape index: {}]
  %s1 = inlined_call_operand.hbm [shape: bf16[1152,128], index: 1, kind: input, shape index: {}]
  %s2 = inlined_call_operand.vmem [shape: f32[1,128], index: 2, kind: input, shape index: {}]
  %s3 = inlined_call_operand.vmem [shape: bf16[1280,128], index: 3, kind: input, shape index: {}]
  %s4 = inlined_call_operand.vmem [shape: f32[1,128], index: 4, kind: input, shape index: {}]
  %s5 = inlined_call_operand.hbm [shape: f32[2,64,128], index: 5, kind: output, shape index: {}]
  %s6 = sld [smem:[#allocation0]]
  $region57: #{tpu_custom_call.1} parent=0
    _
  %s8 = ssub.s32 1, %s6
  %s9 = scalar_select 0, %s8, %s6
  $region1: #{tpu_custom_call.1} parent=0
    #allocation4 [shape = 'u8[294912]{0}', space=vmem, size = 0x48000, scoped, tag = 'input window, operand 1, single buffered']
    #allocation5 [shape = 's32[2]{0}', space=sflag, size = 0x8, scoped, tag = 'scoped memory for tpu_custom_call.1']
    #allocation6 [shape = 's32[2]{0}', space=sflag, size = 0x8, scoped, tag = 'scoped memory for tpu_custom_call.1']
    #allocation7 [shape = 'u8[65536]{0}', space=vmem, size = 0x10000, scoped, tag = 'output window, operand 0']
    %10 = vsyncpa [#allocation5], 0
    %11 = vsyncpa [#allocation6], 0
    %s12 = scalar_lea.sflag [#allocation6], 1
    %13 = vsyncpa %s12, 0
    loop: start=0, step=1, limit=4
    $region2: #{tpu_custom_call.1} parent=1 // loop_pre_header
      _
    $region3: #{tpu_custom_call.1} parent=1 // loop_header
      %s15 = sphi 0, %s19
      %p16 = scmp.ge.s32.totalorder %s15, 4
      %s25 = sphi 0, %s27
      %s28 = sphi 0, %s25
      %s29 = sphi 0, %s28
      %s45 = sphi 0, %s29
      %s49 = sphi 0, %s49
      %s51 = sphi 0, %s49
      %s52 = sphi 0, %s51
      %s66 = sphi 0, %s52
      %s70 = sphi 0, %s70
      %s72 = sphi 0, %s70
      %s73 = sphi 0, %s72
      %s87 = sphi 0, %s73
      %s91 = sphi 0, %s91
      %s93 = sphi 0, %s91
      %s94 = sphi 0, %s93
      %s108 = sphi 0, %s94
      %s112 = sphi 0, %s112
      %s114 = sphi 0, %s112
      %s115 = sphi 0, %s114
      %s129 = sphi 0, %s115
      %s135 = sphi 0, %s137
      %s138 = sphi 0, %s135
      %s139 = sphi 0, %s138
      %s155 = sphi 0, %s139
    $region4: #{tpu_custom_call.1} parent=1 // loop_header_branch
      %18 = sbr.rel (%p16) target = $region8
    $region5: #{tpu_custom_call.1} parent=1 // loop_body
      %s20 = ssub.s32 %s15, 1
      %s21 = ssub.s32 %s15, 2
      %s22 = sadd.s32 %s15, 1
      %s23 = ssub.s32 %s15, %s22
      %p24 = scmp.eq.s32.totalorder %s23, 0
      %s26 = sadd.s32 %s25, 1
      %s27 = scalar_select %p24, %s25, %s26
      %p30 = pneg %p24
      %p31 = scmp.eq.s32.totalorder %s15, 1
      %p32 = por %p30, %p31
      %p33 = scmp.ne.s32.totalorder %s25, %s28
      %p34 = scmp.eq.s32.totalorder %s15, 0
      %p35 = por %p33, %p34
      %p36 = scmp.ne.s32.totalorder %s25, %s28
      %p37 = scmp.eq.s32.totalorder %s20, 1
      %p38 = por %p36, %p37
      %p39 = scmp.ne.s32.totalorder %s28, %s29
      %p40 = scmp.eq.s32.totalorder %s20, 0
      %p41 = por %p39, %p40
      %p42 = scmp.ne.s32.totalorder %s28, %s29
      %p43 = scmp.eq.s32.totalorder %s21, 1
      %p44 = por %p42, %p43
      %p46 = scmp.ne.s32.totalorder %s29, %s45
      %p47 = scmp.eq.s32.totalorder %s21, 0
      %p48 = por %p46, %p47
      %s50 = sadd.s32 %s49, 1
      %p53 = scmp.eq.s32.totalorder %s15, 1
      %p54 = scmp.ne.s32.totalorder %s49, %s51
      %p55 = scmp.eq.s32.totalorder %s15, 0
      %p56 = por %p54, %p55
      %p57 = scmp.ne.s32.totalorder %s49, %s51
      %p58 = scmp.eq.s32.totalorder %s20, 1
      %p59 = por %p57, %p58
      %p60 = scmp.ne.s32.totalorder %s51, %s52
      %p61 = scmp.eq.s32.totalorder %s20, 0
      %p62 = por %p60, %p61
      %p63 = scmp.ne.s32.totalorder %s51, %s52
      %p64 = scmp.eq.s32.totalorder %s21, 1
      %p65 = por %p63, %p64
      %p67 = scmp.ne.s32.totalorder %s52, %s66
      %p68 = scmp.eq.s32.totalorder %s21, 0
      %p69 = por %p67, %p68
      %s71 = sadd.s32 %s70, 1
      %p74 = scmp.eq.s32.totalorder %s15, 1
      %p75 = scmp.ne.s32.totalorder %s70, %s72
      %p76 = scmp.eq.s32.totalorder %s15, 0
      %p77 = por %p75, %p76
      %p78 = scmp.ne.s32.totalorder %s70, %s72
      %p79 = scmp.eq.s32.totalorder %s20, 1
      %p80 = por %p78, %p79
      %p81 = scmp.ne.s32.totalorder %s72, %s73
      %p82 = scmp.eq.s32.totalorder %s20, 0
      %p83 = por %p81, %p82
      %p84 = scmp.ne.s32.totalorder %s72, %s73
      %p85 = scmp.eq.s32.totalorder %s21, 1
      %p86 = por %p84, %p85
      %p88 = scmp.ne.s32.totalorder %s73, %s87
      %p89 = scmp.eq.s32.totalorder %s21, 0
      %p90 = por %p88, %p89
      %s92 = sadd.s32 %s91, 1
      %p95 = scmp.eq.s32.totalorder %s15, 1
      %p96 = scmp.ne.s32.totalorder %s91, %s93
      %p97 = scmp.eq.s32.totalorder %s15, 0
      %p98 = por %p96, %p97
      %p99 = scmp.ne.s32.totalorder %s91, %s93
      %p100 = scmp.eq.s32.totalorder %s20, 1
      %p101 = por %p99, %p100
      %p102 = scmp.ne.s32.totalorder %s93, %s94
      %p103 = scmp.eq.s32.totalorder %s20, 0
      %p104 = por %p102, %p103
      %p105 = scmp.ne.s32.totalorder %s93, %s94
      %p106 = scmp.eq.s32.totalorder %s21, 1
      %p107 = por %p105, %p106
      %p109 = scmp.ne.s32.totalorder %s94, %s108
      %p110 = scmp.eq.s32.totalorder %s21, 0
      %p111 = por %p109, %p110
      %s113 = sadd.s32 %s112, 1
      %p116 = scmp.eq.s32.totalorder %s15, 1
      %p117 = scmp.ne.s32.totalorder %s112, %s114
      %p118 = scmp.eq.s32.totalorder %s15, 0
      %p119 = por %p117, %p118
      %p120 = scmp.ne.s32.totalorder %s112, %s114
      %p121 = scmp.eq.s32.totalorder %s20, 1
      %p122 = por %p120, %p121
      %p123 = scmp.ne.s32.totalorder %s114, %s115
      %p124 = scmp.eq.s32.totalorder %s20, 0
      %p125 = por %p123, %p124
      %p126 = scmp.ne.s32.totalorder %s114, %s115
      %p127 = scmp.eq.s32.totalorder %s21, 1
      %p128 = por %p126, %p127
      %p130 = scmp.ne.s32.totalorder %s115, %s129
      %p131 = scmp.eq.s32.totalorder %s21, 0
      %p132 = por %p130, %p131
      %s133 = ssub.s32 %s15, %s22
      %p134 = scmp.eq.s32.totalorder %s133, 0
      %s136 = sadd.s32 %s135, 1
      %s137 = scalar_select %p134, %s135, %s136
      %p140 = pneg %p134
      %p141 = scmp.eq.s32.totalorder %s15, 1
      %p142 = por %p140, %p141
      %p143 = scmp.ne.s32.totalorder %s135, %s138
      %p144 = scmp.eq.s32.totalorder %s15, 0
      %p145 = por %p143, %p144
      %p146 = scmp.ne.s32.totalorder %s135, %s138
      %p147 = scmp.eq.s32.totalorder %s20, 1
      %p148 = por %p146, %p147
      %p149 = scmp.ne.s32.totalorder %s138, %s139
      %p150 = scmp.eq.s32.totalorder %s20, 0
      %p151 = por %p149, %p150
      %p152 = scmp.ne.s32.totalorder %s138, %s139
      %p153 = scmp.eq.s32.totalorder %s21, 1
      %p154 = por %p152, %p153
      %p156 = scmp.ne.s32.totalorder %s139, %s155
      %p157 = scmp.eq.s32.totalorder %s21, 0
      %p158 = por %p156, %p157
      %p159 = scmp.le.s32.totalorder 1, %s15
      %p160 = scmp.lt.s32.totalorder %s15, 3
      %p161 = pnand %p159, %p160
      %p162 = pneg %p161
      // Predicated region
      $region9: #{tpu_custom_call.1} parent=5 // pred_check
        _
      $region10: #{tpu_custom_call.1} parent=5 // pred_check_branch
        %164 = sbr.rel (%p161) target = $region12
      $region11: #{tpu_custom_call.1} parent=5 // pred_region
        %s165 = ssub.s32 %s15, 1
        // Predicated region
        $region13: #{tpu_custom_call.1} parent=11 // pred_check
          %p166 = pneg %p62
        $region14: #{tpu_custom_call.1} parent=11 // pred_check_branch
          %168 = sbr.rel (%p166) target = $region16
        $region15: #{tpu_custom_call.1} parent=11 // pred_region
          %s170 = ssub.s32 9216, 9216
          %171 = vsyncadd [#allocation5], %s170
          %s172 = sshll.u32 [#allocation4], 4
          %s173 = int_to_ptr.vmem [resolvable:$true] %s172
          %178 = dma.hbm_to_vmem [thread:$0]  %s1, 9216, %s173, [#allocation5], 64, 64, 4
        $region16: #{tpu_custom_call.1} parent=11 // pred_fallthru
          _
        // Predicated region
        $region17: #{tpu_custom_call.1} parent=11 // pred_check
          %p179 = pneg %p83
        $region18: #{tpu_custom_call.1} parent=11 // pred_check_branch
          %181 = sbr.rel (%p179) target = $region20
        $region19: #{tpu_custom_call.1} parent=11 // pred_region
          _
        $region20: #{tpu_custom_call.1} parent=11 // pred_fallthru
          _
        // Predicated region
        $region21: #{tpu_custom_call.1} parent=11 // pred_check
          %p182 = pneg %p104
        $region22: #{tpu_custom_call.1} parent=11 // pred_check_branch
          %184 = sbr.rel (%p182) target = $region24
        $region23: #{tpu_custom_call.1} parent=11 // pred_region
          _
        $region24: #{tpu_custom_call.1} parent=11 // pred_fallthru
          _
        // Predicated region
        $region25: #{tpu_custom_call.1} parent=11 // pred_check
          %p185 = pneg %p125
        $region26: #{tpu_custom_call.1} parent=11 // pred_check_branch
          %187 = sbr.rel (%p185) target = $region28
        $region27: #{tpu_custom_call.1} parent=11 // pred_region
          _
        $region28: #{tpu_custom_call.1} parent=11 // pred_fallthru
          _
      $region12: #{tpu_custom_call.1} parent=5 // pred_fallthru
        _
      %p188 = scmp.lt.s32.totalorder %s15, 2
      // Predicated region
      $region29: #{tpu_custom_call.1} parent=5 // pred_check
        %p189 = pneg %p188
      $region30: #{tpu_custom_call.1} parent=5 // pred_check_branch
        %191 = sbr.rel (%p189) target = $region32
      $region31: #{tpu_custom_call.1} parent=5 // pred_region
        // Predicated region
        $region33: #{tpu_custom_call.1} parent=31 // pred_check
          %p192 = pneg %p35
        $region34: #{tpu_custom_call.1} parent=31 // pred_check_branch
          %194 = sbr.rel (%p192) target = $region36
        $region35: #{tpu_custom_call.1} parent=31 // pred_region
          %p195 = scmp.lt.s32.totalorder %s15, 1
          %s196 = scalar_select %p195, %s15, 1
          %s197 = smul.addr %s196, 54
          %s198 = smul.addr %s197, 4
          %s199 = scalar_lea.vmem %s0, %s198
        $region36: #{tpu_custom_call.1} parent=31 // pred_fallthru
          _
      $region32: #{tpu_custom_call.1} parent=5 // pred_fallthru
        _
      %p200 = scmp.le.s32.totalorder 1, %s15
      %p201 = scmp.lt.s32.totalorder %s15, 3
      %p202 = pnand %p200, %p201
      %p203 = pneg %p202
      // Predicated region
      $region37: #{tpu_custom_call.1} parent=5 // pred_check
        _
      $region38: #{tpu_custom_call.1} parent=5 // pred_check_branch
        %205 = sbr.rel (%p202) target = $region40
      $region39: #{tpu_custom_call.1} parent=5 // pred_region
        %s206 = ssub.s32 %s15, 1
        // Predicated region
        $region41: #{tpu_custom_call.1} parent=39 // pred_check
          %p207 = pneg %p62
        $region42: #{tpu_custom_call.1} parent=39 // pred_check_branch
          %209 = sbr.rel (%p207) target = $region44
        $region43: #{tpu_custom_call.1} parent=39 // pred_region
          %210 = dma.done [#allocation5], 9216
        $region44: #{tpu_custom_call.1} parent=39 // pred_fallthru
          _
        %p211 = scmp.lt.s32.totalorder %s20, 1
        %s212 = scalar_select %p211, %s20, 1
        %s213 = smul.addr %s212, 54
        %s214 = smul.addr %s213, 4
        %s215 = scalar_lea.vmem %s0, %s214
        %p216 = pneg %p41
        %p217 = pneg %p38
        %p218 = pneg %p62
        %p219 = pneg %p59
        %p220 = pneg %p83
        %p221 = pneg %p80
        %p222 = pneg %p104
        %p223 = pneg %p101
        %p224 = pneg %p125
        %p225 = pneg %p122
        %p226 = pneg %p151
        %p227 = pneg %p148
        %s228 = sand.u32 %s138, 1
        %s229 = scalar_lea.sflag [#allocation6], %s228
        %s230 = sand.u32 %s138, 1
        %s231 = smul.addr %s230, 64
        %s232 = scalar_lea.vmem [#allocation7], %s231
        %p233 = scmp.lt.s32.totalorder %s20, 1
        %s234 = scalar_select %p233, %s20, 1
        %s235 = smul.addr %s234, 54
        %s236 = smul.addr %s235, 4
        %s237 = scalar_lea.vmem %s0, %s236
        %239 = vst [vmem:[#allocation2] sm:$0xf] 0
        %240 = vst [vmem:[#allocation2 + $0x4] sm:$0xf] 0
        %241 = vst [vmem:[#allocation2 + $0x8] sm:$0x1] 0
        %s242 = scalar_lea.vmem [#allocation2], 204
        %243 = vst [vmem:[%s242] sm:$0xf] 0
        %244 = vst [vmem:[%s242 + $0x4] sm:$0xf] 0
        %245 = vst [vmem:[%s242 + $0x8] sm:$0x1] 0
        %vm246 = vcmask 1040384
        %vm247 = vsmask.f32 256
        %vm248 = vmand %vm246, %vm247
        %v249 = vld [vmem:[#allocation2] sm:$0x1]
        %v250 = vsel %vm248, 0, %v249
        %251 = vst [vmem:[#allocation2] sm:$0x1] %v250
        %v252 = vld [vmem:[#allocation2 + $0xc] sm:$0x1]
        %v253 = vsel %vm248, 0, %v252
        %254 = vst [vmem:[#allocation2 + $0xc] sm:$0x1] %v253
        %v255 = vld [vmem:[#allocation2 + $0x18] sm:$0x1]
        %v256 = vsel %vm248, 0, %v255
        %257 = vst [vmem:[#allocation2 + $0x18] sm:$0x1] %v256
        %v258 = vld [vmem:[#allocation2 + $0x24] sm:$0x1]
        %v259 = vsel %vm248, 0, %v258
        %260 = vst [vmem:[#allocation2 + $0x24] sm:$0x1] %v259
        %v261 = vld [vmem:[#allocation2 + $0x30] sm:$0x1]
        %v262 = vsel %vm248, 0, %v261
        %263 = vst [vmem:[#allocation2 + $0x30] sm:$0x1] %v262
        %v264 = vld [vmem:[#allocation2 + $0x3c] sm:$0x1]
        %v265 = vsel %vm248, 0, %v264
        %266 = vst [vmem:[#allocation2 + $0x3c] sm:$0x1] %v265
        %v267 = vld [vmem:[#allocation2 + $0x48] sm:$0x1]
        %v268 = vsel %vm248, 0, %v267
        %269 = vst [vmem:[#allocation2 + $0x48] sm:$0x1] %v268
        %v270 = vld [vmem:[#allocation2 + $0x54] sm:$0x1]
        %v271 = vsel %vm248, 0, %v270
        %272 = vst [vmem:[#allocation2 + $0x54] sm:$0x1] %v271
        %v273 = vld [vmem:[#allocation2 + $0x60] sm:$0x1]
        %v274 = vsel %vm248, 0, %v273
        %275 = vst [vmem:[#allocation2 + $0x60] sm:$0x1] %v274
        %v276 = vld [vmem:[#allocation2 + $0x6c] sm:$0x1]
        %v277 = vsel %vm248, 0, %v276
        %278 = vst [vmem:[#allocation2 + $0x6c] sm:$0x1] %v277
        %v279 = vld [vmem:[#allocation2 + $0x78] sm:$0x1]
        %v280 = vsel %vm248, 0, %v279
        %281 = vst [vmem:[#allocation2 + $0x78] sm:$0x1] %v280
        %v282 = vld [vmem:[#allocation2 + $0x84] sm:$0x1]
        %v283 = vsel %vm248, 0, %v282
        %284 = vst [vmem:[#allocation2 + $0x84] sm:$0x1] %v283
        %v285 = vld [vmem:[#allocation2 + $0x90] sm:$0x1]
        %v286 = vsel %vm248, 0, %v285
        %287 = vst [vmem:[#allocation2 + $0x90] sm:$0x1] %v286
        %v288 = vld [vmem:[#allocation2 + $0x9c] sm:$0x1]
        %v289 = vsel %vm248, 0, %v288
        %290 = vst [vmem:[#allocation2 + $0x9c] sm:$0x1] %v289
        %v291 = vld [vmem:[#allocation2 + $0xa8] sm:$0x1]
        %v292 = vsel %vm248, 0, %v291
        %293 = vst [vmem:[#allocation2 + $0xa8] sm:$0x1] %v292
        %v294 = vld [vmem:[#allocation2 + $0xb4] sm:$0x1]
        %v295 = vsel %vm248, 0, %v294
        %296 = vst [vmem:[#allocation2 + $0xb4] sm:$0x1] %v295
        %v297 = vld [vmem:[#allocation2 + $0xc0] sm:$0x1]
        %v298 = vsel %vm248, 0, %v297
        %299 = vst [vmem:[#allocation2 + $0xc0] sm:$0x1] %v298
        %v300 = vld [vmem:[#allocation2 + $0xcc] sm:$0x1]
        %v301 = vsel %vm248, 0, %v300
        %302 = vst [vmem:[#allocation2 + $0xcc] sm:$0x1] %v301
        %vm303 = vsmask.f32 7938
        %vm304 = vmand %vm246, %vm303
        %v305 = vld [vmem:[#allocation2 + $0x8] sm:$0x1]
        %v306 = vsel %vm304, 0, %v305
        %307 = vst [vmem:[#allocation2 + $0x8] sm:$0x1] %v306
        %v308 = vld [vmem:[#allocation2 + $0x14] sm:$0x1]
        %v309 = vsel %vm304, 0, %v308
        %310 = vst [vmem:[#allocation2 + $0x14] sm:$0x1] %v309
        %v311 = vld [vmem:[#allocation2 + $0x20] sm:$0x1]
        %v312 = vsel %vm304, 0, %v311
        %313 = vst [vmem:[#allocation2 + $0x20] sm:$0x1] %v312
        %v314 = vld [vmem:[#allocation2 + $0x2c] sm:$0x1]
        %v315 = vsel %vm304, 0, %v314
        %316 = vst [vmem:[#allocation2 + $0x2c] sm:$0x1] %v315
        %v317 = vld [vmem:[#allocation2 + $0x38] sm:$0x1]
        %v318 = vsel %vm304, 0, %v317
        %319 = vst [vmem:[#allocation2 + $0x38] sm:$0x1] %v318
        %v320 = vld [vmem:[#allocation2 + $0x44] sm:$0x1]
        %v321 = vsel %vm304, 0, %v320
        %322 = vst [vmem:[#allocation2 + $0x44] sm:$0x1] %v321
        %v323 = vld [vmem:[#allocation2 + $0x50] sm:$0x1]
        %v324 = vsel %vm304, 0, %v323
        %325 = vst [vmem:[#allocation2 + $0x50] sm:$0x1] %v324
        %v326 = vld [vmem:[#allocation2 + $0x5c] sm:$0x1]
        %v327 = vsel %vm304, 0, %v326
        %328 = vst [vmem:[#allocation2 + $0x5c] sm:$0x1] %v327
        %v329 = vld [vmem:[#allocation2 + $0x68] sm:$0x1]
        %v330 = vsel %vm304, 0, %v329
        %331 = vst [vmem:[#allocation2 + $0x68] sm:$0x1] %v330
        %v332 = vld [vmem:[#allocation2 + $0x74] sm:$0x1]
        %v333 = vsel %vm304, 0, %v332
        %334 = vst [vmem:[#allocation2 + $0x74] sm:$0x1] %v333
        %v335 = vld [vmem:[#allocation2 + $0x80] sm:$0x1]
        %v336 = vsel %vm304, 0, %v335
        %337 = vst [vmem:[#allocation2 + $0x80] sm:$0x1] %v336
        %v338 = vld [vmem:[#allocation2 + $0x8c] sm:$0x1]
        %v339 = vsel %vm304, 0, %v338
        %340 = vst [vmem:[#allocation2 + $0x8c] sm:$0x1] %v339
        %v341 = vld [vmem:[#allocation2 + $0x98] sm:$0x1]
        %v342 = vsel %vm304, 0, %v341
        %343 = vst [vmem:[#allocation2 + $0x98] sm:$0x1] %v342
        %v344 = vld [vmem:[#allocation2 + $0xa4] sm:$0x1]
        %v345 = vsel %vm304, 0, %v344
        %346 = vst [vmem:[#allocation2 + $0xa4] sm:$0x1] %v345
        %v347 = vld [vmem:[#allocation2 + $0xb0] sm:$0x1]
        %v348 = vsel %vm304, 0, %v347
        %349 = vst [vmem:[#allocation2 + $0xb0] sm:$0x1] %v348
        %v350 = vld [vmem:[#allocation2 + $0xbc] sm:$0x1]
        %v351 = vsel %vm304, 0, %v350
        %352 = vst [vmem:[#allocation2 + $0xbc] sm:$0x1] %v351
        %v353 = vld [vmem:[#allocation2 + $0xc8] sm:$0x1]
        %v354 = vsel %vm304, 0, %v353
        %355 = vst [vmem:[#allocation2 + $0xc8] sm:$0x1] %v354
        %v356 = vld [vmem:[#allocation2 + $0xd4] sm:$0x1]
        %v357 = vsel %vm304, 0, %v356
        %358 = vst [vmem:[#allocation2 + $0xd4] sm:$0x1] %v357
        %v359 = vld [vmem:[%s237] sm:$0xf]
        %v360 = vld [vmem:[%s237 + $0x4] sm:$0xf]
        %v361 = vld [vmem:[%s237 + $0xc] sm:$0xf]
        %v362 = vld [vmem:[%s237 + $0x10] sm:$0xf]
        %v363 = vld [vmem:[%s237 + $0x18] sm:$0xf]
        %v364 = vld [vmem:[%s237 + $0x1c] sm:$0xf]
        %v365 = vld [vmem:[%s237 + $0x24] sm:$0xf]
        %v366 = vld [vmem:[%s237 + $0x28] sm:$0xf]
        %v367 = vld [vmem:[%s237 + $0x30] sm:$0xf]
        %v368 = vld [vmem:[%s237 + $0x34] sm:$0xf]
        %v369 = vld [vmem:[%s237 + $0x3c] sm:$0xf]
        %v370 = vld [vmem:[%s237 + $0x40] sm:$0xf]
        %v371 = vld [vmem:[%s237 + $0x48] sm:$0xf]
        %v372 = vld [vmem:[%s237 + $0x4c] sm:$0xf]
        %v373 = vld [vmem:[%s237 + $0x54] sm:$0xf]
        %v374 = vld [vmem:[%s237 + $0x58] sm:$0xf]
        %v375 = vld [vmem:[%s237 + $0x60] sm:$0xf]
        %v376 = vld [vmem:[%s237 + $0x64] sm:$0xf]
        %v377 = vld [vmem:[%s237 + $0x6c] sm:$0xf]
        %v378 = vld [vmem:[%s237 + $0x70] sm:$0xf]
        %v379 = vld [vmem:[%s237 + $0x78] sm:$0xf]
        %v380 = vld [vmem:[%s237 + $0x7c] sm:$0xf]
        %v381 = vld [vmem:[%s237 + $0x84] sm:$0xf]
        %v382 = vld [vmem:[%s237 + $0x88] sm:$0xf]
        %v383 = vld [vmem:[%s237 + $0x90] sm:$0xf]
        %v384 = vld [vmem:[%s237 + $0x94] sm:$0xf]
        %v385 = vld [vmem:[%s237 + $0x9c] sm:$0xf]
        %v386 = vld [vmem:[%s237 + $0xa0] sm:$0xf]
        %v387 = vld [vmem:[%s237 + $0xa8] sm:$0xf]
        %v388 = vld [vmem:[%s237 + $0xac] sm:$0xf]
        %v389 = vld [vmem:[%s237 + $0xb4] sm:$0xf]
        %v390 = vld [vmem:[%s237 + $0xb8] sm:$0xf]
        %v391 = vld [vmem:[%s237 + $0xc0] sm:$0xf]
        %v392 = vld [vmem:[%s237 + $0xc4] sm:$0xf]
        %v393 = vld [vmem:[%s237 + $0xcc] sm:$0xf]
        %v394 = vld [vmem:[%s237 + $0xd0] sm:$0xf]
        %v395 = vld [vmem:[%s237 + $0x8] sm:$0x1]
        %v396 = vld [vmem:[%s237 + $0x14] sm:$0x1]
        %v397 = vld [vmem:[%s237 + $0x20] sm:$0x1]
        %v398 = vld [vmem:[%s237 + $0x2c] sm:$0x1]
        %v399 = vld [vmem:[%s237 + $0x38] sm:$0x1]
        %v400 = vld [vmem:[%s237 + $0x44] sm:$0x1]
        %v401 = vld [vmem:[%s237 + $0x50] sm:$0x1]
        %v402 = vld [vmem:[%s237 + $0x5c] sm:$0x1]
        %v403 = vld [vmem:[%s237 + $0x68] sm:$0x1]
        %v404 = vld [vmem:[%s237 + $0x74] sm:$0x1]
        %v405 = vld [vmem:[%s237 + $0x80] sm:$0x1]
        %v406 = vld [vmem:[%s237 + $0x8c] sm:$0x1]
        %v407 = vld [vmem:[%s237 + $0x98] sm:$0x1]
        %v408 = vld [vmem:[%s237 + $0xa4] sm:$0x1]
        %v409 = vld [vmem:[%s237 + $0xb0] sm:$0x1]
        %v410 = vld [vmem:[%s237 + $0xbc] sm:$0x1]
        %v411 = vld [vmem:[%s237 + $0xc8] sm:$0x1]
        %v412 = vld [vmem:[%s237 + $0xd4] sm:$0x1]
        %v413 = vld [vmem:[%s237] sm:$0xe]
        %v414 = vld [vmem:[%s237 + $0xc] sm:$0xe]
        %v415 = vld [vmem:[%s237 + $0x18] sm:$0xe]
        %v416 = vld [vmem:[%s237 + $0x24] sm:$0xe]
        %v417 = vld [vmem:[%s237 + $0x30] sm:$0xe]
        %v418 = vld [vmem:[%s237 + $0x3c] sm:$0xe]
        %v419 = vld [vmem:[%s237 + $0x48] sm:$0xe]
        %v420 = vld [vmem:[%s237 + $0x54] sm:$0xe]
        %v421 = vld [vmem:[%s237 + $0x60] sm:$0xe]
        %v422 = vld [vmem:[%s237 + $0x6c] sm:$0xe]
        %v423 = vld [vmem:[%s237 + $0x78] sm:$0xe]
        %v424 = vld [vmem:[%s237 + $0x84] sm:$0xe]
        %v425 = vld [vmem:[%s237 + $0x90] sm:$0xe]
        %v426 = vld [vmem:[%s237 + $0x9c] sm:$0xe]
        %v427 = vld [vmem:[%s237 + $0xa8] sm:$0xe]
        %v428 = vld [vmem:[%s237 + $0xb4] sm:$0xe]
        %v429 = vld [vmem:[%s237 + $0xc0] sm:$0xe]
        %v430 = vld [vmem:[%s237 + $0xcc] sm:$0xe]
        %vm431 = vsmask.f32 3328
        %vm432 = vsmask.f32 7440
        %vm433 = vmor %vm431, %vm432
        %v435 = vshrl.u32 %v359, 16
        %v437 = vrot.slane %v435, 4
        %v438 = vshll.u32 %v359, 16
        %v440 = vrot.slane %v438, 5
        %v441 = vor.u32 %v437, %v440
        %v442 = vrot.slane %v441, 4
        %v444 = vshll.u32 %v360, 16
        %v446 = vrot.slane %v444, 5
        %v447 = vsel %vm433, %v442, %v446
        %v448 = vshrl.u32 %v360, 16
        %v450 = vrot.slane %v448, 4
        %v451 = vor.u32 %v450, %v446
        %v452 = vrot.slane %v451, 4
        %v454 = vshll.u32 %v395, 16
        %v456 = vrot.slane %v454, 5
        %v457 = vsel %vm433, %v452, %v456
        %v459 = vshrl.u32 %v361, 16
        %v461 = vrot.slane %v459, 4
        %v462 = vshll.u32 %v361, 16
        %v464 = vrot.slane %v462, 5
        %v465 = vor.u32 %v461, %v464
        %v466 = vrot.slane %v465, 4
        %v468 = vshll.u32 %v362, 16
        %v470 = vrot.slane %v468, 5
        %v471 = vsel %vm433, %v466, %v470
        %v472 = vshrl.u32 %v362, 16
        %v474 = vrot.slane %v472, 4
        %v475 = vor.u32 %v474, %v470
        %v476 = vrot.slane %v475, 4
        %v478 = vshll.u32 %v396, 16
        %v480 = vrot.slane %v478, 5
        %v481 = vsel %vm433, %v476, %v480
        %v483 = vshrl.u32 %v363, 16
        %v485 = vrot.slane %v483, 4
        %v486 = vshll.u32 %v363, 16
        %v488 = vrot.slane %v486, 5
        %v489 = vor.u32 %v485, %v488
        %v490 = vrot.slane %v489, 4
        %v492 = vshll.u32 %v364, 16
        %v494 = vrot.slane %v492, 5
        %v495 = vsel %vm433, %v490, %v494
        %v496 = vshrl.u32 %v364, 16
        %v498 = vrot.slane %v496, 4
        %v499 = vor.u32 %v498, %v494
        %v500 = vrot.slane %v499, 4
        %v502 = vshll.u32 %v397, 16
        %v504 = vrot.slane %v502, 5
        %v505 = vsel %vm433, %v500, %v504
        %v507 = vshrl.u32 %v365, 16
        %v509 = vrot.slane %v507, 4
        %v510 = vshll.u32 %v365, 16
        %v512 = vrot.slane %v510, 5
        %v513 = vor.u32 %v509, %v512
        %v514 = vrot.slane %v513, 4
        %v516 = vshll.u32 %v366, 16
        %v518 = vrot.slane %v516, 5
        %v519 = vsel %vm433, %v514, %v518
        %v520 = vshrl.u32 %v366, 16
        %v522 = vrot.slane %v520, 4
        %v523 = vor.u32 %v522, %v518
        %v524 = vrot.slane %v523, 4
        %v526 = vshll.u32 %v398, 16
        %v528 = vrot.slane %v526, 5
        %v529 = vsel %vm433, %v524, %v528
        %v531 = vshrl.u32 %v367, 16
        %v533 = vrot.slane %v531, 4
        %v534 = vshll.u32 %v367, 16
        %v536 = vrot.slane %v534, 5
        %v537 = vor.u32 %v533, %v536
        %v538 = vrot.slane %v537, 4
        %v540 = vshll.u32 %v368, 16
        %v542 = vrot.slane %v540, 5
        %v543 = vsel %vm433, %v538, %v542
        %v544 = vshrl.u32 %v368, 16
        %v546 = vrot.slane %v544, 4
        %v547 = vor.u32 %v546, %v542
        %v548 = vrot.slane %v547, 4
        %v550 = vshll.u32 %v399, 16
        %v552 = vrot.slane %v550, 5
        %v553 = vsel %vm433, %v548, %v552
        %v555 = vshrl.u32 %v369, 16
        %v557 = vrot.slane %v555, 4
        %v558 = vshll.u32 %v369, 16
        %v560 = vrot.slane %v558, 5
        %v561 = vor.u32 %v557, %v560
        %v562 = vrot.slane %v561, 4
        %v564 = vshll.u32 %v370, 16
        %v566 = vrot.slane %v564, 5
        %v567 = vsel %vm433, %v562, %v566
        %v568 = vshrl.u32 %v370, 16
        %v570 = vrot.slane %v568, 4
        %v571 = vor.u32 %v570, %v566
        %v572 = vrot.slane %v571, 4
        %v574 = vshll.u32 %v400, 16
        %v576 = vrot.slane %v574, 5
        %v577 = vsel %vm433, %v572, %v576
        %v579 = vshrl.u32 %v371, 16
        %v581 = vrot.slane %v579, 4
        %v582 = vshll.u32 %v371, 16
        %v584 = vrot.slane %v582, 5
        %v585 = vor.u32 %v581, %v584
        %v586 = vrot.slane %v585, 4
        %v588 = vshll.u32 %v372, 16
        %v590 = vrot.slane %v588, 5
        %v591 = vsel %vm433, %v586, %v590
        %v592 = vshrl.u32 %v372, 16
        %v594 = vrot.slane %v592, 4
        %v595 = vor.u32 %v594, %v590
        %v596 = vrot.slane %v595, 4
        %v598 = vshll.u32 %v401, 16
        %v600 = vrot.slane %v598, 5
        %v601 = vsel %vm433, %v596, %v600
        %v603 = vshrl.u32 %v373, 16
        %v605 = vrot.slane %v603, 4
        %v606 = vshll.u32 %v373, 16
        %v608 = vrot.slane %v606, 5
        %v609 = vor.u32 %v605, %v608
        %v610 = vrot.slane %v609, 4
        %v612 = vshll.u32 %v374, 16
        %v614 = vrot.slane %v612, 5
        %v615 = vsel %vm433, %v610, %v614
        %v616 = vshrl.u32 %v374, 16
        %v618 = vrot.slane %v616, 4
        %v619 = vor.u32 %v618, %v614
        %v620 = vrot.slane %v619, 4
        %v622 = vshll.u32 %v402, 16
        %v624 = vrot.slane %v622, 5
        %v625 = vsel %vm433, %v620, %v624
        %v627 = vshrl.u32 %v375, 16
        %v629 = vrot.slane %v627, 4
        %v630 = vshll.u32 %v375, 16
        %v632 = vrot.slane %v630, 5
        %v633 = vor.u32 %v629, %v632
        %v634 = vrot.slane %v633, 4
        %v636 = vshll.u32 %v376, 16
        %v638 = vrot.slane %v636, 5
        %v639 = vsel %vm433, %v634, %v638
        %v640 = vshrl.u32 %v376, 16
        %v642 = vrot.slane %v640, 4
        %v643 = vor.u32 %v642, %v638
        %v644 = vrot.slane %v643, 4
        %v646 = vshll.u32 %v403, 16
        %v648 = vrot.slane %v646, 5
        %v649 = vsel %vm433, %v644, %v648
        %v651 = vshrl.u32 %v377, 16
        %v653 = vrot.slane %v651, 4
        %v654 = vshll.u32 %v377, 16
        %v656 = vrot.slane %v654, 5
        %v657 = vor.u32 %v653, %v656
        %v658 = vrot.slane %v657, 4
        %v660 = vshll.u32 %v378, 16
        %v662 = vrot.slane %v660, 5
        %v663 = vsel %vm433, %v658, %v662
        %v664 = vshrl.u32 %v378, 16
        %v666 = vrot.slane %v664, 4
        %v667 = vor.u32 %v666, %v662
        %v668 = vrot.slane %v667, 4
        %v670 = vshll.u32 %v404, 16
        %v672 = vrot.slane %v670, 5
        %v673 = vsel %vm433, %v668, %v672
        %v675 = vshrl.u32 %v379, 16
        %v677 = vrot.slane %v675, 4
        %v678 = vshll.u32 %v379, 16
        %v680 = vrot.slane %v678, 5
        %v681 = vor.u32 %v677, %v680
        %v682 = vrot.slane %v681, 4
        %v684 = vshll.u32 %v380, 16
        %v686 = vrot.slane %v684, 5
        %v687 = vsel %vm433, %v682, %v686
        %v688 = vshrl.u32 %v380, 16
        %v690 = vrot.slane %v688, 4
        %v691 = vor.u32 %v690, %v686
        %v692 = vrot.slane %v691, 4
        %v694 = vshll.u32 %v405, 16
        %v696 = vrot.slane %v694, 5
        %v697 = vsel %vm433, %v692, %v696
        %v699 = vshrl.u32 %v381, 16
        %v701 = vrot.slane %v699, 4
        %v702 = vshll.u32 %v381, 16
        %v704 = vrot.slane %v702, 5
        %v705 = vor.u32 %v701, %v704
        %v706 = vrot.slane %v705, 4
        %v708 = vshll.u32 %v382, 16
        %v710 = vrot.slane %v708, 5
        %v711 = vsel %vm433, %v706, %v710
        %v712 = vshrl.u32 %v382, 16
        %v714 = vrot.slane %v712, 4
        %v715 = vor.u32 %v714, %v710
        %v716 = vrot.slane %v715, 4
        %v718 = vshll.u32 %v406, 16
        %v720 = vrot.slane %v718, 5
        %v721 = vsel %vm433, %v716, %v720
        %v723 = vshrl.u32 %v383, 16
        %v725 = vrot.slane %v723, 4
        %v726 = vshll.u32 %v383, 16
        %v728 = vrot.slane %v726, 5
        %v729 = vor.u32 %v725, %v728
        %v730 = vrot.slane %v729, 4
        %v732 = vshll.u32 %v384, 16
        %v734 = vrot.slane %v732, 5
        %v735 = vsel %vm433, %v730, %v734
        %v736 = vshrl.u32 %v384, 16
        %v738 = vrot.slane %v736, 4
        %v739 = vor.u32 %v738, %v734
        %v740 = vrot.slane %v739, 4
        %v742 = vshll.u32 %v407, 16
        %v744 = vrot.slane %v742, 5
        %v745 = vsel %vm433, %v740, %v744
        %v747 = vshrl.u32 %v385, 16
        %v749 = vrot.slane %v747, 4
        %v750 = vshll.u32 %v385, 16
        %v752 = vrot.slane %v750, 5
        %v753 = vor.u32 %v749, %v752
        %v754 = vrot.slane %v753, 4
        %v756 = vshll.u32 %v386, 16
        %v758 = vrot.slane %v756, 5
        %v759 = vsel %vm433, %v754, %v758
        %v760 = vshrl.u32 %v386, 16
        %v762 = vrot.slane %v760, 4
        %v763 = vor.u32 %v762, %v758
        %v764 = vrot.slane %v763, 4
        %v766 = vshll.u32 %v408, 16
        %v768 = vrot.slane %v766, 5
        %v769 = vsel %vm433, %v764, %v768
        %v771 = vshrl.u32 %v387, 16
        %v773 = vrot.slane %v771, 4
        %v774 = vshll.u32 %v387, 16
        %v776 = vrot.slane %v774, 5
        %v777 = vor.u32 %v773, %v776
        %v778 = vrot.slane %v777, 4
        %v780 = vshll.u32 %v388, 16
        %v782 = vrot.slane %v780, 5
        %v783 = vsel %vm433, %v778, %v782
        %v784 = vshrl.u32 %v388, 16
        %v786 = vrot.slane %v784, 4
        %v787 = vor.u32 %v786, %v782
        %v788 = vrot.slane %v787, 4
        %v790 = vshll.u32 %v409, 16
        %v792 = vrot.slane %v790, 5
        %v793 = vsel %vm433, %v788, %v792
        %v795 = vshrl.u32 %v389, 16
        %v797 = vrot.slane %v795, 4
        %v798 = vshll.u32 %v389, 16
        %v800 = vrot.slane %v798, 5
        %v801 = vor.u32 %v797, %v800
        %v802 = vrot.slane %v801, 4
        %v804 = vshll.u32 %v390, 16
        %v806 = vrot.slane %v804, 5
        %v807 = vsel %vm433, %v802, %v806
        %v808 = vshrl.u32 %v390, 16
        %v810 = vrot.slane %v808, 4
        %v811 = vor.u32 %v810, %v806
        %v812 = vrot.slane %v811, 4
        %v814 = vshll.u32 %v410, 16
        %v816 = vrot.slane %v814, 5
        %v817 = vsel %vm433, %v812, %v816
        %vm866 = vcmask 1042432
        %vm867 = vcmask 1046532
        %vm868 = vmor %vm866, %vm867
        %v869 = vrot.slane %v413, 5
        %v870 = vrot.slane %v869, 4
        %v871 = vrot.slane %v360, 5
        %v872 = vsel %vm868, %v870, %v871
        %v873 = vrot.slane %v871, 4
        %v874 = vrot.slane %v395, 5
        %v875 = vsel %vm868, %v873, %v874
        %v876 = vrot.slane %v414, 5
        %v877 = vrot.slane %v876, 4
        %v878 = vrot.slane %v362, 5
        %v879 = vsel %vm868, %v877, %v878
        %v880 = vrot.slane %v878, 4
        %v881 = vrot.slane %v396, 5
        %v882 = vsel %vm868, %v880, %v881
        %v883 = vrot.slane %v415, 5
        %v884 = vrot.slane %v883, 4
        %v885 = vrot.slane %v364, 5
        %v886 = vsel %vm868, %v884, %v885
        %v887 = vrot.slane %v885, 4
        %v888 = vrot.slane %v397, 5
        %v889 = vsel %vm868, %v887, %v888
        %v890 = vrot.slane %v416, 5
        %v891 = vrot.slane %v890, 4
        %v892 = vrot.slane %v366, 5
        %v893 = vsel %vm868, %v891, %v892
        %v894 = vrot.slane %v892, 4
        %v895 = vrot.slane %v398, 5
        %v896 = vsel %vm868, %v894, %v895
        %v897 = vrot.slane %v417, 5
        %v898 = vrot.slane %v897, 4
        %v899 = vrot.slane %v368, 5
        %v900 = vsel %vm868, %v898, %v899
        %v901 = vrot.slane %v899, 4
        %v902 = vrot.slane %v399, 5
        %v903 = vsel %vm868, %v901, %v902
        %v904 = vrot.slane %v418, 5
        %v905 = vrot.slane %v904, 4
        %v906 = vrot.slane %v370, 5
        %v907 = vsel %vm868, %v905, %v906
        %v908 = vrot.slane %v906, 4
        %v909 = vrot.slane %v400, 5
        %v910 = vsel %vm868, %v908, %v909
        %v911 = vrot.slane %v419, 5
        %v912 = vrot.slane %v911, 4
        %v913 = vrot.slane %v372, 5
        %v914 = vsel %vm868, %v912, %v913
        %v915 = vrot.slane %v913, 4
        %v916 = vrot.slane %v401, 5
        %v917 = vsel %vm868, %v915, %v916
        %v918 = vrot.slane %v420, 5
        %v919 = vrot.slane %v918, 4
        %v920 = vrot.slane %v374, 5
        %v921 = vsel %vm868, %v919, %v920
        %v922 = vrot.slane %v920, 4
        %v923 = vrot.slane %v402, 5
        %v924 = vsel %vm868, %v922, %v923
        %v925 = vrot.slane %v421, 5
        %v926 = vrot.slane %v925, 4
        %v927 = vrot.slane %v376, 5
        %v928 = vsel %vm868, %v926, %v927
        %v929 = vrot.slane %v927, 4
        %v930 = vrot.slane %v403, 5
        %v931 = vsel %vm868, %v929, %v930
        %v932 = vrot.slane %v422, 5
        %v933 = vrot.slane %v932, 4
        %v934 = vrot.slane %v378, 5
        %v935 = vsel %vm868, %v933, %v934
        %v936 = vrot.slane %v934, 4
        %v937 = vrot.slane %v404, 5
        %v938 = vsel %vm868, %v936, %v937
        %v939 = vrot.slane %v423, 5
        %v940 = vrot.slane %v939, 4
        %v941 = vrot.slane %v380, 5
        %v942 = vsel %vm868, %v940, %v941
        %v943 = vrot.slane %v941, 4
        %v944 = vrot.slane %v405, 5
        %v945 = vsel %vm868, %v943, %v944
        %v946 = vrot.slane %v424, 5
        %v947 = vrot.slane %v946, 4
        %v948 = vrot.slane %v382, 5
        %v949 = vsel %vm868, %v947, %v948
        %v950 = vrot.slane %v948, 4
        %v951 = vrot.slane %v406, 5
        %v952 = vsel %vm868, %v950, %v951
        %v953 = vrot.slane %v425, 5
        %v954 = vrot.slane %v953, 4
        %v955 = vrot.slane %v384, 5
        %v956 = vsel %vm868, %v954, %v955
        %v957 = vrot.slane %v955, 4
        %v958 = vrot.slane %v407, 5
        %v959 = vsel %vm868, %v957, %v958
        %v960 = vrot.slane %v426, 5
        %v961 = vrot.slane %v960, 4
        %v962 = vrot.slane %v386, 5
        %v963 = vsel %vm868, %v961, %v962
        %v964 = vrot.slane %v962, 4
        %v965 = vrot.slane %v408, 5
        %v966 = vsel %vm868, %v964, %v965
        %v967 = vrot.slane %v427, 5
        %v968 = vrot.slane %v967, 4
        %v969 = vrot.slane %v388, 5
        %v970 = vsel %vm868, %v968, %v969
        %v971 = vrot.slane %v969, 4
        %v972 = vrot.slane %v409, 5
        %v973 = vsel %vm868, %v971, %v972
        %v974 = vrot.slane %v428, 5
        %v975 = vrot.slane %v974, 4
        %v976 = vrot.slane %v390, 5
        %v977 = vsel %vm868, %v975, %v976
        %v978 = vrot.slane %v976, 4
        %v979 = vrot.slane %v410, 5
        %v980 = vsel %vm868, %v978, %v979
        %v982 = vshrl.u32 %v391, 16
        %v984 = vrot.slane %v982, 4
        %v985 = vshll.u32 %v391, 16
        %v987 = vrot.slane %v985, 5
        %v988 = vor.u32 %v984, %v987
        %v989 = vrot.slane %v988, 4
        %v991 = vshll.u32 %v392, 16
        %v993 = vrot.slane %v991, 5
        %v994 = vsel %vm433, %v989, %v993
        %v995 = vshrl.u32 %v392, 16
        %v997 = vrot.slane %v995, 4
        %v998 = vor.u32 %v997, %v993
        %v999 = vrot.slane %v998, 4
        %v1001 = vshll.u32 %v411, 16
        %v1003 = vrot.slane %v1001, 5
        %v1004 = vsel %vm433, %v999, %v1003
        %v1008 = vrot.slane %v429, 5
        %v1009 = vrot.slane %v1008, 4
        %v1010 = vrot.slane %v392, 5
        %v1011 = vsel %vm868, %v1009, %v1010
        %v1012 = vrot.slane %v1010, 4
        %v1013 = vrot.slane %v411, 5
        %v1014 = vsel %vm868, %v1012, %v1013
        %v1016 = vshrl.u32 %v393, 16
        %v1018 = vrot.slane %v1016, 4
        %v1019 = vshll.u32 %v393, 16
        %v1021 = vrot.slane %v1019, 5
        %v1022 = vor.u32 %v1018, %v1021
        %v1023 = vrot.slane %v1022, 4
        %v1025 = vshll.u32 %v394, 16
        %v1027 = vrot.slane %v1025, 5
        %v1028 = vsel %vm433, %v1023, %v1027
        %v1029 = vshrl.u32 %v394, 16
        %v1031 = vrot.slane %v1029, 4
        %v1032 = vor.u32 %v1031, %v1027
        %v1033 = vrot.slane %v1032, 4
        %v1035 = vshll.u32 %v412, 16
        %v1037 = vrot.slane %v1035, 5
        %v1038 = vsel %vm433, %v1033, %v1037
        %v1042 = vrot.slane %v430, 5
        %v1043 = vrot.slane %v1042, 4
        %v1044 = vrot.slane %v394, 5
        %v1045 = vsel %vm868, %v1043, %v1044
        %v1046 = vrot.slane %v1044, 4
        %v1047 = vrot.slane %v412, 5
        %v1048 = vsel %vm868, %v1046, %v1047
        %v1065 = vunpack.c.l.b16 %v359
        %v1066 = vunpack.c.l.b16 %v360
        %v1067 = vunpack.c.l.b16 %v361
        %v1068 = vunpack.c.l.b16 %v362
        %v1069 = vunpack.c.l.b16 %v363
        %v1070 = vunpack.c.l.b16 %v364
        %v1071 = vunpack.c.l.b16 %v365
        %v1072 = vunpack.c.l.b16 %v366
        %v1073 = vunpack.c.l.b16 %v367
        %v1074 = vunpack.c.l.b16 %v368
        %v1075 = vunpack.c.l.b16 %v369
        %v1076 = vunpack.c.l.b16 %v370
        %v1077 = vunpack.c.l.b16 %v371
        %v1078 = vunpack.c.l.b16 %v372
        %v1079 = vunpack.c.l.b16 %v373
        %v1080 = vunpack.c.l.b16 %v374
        %v1081 = vunpack.c.l.b16 %v375
        %v1082 = vunpack.c.l.b16 %v376
        %v1083 = vunpack.c.l.b16 %v377
        %v1084 = vunpack.c.l.b16 %v378
        %v1085 = vunpack.c.l.b16 %v379
        %v1086 = vunpack.c.l.b16 %v380
        %v1087 = vunpack.c.l.b16 %v381
        %v1088 = vunpack.c.l.b16 %v382
        %v1089 = vunpack.c.l.b16 %v383
        %v1090 = vunpack.c.l.b16 %v384
        %v1091 = vunpack.c.l.b16 %v385
        %v1092 = vunpack.c.l.b16 %v386
        %v1093 = vunpack.c.l.b16 %v387
        %v1094 = vunpack.c.l.b16 %v388
        %v1095 = vunpack.c.l.b16 %v389
        %v1096 = vunpack.c.l.b16 %v390
        %v1097 = vpack.c.b16 %v1066, %v1065
        %v1098 = vpack.c.b16 %v1068, %v1067
        %v1099 = vpack.c.b16 %v1070, %v1069
        %v1100 = vpack.c.b16 %v1072, %v1071
        %v1101 = vpack.c.b16 %v1074, %v1073
        %v1102 = vpack.c.b16 %v1076, %v1075
        %v1103 = vpack.c.b16 %v1078, %v1077
        %v1104 = vpack.c.b16 %v1080, %v1079
        %v1105 = vpack.c.b16 %v1082, %v1081
        %v1106 = vpack.c.b16 %v1084, %v1083
        %v1107 = vpack.c.b16 %v1086, %v1085
        %v1108 = vpack.c.b16 %v1088, %v1087
        %v1109 = vpack.c.b16 %v1090, %v1089
        %v1110 = vpack.c.b16 %v1092, %v1091
        %v1111 = vpack.c.b16 %v1094, %v1093
        %v1112 = vpack.c.b16 %v1096, %v1095
        %v1129 = vunpack.c.l.b16 %v447
        %v1130 = vunpack.c.l.b16 %v457
        %v1131 = vunpack.c.l.b16 %v471
        %v1132 = vunpack.c.l.b16 %v481
        %v1133 = vunpack.c.l.b16 %v495
        %v1134 = vunpack.c.l.b16 %v505
        %v1135 = vunpack.c.l.b16 %v519
        %v1136 = vunpack.c.l.b16 %v529
        %v1137 = vunpack.c.l.b16 %v543
        %v1138 = vunpack.c.l.b16 %v553
        %v1139 = vunpack.c.l.b16 %v567
        %v1140 = vunpack.c.l.b16 %v577
        %v1141 = vunpack.c.l.b16 %v591
        %v1142 = vunpack.c.l.b16 %v601
        %v1143 = vunpack.c.l.b16 %v615
        %v1144 = vunpack.c.l.b16 %v625
        %v1145 = vunpack.c.l.b16 %v639
        %v1146 = vunpack.c.l.b16 %v649
        %v1147 = vunpack.c.l.b16 %v663
        %v1148 = vunpack.c.l.b16 %v673
        %v1149 = vunpack.c.l.b16 %v687
        %v1150 = vunpack.c.l.b16 %v697
        %v1151 = vunpack.c.l.b16 %v711
        %v1152 = vunpack.c.l.b16 %v721
        %v1153 = vunpack.c.l.b16 %v735
        %v1154 = vunpack.c.l.b16 %v745
        %v1155 = vunpack.c.l.b16 %v759
        %v1156 = vunpack.c.l.b16 %v769
        %v1157 = vunpack.c.l.b16 %v783
        %v1158 = vunpack.c.l.b16 %v793
        %v1159 = vunpack.c.l.b16 %v807
        %v1160 = vunpack.c.l.b16 %v817
        %v1161 = vpack.c.b16 %v1130, %v1129
        %v1162 = vpack.c.b16 %v1132, %v1131
        %v1163 = vpack.c.b16 %v1134, %v1133
        %v1164 = vpack.c.b16 %v1136, %v1135
        %v1165 = vpack.c.b16 %v1138, %v1137
        %v1166 = vpack.c.b16 %v1140, %v1139
        %v1167 = vpack.c.b16 %v1142, %v1141
        %v1168 = vpack.c.b16 %v1144, %v1143
        %v1169 = vpack.c.b16 %v1146, %v1145
        %v1170 = vpack.c.b16 %v1148, %v1147
        %v1171 = vpack.c.b16 %v1150, %v1149
        %v1172 = vpack.c.b16 %v1152, %v1151
        %v1173 = vpack.c.b16 %v1154, %v1153
        %v1174 = vpack.c.b16 %v1156, %v1155
        %v1175 = vpack.c.b16 %v1158, %v1157
        %v1176 = vpack.c.b16 %v1160, %v1159
        %v1193 = vunpack.c.l.b16 %v872
        %v1194 = vunpack.c.l.b16 %v875
        %v1195 = vunpack.c.l.b16 %v879
        %v1196 = vunpack.c.l.b16 %v882
        %v1197 = vunpack.c.l.b16 %v886
        %v1198 = vunpack.c.l.b16 %v889
        %v1199 = vunpack.c.l.b16 %v893
        %v1200 = vunpack.c.l.b16 %v896
        %v1201 = vunpack.c.l.b16 %v900
        %v1202 = vunpack.c.l.b16 %v903
        %v1203 = vunpack.c.l.b16 %v907
        %v1204 = vunpack.c.l.b16 %v910
        %v1205 = vunpack.c.l.b16 %v914
        %v1206 = vunpack.c.l.b16 %v917
        %v1207 = vunpack.c.l.b16 %v921
        %v1208 = vunpack.c.l.b16 %v924
        %v1209 = vunpack.c.l.b16 %v928
        %v1210 = vunpack.c.l.b16 %v931
        %v1211 = vunpack.c.l.b16 %v935
        %v1212 = vunpack.c.l.b16 %v938
        %v1213 = vunpack.c.l.b16 %v942
        %v1214 = vunpack.c.l.b16 %v945
        %v1215 = vunpack.c.l.b16 %v949
        %v1216 = vunpack.c.l.b16 %v952
        %v1217 = vunpack.c.l.b16 %v956
        %v1218 = vunpack.c.l.b16 %v959
        %v1219 = vunpack.c.l.b16 %v963
        %v1220 = vunpack.c.l.b16 %v966
        %v1221 = vunpack.c.l.b16 %v970
        %v1222 = vunpack.c.l.b16 %v973
        %v1223 = vunpack.c.l.b16 %v977
        %v1224 = vunpack.c.l.b16 %v980
        %v1225 = vpack.c.b16 %v1194, %v1193
        %v1226 = vpack.c.b16 %v1196, %v1195
        %v1227 = vpack.c.b16 %v1198, %v1197
        %v1228 = vpack.c.b16 %v1200, %v1199
        %v1229 = vpack.c.b16 %v1202, %v1201
        %v1230 = vpack.c.b16 %v1204, %v1203
        %v1231 = vpack.c.b16 %v1206, %v1205
        %v1232 = vpack.c.b16 %v1208, %v1207
        %v1233 = vpack.c.b16 %v1210, %v1209
        %v1234 = vpack.c.b16 %v1212, %v1211
        %v1235 = vpack.c.b16 %v1214, %v1213
        %v1236 = vpack.c.b16 %v1216, %v1215
        %v1237 = vpack.c.b16 %v1218, %v1217
        %v1238 = vpack.c.b16 %v1220, %v1219
        %v1239 = vpack.c.b16 %v1222, %v1221
        %v1240 = vpack.c.b16 %v1224, %v1223
        %v1258 = vunpack.c.l.b16 %v391
        %v1259 = vunpack.c.l.b16 %v392
        %v1260 = vpack.c.b16 %v1259, %v1258
        %v1262 = vunpack.c.l.b16 %v994
        %v1263 = vunpack.c.l.b16 %v1004
        %v1264 = vpack.c.b16 %v1263, %v1262
        %v1266 = vunpack.c.l.b16 %v1011
        %v1267 = vunpack.c.l.b16 %v1014
        %v1268 = vpack.c.b16 %v1267, %v1266
        %v1271 = vunpack.c.l.b16 %v393
        %v1272 = vunpack.c.l.b16 %v394
        %v1273 = vpack.c.b16 %v1272, %v1271
        %v1275 = vunpack.c.l.b16 %v1028
        %v1276 = vunpack.c.l.b16 %v1038
        %v1277 = vpack.c.b16 %v1276, %v1275
        %v1279 = vunpack.c.l.b16 %v1045
        %v1280 = vunpack.c.l.b16 %v1048
        %v1281 = vpack.c.b16 %v1280, %v1279
        %v1283 = vld [vmem:[#allocation4] sm:$0xf]
        %v1284 = vld [vmem:[#allocation4 + $0x4] sm:$0xf]
        %v1285 = vld [vmem:[#allocation4 + $0x8] sm:$0xf]
        %v1286 = vld [vmem:[#allocation4 + $0xc] sm:$0xf]
        %v1287 = vld [vmem:[#allocation4 + $0x10] sm:$0xf]
        %v1288 = vld [vmem:[#allocation4 + $0x14] sm:$0xf]
        %v1289 = vld [vmem:[#allocation4 + $0x18] sm:$0xf]
        %v1290 = vld [vmem:[#allocation4 + $0x1c] sm:$0xf]
        %v1291 = vld [vmem:[#allocation4 + $0x20] sm:$0xf]
        %v1292 = vld [vmem:[#allocation4 + $0x24] sm:$0xf]
        %v1293 = vld [vmem:[#allocation4 + $0x28] sm:$0xf]
        %v1294 = vld [vmem:[#allocation4 + $0x2c] sm:$0xf]
        %v1295 = vld [vmem:[#allocation4 + $0x30] sm:$0xf]
        %v1296 = vld [vmem:[#allocation4 + $0x34] sm:$0xf]
        %v1297 = vld [vmem:[#allocation4 + $0x38] sm:$0xf]
        %v1298 = vld [vmem:[#allocation4 + $0x3c] sm:$0xf]
        %v1299 = vld [vmem:[#allocation4 + $0x40] sm:$0xf]
        %v1300 = vld [vmem:[#allocation4 + $0x44] sm:$0xf]
        %v1301 = vld [vmem:[#allocation4 + $0x48] sm:$0xf]
        %v1302 = vld [vmem:[#allocation4 + $0x4c] sm:$0xf]
        %v1303 = vld [vmem:[#allocation4 + $0x50] sm:$0xf]
        %v1304 = vld [vmem:[#allocation4 + $0x54] sm:$0xf]
        %v1305 = vld [vmem:[#allocation4 + $0x58] sm:$0xf]
        %v1306 = vld [vmem:[#allocation4 + $0x5c] sm:$0xf]
        %v1307 = vld [vmem:[#allocation4 + $0x60] sm:$0xf]
        %v1308 = vld [vmem:[#allocation4 + $0x64] sm:$0xf]
        %v1309 = vld [vmem:[#allocation4 + $0x68] sm:$0xf]
        %v1310 = vld [vmem:[#allocation4 + $0x6c] sm:$0xf]
        %v1311 = vld [vmem:[#allocation4 + $0x70] sm:$0xf]
        %v1312 = vld [vmem:[#allocation4 + $0x74] sm:$0xf]
        %v1313 = vld [vmem:[#allocation4 + $0x78] sm:$0xf]
        %v1314 = vld [vmem:[#allocation4 + $0x7c] sm:$0xf]
        %v1315 = vld [vmem:[#allocation4 + $0x80] sm:$0xf]
        %v1316 = vld [vmem:[#allocation4 + $0x84] sm:$0xf]
        %v1317 = vld [vmem:[#allocation4 + $0x88] sm:$0xf]
        %v1318 = vld [vmem:[#allocation4 + $0x8c] sm:$0xf]
        %v1319 = vld [vmem:[#allocation4 + $0x90] sm:$0xf]
        %v1320 = vld [vmem:[#allocation4 + $0x94] sm:$0xf]
        %v1321 = vld [vmem:[#allocation4 + $0x98] sm:$0xf]
        %v1322 = vld [vmem:[#allocation4 + $0x9c] sm:$0xf]
        %v1323 = vld [vmem:[#allocation4 + $0xa0] sm:$0xf]
        %v1324 = vld [vmem:[#allocation4 + $0xa4] sm:$0xf]
        %v1325 = vld [vmem:[#allocation4 + $0xa8] sm:$0xf]
        %v1326 = vld [vmem:[#allocation4 + $0xac] sm:$0xf]
        %v1327 = vld [vmem:[#allocation4 + $0xb0] sm:$0xf]
        %v1328 = vld [vmem:[#allocation4 + $0xb4] sm:$0xf]
        %v1329 = vld [vmem:[#allocation4 + $0xb8] sm:$0xf]
        %v1330 = vld [vmem:[#allocation4 + $0xbc] sm:$0xf]
        %v1331 = vld [vmem:[#allocation4 + $0xc0] sm:$0xf]
        %v1332 = vld [vmem:[#allocation4 + $0xc4] sm:$0xf]
        %v1333 = vld [vmem:[#allocation4 + $0xc8] sm:$0xf]
        %v1334 = vld [vmem:[#allocation4 + $0xcc] sm:$0xf]
        %v1335 = vld [vmem:[#allocation4 + $0xd0] sm:$0xf]
        %v1336 = vld [vmem:[#allocation4 + $0xd4] sm:$0xf]
        %v1337 = vld [vmem:[#allocation4 + $0xd8] sm:$0xf]
        %v1338 = vld [vmem:[#allocation4 + $0xdc] sm:$0xf]
        %v1339 = vld [vmem:[#allocation4 + $0xe0] sm:$0xf]
        %v1340 = vld [vmem:[#allocation4 + $0xe4] sm:$0xf]
        %v1341 = vld [vmem:[#allocation4 + $0xe8] sm:$0xf]
        %v1342 = vld [vmem:[#allocation4 + $0xec] sm:$0xf]
        %v1343 = vld [vmem:[#allocation4 + $0xf0] sm:$0xf]
        %v1344 = vld [vmem:[#allocation4 + $0xf4] sm:$0xf]
        %v1345 = vld [vmem:[#allocation4 + $0xf8] sm:$0xf]
        %v1346 = vld [vmem:[#allocation4 + $0xfc] sm:$0xf]
        %v1347 = vld [vmem:[#allocation4 + $0x100] sm:$0xf]
        %v1348 = vld [vmem:[#allocation4 + $0x104] sm:$0xf]
        %v1349 = vld [vmem:[#allocation4 + $0x108] sm:$0xf]
        %v1350 = vld [vmem:[#allocation4 + $0x10c] sm:$0xf]
        %v1351 = vld [vmem:[#allocation4 + $0x110] sm:$0xf]
        %v1352 = vld [vmem:[#allocation4 + $0x114] sm:$0xf]
        %v1353 = vld [vmem:[#allocation4 + $0x118] sm:$0xf]
        %v1354 = vld [vmem:[#allocation4 + $0x11c] sm:$0xf]
        %v1355 = vld [vmem:[#allocation4 + $0x120] sm:$0xf]
        %v1356 = vld [vmem:[#allocation4 + $0x124] sm:$0xf]
        %v1357 = vld [vmem:[#allocation4 + $0x128] sm:$0xf]
        %v1358 = vld [vmem:[#allocation4 + $0x12c] sm:$0xf]
        %v1359 = vld [vmem:[#allocation4 + $0x130] sm:$0xf]
        %v1360 = vld [vmem:[#allocation4 + $0x134] sm:$0xf]
        %v1361 = vld [vmem:[#allocation4 + $0x138] sm:$0xf]
        %v1362 = vld [vmem:[#allocation4 + $0x13c] sm:$0xf]
        %v1363 = vld [vmem:[#allocation4 + $0x140] sm:$0xf]
        %v1364 = vld [vmem:[#allocation4 + $0x144] sm:$0xf]
        %v1365 = vld [vmem:[#allocation4 + $0x148] sm:$0xf]
        %v1366 = vld [vmem:[#allocation4 + $0x14c] sm:$0xf]
        %v1367 = vld [vmem:[#allocation4 + $0x150] sm:$0xf]
        %v1368 = vld [vmem:[#allocation4 + $0x154] sm:$0xf]
        %v1369 = vld [vmem:[#allocation4 + $0x158] sm:$0xf]
        %v1370 = vld [vmem:[#allocation4 + $0x15c] sm:$0xf]
        %v1371 = vld [vmem:[#allocation4 + $0x160] sm:$0xf]
        %v1372 = vld [vmem:[#allocation4 + $0x164] sm:$0xf]
        %v1373 = vld [vmem:[#allocation4 + $0x168] sm:$0xf]
        %v1374 = vld [vmem:[#allocation4 + $0x16c] sm:$0xf]
        %v1375 = vld [vmem:[#allocation4 + $0x170] sm:$0xf]
        %v1376 = vld [vmem:[#allocation4 + $0x174] sm:$0xf]
        %v1377 = vld [vmem:[#allocation4 + $0x178] sm:$0xf]
        %v1378 = vld [vmem:[#allocation4 + $0x17c] sm:$0xf]
        %v1379 = vld [vmem:[#allocation4 + $0x180] sm:$0xf]
        %v1380 = vld [vmem:[#allocation4 + $0x184] sm:$0xf]
        %v1381 = vld [vmem:[#allocation4 + $0x188] sm:$0xf]
        %v1382 = vld [vmem:[#allocation4 + $0x18c] sm:$0xf]
        %v1383 = vld [vmem:[#allocation4 + $0x190] sm:$0xf]
        %v1384 = vld [vmem:[#allocation4 + $0x194] sm:$0xf]
        %v1385 = vld [vmem:[#allocation4 + $0x198] sm:$0xf]
        %v1386 = vld [vmem:[#allocation4 + $0x19c] sm:$0xf]
        %v1387 = vld [vmem:[#allocation4 + $0x1a0] sm:$0xf]
        %v1388 = vld [vmem:[#allocation4 + $0x1a4] sm:$0xf]
        %v1389 = vld [vmem:[#allocation4 + $0x1a8] sm:$0xf]
        %v1390 = vld [vmem:[#allocation4 + $0x1ac] sm:$0xf]
        %v1391 = vld [vmem:[#allocation4 + $0x1b0] sm:$0xf]
        %v1392 = vld [vmem:[#allocation4 + $0x1b4] sm:$0xf]
        %v1393 = vld [vmem:[#allocation4 + $0x1b8] sm:$0xf]
        %v1394 = vld [vmem:[#allocation4 + $0x1bc] sm:$0xf]
        %v1395 = vld [vmem:[#allocation4 + $0x1c0] sm:$0xf]
        %v1396 = vld [vmem:[#allocation4 + $0x1c4] sm:$0xf]
        %v1397 = vld [vmem:[#allocation4 + $0x1c8] sm:$0xf]
        %v1398 = vld [vmem:[#allocation4 + $0x1cc] sm:$0xf]
        %v1399 = vld [vmem:[#allocation4 + $0x1d0] sm:$0xf]
        %v1400 = vld [vmem:[#allocation4 + $0x1d4] sm:$0xf]
        %v1401 = vld [vmem:[#allocation4 + $0x1d8] sm:$0xf]
        %v1402 = vld [vmem:[#allocation4 + $0x1dc] sm:$0xf]
        %v1403 = vld [vmem:[#allocation4 + $0x1e0] sm:$0xf]
        %v1404 = vld [vmem:[#allocation4 + $0x1e4] sm:$0xf]
        %v1405 = vld [vmem:[#allocation4 + $0x1e8] sm:$0xf]
        %v1406 = vld [vmem:[#allocation4 + $0x1ec] sm:$0xf]
        %v1407 = vld [vmem:[#allocation4 + $0x1f0] sm:$0xf]
        %v1408 = vld [vmem:[#allocation4 + $0x1f4] sm:$0xf]
        %v1409 = vld [vmem:[#allocation4 + $0x1f8] sm:$0xf]
        %v1410 = vld [vmem:[#allocation4 + $0x1fc] sm:$0xf]
        %v1411 = vld [vmem:[#allocation4 + $0x200] sm:$0xf]
        %v1412 = vld [vmem:[#allocation4 + $0x204] sm:$0xf]
        %v1413 = vld [vmem:[#allocation4 + $0x208] sm:$0xf]
        %v1414 = vld [vmem:[#allocation4 + $0x20c] sm:$0xf]
        %v1415 = vld [vmem:[#allocation4 + $0x210] sm:$0xf]
        %v1416 = vld [vmem:[#allocation4 + $0x214] sm:$0xf]
        %v1417 = vld [vmem:[#allocation4 + $0x218] sm:$0xf]
        %v1418 = vld [vmem:[#allocation4 + $0x21c] sm:$0xf]
        %v1419 = vld [vmem:[#allocation4 + $0x220] sm:$0xf]
        %v1420 = vld [vmem:[#allocation4 + $0x224] sm:$0xf]
        %v1421 = vld [vmem:[#allocation4 + $0x228] sm:$0xf]
        %v1422 = vld [vmem:[#allocation4 + $0x22c] sm:$0xf]
        %v1423 = vld [vmem:[#allocation4 + $0x230] sm:$0xf]
        %v1424 = vld [vmem:[#allocation4 + $0x234] sm:$0xf]
        %v1425 = vld [vmem:[#allocation4 + $0x238] sm:$0xf]
        %v1426 = vld [vmem:[#allocation4 + $0x23c] sm:$0xf]
        %v1427 = vld [vmem:[%s2] sm:$0x1]
        %v1429 = vlaneseq
        %v1430 = vshrl.u32 %v1429, 7
        %v1431 = vsub.s32 0, %v1430
        %v1432 = vrot.slane %v1427, %v1431
        %v1578 = vunpack.c.l.b16 %v1283
        %v1579 = vunpack.c.l.b16 %v1284
        %v1580 = vunpack.c.l.b16 %v1285
        %v1581 = vunpack.c.l.b16 %v1286
        %v1582 = vunpack.c.l.b16 %v1287
        %v1583 = vunpack.c.l.b16 %v1288
        %v1584 = vunpack.c.l.b16 %v1289
        %v1585 = vunpack.c.l.b16 %v1290
        %v1586 = vunpack.c.l.b16 %v1291
        %v1587 = vunpack.c.l.b16 %v1292
        %v1588 = vunpack.c.l.b16 %v1293
        %v1589 = vunpack.c.l.b16 %v1294
        %v1590 = vunpack.c.l.b16 %v1295
        %v1591 = vunpack.c.l.b16 %v1296
        %v1592 = vunpack.c.l.b16 %v1297
        %v1593 = vunpack.c.l.b16 %v1298
        %v1594 = vunpack.c.l.b16 %v1299
        %v1595 = vunpack.c.l.b16 %v1300
        %v1596 = vunpack.c.l.b16 %v1301
        %v1597 = vunpack.c.l.b16 %v1302
        %v1598 = vunpack.c.l.b16 %v1303
        %v1599 = vunpack.c.l.b16 %v1304
        %v1600 = vunpack.c.l.b16 %v1305
        %v1601 = vunpack.c.l.b16 %v1306
        %v1602 = vunpack.c.l.b16 %v1307
        %v1603 = vunpack.c.l.b16 %v1308
        %v1604 = vunpack.c.l.b16 %v1309
        %v1605 = vunpack.c.l.b16 %v1310
        %v1606 = vunpack.c.l.b16 %v1311
        %v1607 = vunpack.c.l.b16 %v1312
        %v1608 = vunpack.c.l.b16 %v1313
        %v1609 = vunpack.c.l.b16 %v1314
        %v1610 = vunpack.c.l.b16 %v1315
        %v1611 = vunpack.c.l.b16 %v1316
        %v1612 = vunpack.c.l.b16 %v1317
        %v1613 = vunpack.c.l.b16 %v1318
        %v1614 = vunpack.c.l.b16 %v1319
        %v1615 = vunpack.c.l.b16 %v1320
        %v1616 = vunpack.c.l.b16 %v1321
        %v1617 = vunpack.c.l.b16 %v1322
        %v1618 = vunpack.c.l.b16 %v1323
        %v1619 = vunpack.c.l.b16 %v1324
        %v1620 = vunpack.c.l.b16 %v1325
        %v1621 = vunpack.c.l.b16 %v1326
        %v1622 = vunpack.c.l.b16 %v1327
        %v1623 = vunpack.c.l.b16 %v1328
        %v1624 = vunpack.c.l.b16 %v1329
        %v1625 = vunpack.c.l.b16 %v1330
        %v1626 = vunpack.c.l.b16 %v1331
        %v1627 = vunpack.c.l.b16 %v1332
        %v1628 = vunpack.c.l.b16 %v1333
        %v1629 = vunpack.c.l.b16 %v1334
        %v1630 = vunpack.c.l.b16 %v1335
        %v1631 = vunpack.c.l.b16 %v1336
        %v1632 = vunpack.c.l.b16 %v1337
        %v1633 = vunpack.c.l.b16 %v1338
        %v1634 = vunpack.c.l.b16 %v1339
        %v1635 = vunpack.c.l.b16 %v1340
        %v1636 = vunpack.c.l.b16 %v1341
        %v1637 = vunpack.c.l.b16 %v1342
        %v1638 = vunpack.c.l.b16 %v1343
        %v1639 = vunpack.c.l.b16 %v1344
        %v1640 = vunpack.c.l.b16 %v1345
        %v1641 = vunpack.c.l.b16 %v1346
        %v1642 = vunpack.c.l.b16 %v1347
        %v1643 = vunpack.c.l.b16 %v1348
        %v1644 = vunpack.c.l.b16 %v1349
        %v1645 = vunpack.c.l.b16 %v1350
        %v1646 = vunpack.c.l.b16 %v1351
        %v1647 = vunpack.c.l.b16 %v1352
        %v1648 = vunpack.c.l.b16 %v1353
        %v1649 = vunpack.c.l.b16 %v1354
        %v1650 = vunpack.c.l.b16 %v1355
        %v1651 = vunpack.c.l.b16 %v1356
        %v1652 = vunpack.c.l.b16 %v1357
        %v1653 = vunpack.c.l.b16 %v1358
        %v1654 = vunpack.c.l.b16 %v1359
        %v1655 = vunpack.c.l.b16 %v1360
        %v1656 = vunpack.c.l.b16 %v1361
        %v1657 = vunpack.c.l.b16 %v1362
        %v1658 = vunpack.c.l.b16 %v1363
        %v1659 = vunpack.c.l.b16 %v1364
        %v1660 = vunpack.c.l.b16 %v1365
        %v1661 = vunpack.c.l.b16 %v1366
        %v1662 = vunpack.c.l.b16 %v1367
        %v1663 = vunpack.c.l.b16 %v1368
        %v1664 = vunpack.c.l.b16 %v1369
        %v1665 = vunpack.c.l.b16 %v1370
        %v1666 = vunpack.c.l.b16 %v1371
        %v1667 = vunpack.c.l.b16 %v1372
        %v1668 = vunpack.c.l.b16 %v1373
        %v1669 = vunpack.c.l.b16 %v1374
        %v1670 = vunpack.c.l.b16 %v1375
        %v1671 = vunpack.c.l.b16 %v1376
        %v1672 = vunpack.c.l.b16 %v1377
        %v1673 = vunpack.c.l.b16 %v1378
        %v1674 = vunpack.c.l.b16 %v1379
        %v1675 = vunpack.c.l.b16 %v1380
        %v1676 = vunpack.c.l.b16 %v1381
        %v1677 = vunpack.c.l.b16 %v1382
        %v1678 = vunpack.c.l.b16 %v1383
        %v1679 = vunpack.c.l.b16 %v1384
        %v1680 = vunpack.c.l.b16 %v1385
        %v1681 = vunpack.c.l.b16 %v1386
        %v1682 = vunpack.c.l.b16 %v1387
        %v1683 = vunpack.c.l.b16 %v1388
        %v1684 = vunpack.c.l.b16 %v1389
        %v1685 = vunpack.c.l.b16 %v1390
        %v1686 = vunpack.c.l.b16 %v1391
        %v1687 = vunpack.c.l.b16 %v1392
        %v1688 = vunpack.c.l.b16 %v1393
        %v1689 = vunpack.c.l.b16 %v1394
        %v1690 = vunpack.c.l.b16 %v1395
        %v1691 = vunpack.c.l.b16 %v1396
        %v1692 = vunpack.c.l.b16 %v1397
        %v1693 = vunpack.c.l.b16 %v1398
        %v1694 = vunpack.c.l.b16 %v1399
        %v1695 = vunpack.c.l.b16 %v1400
        %v1696 = vunpack.c.l.b16 %v1401
        %v1697 = vunpack.c.l.b16 %v1402
        %v1698 = vunpack.c.l.b16 %v1403
        %v1699 = vunpack.c.l.b16 %v1404
        %v1700 = vunpack.c.l.b16 %v1405
        %v1701 = vunpack.c.l.b16 %v1406
        %v1702 = vunpack.c.l.b16 %v1407
        %v1703 = vunpack.c.l.b16 %v1408
        %v1704 = vunpack.c.l.b16 %v1409
        %v1705 = vunpack.c.l.b16 %v1410
        %v1706 = vunpack.c.l.b16 %v1411
        %v1707 = vunpack.c.l.b16 %v1412
        %v1708 = vunpack.c.l.b16 %v1413
        %v1709 = vunpack.c.l.b16 %v1414
        %v1710 = vunpack.c.l.b16 %v1415
        %v1711 = vunpack.c.l.b16 %v1416
        %v1712 = vunpack.c.l.b16 %v1417
        %v1713 = vunpack.c.l.b16 %v1418
        %v1714 = vunpack.c.l.b16 %v1419
        %v1715 = vunpack.c.l.b16 %v1420
        %v1716 = vunpack.c.l.b16 %v1421
        %v1717 = vunpack.c.l.b16 %v1422
        %v1718 = vunpack.c.l.b16 %v1423
        %v1719 = vunpack.c.l.b16 %v1424
        %v1720 = vunpack.c.l.b16 %v1425
        %v1721 = vunpack.c.l.b16 %v1426
        %v1722 = vpack.c.b16 %v1579, %v1578
        %v1723 = vpack.c.b16 %v1581, %v1580
        %v1724 = vpack.c.b16 %v1583, %v1582
        %v1725 = vpack.c.b16 %v1585, %v1584
        %v1726 = vpack.c.b16 %v1587, %v1586
        %v1727 = vpack.c.b16 %v1589, %v1588
        %v1728 = vpack.c.b16 %v1591, %v1590
        %v1729 = vpack.c.b16 %v1593, %v1592
        %v1730 = vpack.c.b16 %v1595, %v1594
        %v1731 = vpack.c.b16 %v1597, %v1596
        %v1732 = vpack.c.b16 %v1599, %v1598
        %v1733 = vpack.c.b16 %v1601, %v1600
        %v1734 = vpack.c.b16 %v1603, %v1602
        %v1735 = vpack.c.b16 %v1605, %v1604
        %v1736 = vpack.c.b16 %v1607, %v1606
        %v1737 = vpack.c.b16 %v1609, %v1608
        %v1738 = vpack.c.b16 %v1611, %v1610
        %v1739 = vpack.c.b16 %v1613, %v1612
        %v1740 = vpack.c.b16 %v1615, %v1614
        %v1741 = vpack.c.b16 %v1617, %v1616
        %v1742 = vpack.c.b16 %v1619, %v1618
        %v1743 = vpack.c.b16 %v1621, %v1620
        %v1744 = vpack.c.b16 %v1623, %v1622
        %v1745 = vpack.c.b16 %v1625, %v1624
        %v1746 = vpack.c.b16 %v1627, %v1626
        %v1747 = vpack.c.b16 %v1629, %v1628
        %v1748 = vpack.c.b16 %v1631, %v1630
        %v1749 = vpack.c.b16 %v1633, %v1632
        %v1750 = vpack.c.b16 %v1635, %v1634
        %v1751 = vpack.c.b16 %v1637, %v1636
        %v1752 = vpack.c.b16 %v1639, %v1638
        %v1753 = vpack.c.b16 %v1641, %v1640
        %v1754 = vpack.c.b16 %v1643, %v1642
        %v1755 = vpack.c.b16 %v1645, %v1644
        %v1756 = vpack.c.b16 %v1647, %v1646
        %v1757 = vpack.c.b16 %v1649, %v1648
        %v1758 = vpack.c.b16 %v1651, %v1650
        %v1759 = vpack.c.b16 %v1653, %v1652
        %v1760 = vpack.c.b16 %v1655, %v1654
        %v1761 = vpack.c.b16 %v1657, %v1656
        %v1762 = vpack.c.b16 %v1659, %v1658
        %v1763 = vpack.c.b16 %v1661, %v1660
        %v1764 = vpack.c.b16 %v1663, %v1662
        %v1765 = vpack.c.b16 %v1665, %v1664
        %v1766 = vpack.c.b16 %v1667, %v1666
        %v1767 = vpack.c.b16 %v1669, %v1668
        %v1768 = vpack.c.b16 %v1671, %v1670
        %v1769 = vpack.c.b16 %v1673, %v1672
        %v1770 = vpack.c.b16 %v1675, %v1674
        %v1771 = vpack.c.b16 %v1677, %v1676
        %v1772 = vpack.c.b16 %v1679, %v1678
        %v1773 = vpack.c.b16 %v1681, %v1680
        %v1774 = vpack.c.b16 %v1683, %v1682
        %v1775 = vpack.c.b16 %v1685, %v1684
        %v1776 = vpack.c.b16 %v1687, %v1686
        %v1777 = vpack.c.b16 %v1689, %v1688
        %v1778 = vpack.c.b16 %v1691, %v1690
        %v1779 = vpack.c.b16 %v1693, %v1692
        %v1780 = vpack.c.b16 %v1695, %v1694
        %v1781 = vpack.c.b16 %v1697, %v1696
        %v1782 = vpack.c.b16 %v1699, %v1698
        %v1783 = vpack.c.b16 %v1701, %v1700
        %v1784 = vpack.c.b16 %v1703, %v1702
        %v1785 = vpack.c.b16 %v1705, %v1704
        %v1786 = vpack.c.b16 %v1707, %v1706
        %v1787 = vpack.c.b16 %v1709, %v1708
        %v1788 = vpack.c.b16 %v1711, %v1710
        %v1789 = vpack.c.b16 %v1713, %v1712
        %v1790 = vpack.c.b16 %v1715, %v1714
        %v1791 = vpack.c.b16 %v1717, %v1716
        %v1792 = vpack.c.b16 %v1719, %v1718
        %v1793 = vpack.c.b16 %v1721, %v1720
        %1866 = vmatprep.subr.bf16.mxu0 0
        %1867 = vmatpush1.bf16.msra.mxu0 %v1722
        %1868 = vmatprep.subr.bf16.mxu0 0
        %1869 = vmatpush1.bf16.msra.mxu0 %v1723
        %1870 = vmatprep.subr.bf16.mxu0 0
        %1871 = vmatpush1.bf16.msra.mxu0 %v1724
        %1872 = vmatprep.subr.bf16.mxu0 0
        %1873 = vmatpush1.bf16.msra.mxu0 %v1725
        %1874 = vmatprep.subr.bf16.mxu0 0
        %1875 = vmatpush1.bf16.msra.mxu0 %v1726
        %1876 = vmatprep.subr.bf16.mxu0 0
        %1877 = vmatpush1.bf16.msra.mxu0 %v1727
        %1878 = vmatprep.subr.bf16.mxu0 0
        %1879 = vmatpush1.bf16.msra.mxu0 %v1728
        %1880 = vmatprep.subr.bf16.mxu0 0
        %1881 = vmatpush1.bf16.msra.mxu0 %v1729
        %1882 = vmatprep.subr.bf16.mxu0 0
        %1883 = vmatpush1.bf16.msra.mxu0 %v1730
        %1884 = vmatprep.subr.bf16.mxu0 0
        %1885 = vmatpush1.bf16.msra.mxu0 %v1731
        %1886 = vmatprep.subr.bf16.mxu0 0
        %1887 = vmatpush1.bf16.msra.mxu0 %v1732
        %1888 = vmatprep.subr.bf16.mxu0 0
        %1889 = vmatpush1.bf16.msra.mxu0 %v1733
        %1890 = vmatprep.subr.bf16.mxu0 0
        %1891 = vmatpush1.bf16.msra.mxu0 %v1734
        %1892 = vmatprep.subr.bf16.mxu0 0
        %1893 = vmatpush1.bf16.msra.mxu0 %v1735
        %1894 = vmatprep.subr.bf16.mxu0 0
        %1895 = vmatpush1.bf16.msra.mxu0 %v1736
        %1896 = vmatprep.subr.bf16.mxu0 0
        %1897 = vmatpush1.bf16.msra.mxu0 %v1737
        %1898 = vmatprep.mubr.bf16.mxu0 %v1161
        %1899 = vmatmul.mubr.bf16.gmra.mrb[0].mxu0 %v1097
        %v1900 = vpop.f32.mrb[0].mxu0
        %v1901 = vadd.f32 %v1432, %v1900
        %v1902 = vpop.f32.mrb[0].mxu0
        %v1903 = vpop.f32.mrb[0].mxu0
        %v1904 = vadd.f32 %v1432, %v1903
        %v1905 = vpop.f32.mrb[0].mxu0
        %1906 = vmatprep.mubr.bf16.mxu0 %v1162
        %1907 = vmatmul.mubr.bf16.gmra.mrb[0].mxu0 %v1098
        %v1908 = vpop.f32.mrb[0].mxu0
        %v1909 = vadd.f32 %v1432, %v1908
        %v1910 = vpop.f32.mrb[0].mxu0
        %v1911 = vpop.f32.mrb[0].mxu0
        %v1912 = vadd.f32 %v1432, %v1911
        %v1913 = vpop.f32.mrb[0].mxu0
        %1914 = vmatprep.mubr.bf16.mxu0 %v1163
        %1915 = vmatmul.mubr.bf16.gmra.mrb[0].mxu0 %v1099
        %v1916 = vpop.f32.mrb[0].mxu0
        %v1917 = vadd.f32 %v1432, %v1916
        %v1918 = vpop.f32.mrb[0].mxu0
        %v1919 = vpop.f32.mrb[0].mxu0
        %v1920 = vadd.f32 %v1432, %v1919
        %v1921 = vpop.f32.mrb[0].mxu0
        %1922 = vmatprep.mubr.bf16.mxu0 %v1164
        %1923 = vmatmul.mubr.bf16.gmra.mrb[0].mxu0 %v1100
        %v1924 = vpop.f32.mrb[0].mxu0
        %v1925 = vadd.f32 %v1432, %v1924
        %v1926 = vpop.f32.mrb[0].mxu0
        %v1927 = vpop.f32.mrb[0].mxu0
        %v1928 = vadd.f32 %v1432, %v1927
        %v1929 = vpop.f32.mrb[0].mxu0
        %1930 = vmatprep.mubr.bf16.mxu0 %v1165
        %1931 = vmatmul.mubr.bf16.gmra.mrb[0].mxu0 %v1101
        %v1932 = vpop.f32.mrb[0].mxu0
        %v1933 = vadd.f32 %v1432, %v1932
        %v1934 = vpop.f32.mrb[0].mxu0
        %v1935 = vpop.f32.mrb[0].mxu0
        %v1936 = vadd.f32 %v1432, %v1935
        %v1937 = vpop.f32.mrb[0].mxu0
        %1938 = vmatprep.mubr.bf16.mxu0 %v1166
        %1939 = vmatmul.mubr.bf16.gmra.mrb[0].mxu0 %v1102
        %v1940 = vpop.f32.mrb[0].mxu0
        %v1941 = vadd.f32 %v1432, %v1940
        %v1942 = vpop.f32.mrb[0].mxu0
        %v1943 = vpop.f32.mrb[0].mxu0
        %v1944 = vadd.f32 %v1432, %v1943
        %v1945 = vpop.f32.mrb[0].mxu0
        %1946 = vmatprep.mubr.bf16.mxu0 %v1167
        %1947 = vmatmul.mubr.bf16.gmra.mrb[0].mxu0 %v1103
        %v1948 = vpop.f32.mrb[0].mxu0
        %v1949 = vadd.f32 %v1432, %v1948
        %v1950 = vpop.f32.mrb[0].mxu0
        %v1951 = vpop.f32.mrb[0].mxu0
        %v1952 = vadd.f32 %v1432, %v1951
        %v1953 = vpop.f32.mrb[0].mxu0
        %1954 = vmatprep.mubr.bf16.mxu0 %v1168
        %1955 = vmatmul.mubr.bf16.gmra.mrb[0].mxu0 %v1104
        %v1956 = vpop.f32.mrb[0].mxu0
        %v1957 = vadd.f32 %v1432, %v1956
        %v1958 = vpop.f32.mrb[0].mxu0
        %v1959 = vpop.f32.mrb[0].mxu0
        %v1960 = vadd.f32 %v1432, %v1959
        %v1961 = vpop.f32.mrb[0].mxu0
        %1962 = vmatprep.mubr.bf16.mxu0 %v1169
        %1963 = vmatmul.mubr.bf16.gmra.mrb[0].mxu0 %v1105
        %v1964 = vpop.f32.mrb[0].mxu0
        %v1965 = vadd.f32 %v1432, %v1964
        %v1966 = vpop.f32.mrb[0].mxu0
        %v1967 = vpop.f32.mrb[0].mxu0
        %v1968 = vadd.f32 %v1432, %v1967
        %v1969 = vpop.f32.mrb[0].mxu0
        %1970 = vmatprep.mubr.bf16.mxu0 %v1170
        %1971 = vmatmul.mubr.bf16.gmra.mrb[0].mxu0 %v1106
        %v1972 = vpop.f32.mrb[0].mxu0
        %v1973 = vadd.f32 %v1432, %v1972
        %v1974 = vpop.f32.mrb[0].mxu0
        %v1975 = vpop.f32.mrb[0].mxu0
        %v1976 = vadd.f32 %v1432, %v1975
        %v1977 = vpop.f32.mrb[0].mxu0
        %1978 = vmatprep.mubr.bf16.mxu0 %v1171
        %1979 = vmatmul.mubr.bf16.gmra.mrb[0].mxu0 %v1107
        %v1980 = vpop.f32.mrb[0].mxu0
        %v1981 = vadd.f32 %v1432, %v1980
        %v1982 = vpop.f32.mrb[0].mxu0
        %v1983 = vpop.f32.mrb[0].mxu0
        %v1984 = vadd.f32 %v1432, %v1983
        %v1985 = vpop.f32.mrb[0].mxu0
        %1986 = vmatprep.mubr.bf16.mxu0 %v1172
        %1987 = vmatmul.mubr.bf16.gmra.mrb[0].mxu0 %v1108
        %v1988 = vpop.f32.mrb[0].mxu0
        %v1989 = vadd.f32 %v1432, %v1988
        %v1990 = vpop.f32.mrb[0].mxu0
        %v1991 = vpop.f32.mrb[0].mxu0
        %v1992 = vadd.f32 %v1432, %v1991
        %v1993 = vpop.f32.mrb[0].mxu0
        %1994 = vmatprep.mubr.bf16.mxu0 %v1173
        %1995 = vmatmul.mubr.bf16.gmra.mrb[0].mxu0 %v1109
        %v1996 = vpop.f32.mrb[0].mxu0
        %v1997 = vadd.f32 %v1432, %v1996
        %v1998 = vpop.f32.mrb[0].mxu0
        %v1999 = vpop.f32.mrb[0].mxu0
        %v2000 = vadd.f32 %v1432, %v1999
        %v2001 = vpop.f32.mrb[0].mxu0
        %2002 = vmatprep.mubr.bf16.mxu0 %v1174
        %2003 = vmatmul.mubr.bf16.gmra.mrb[0].mxu0 %v1110
        %v2004 = vpop.f32.mrb[0].mxu0
        %v2005 = vadd.f32 %v1432, %v2004
        %v2006 = vpop.f32.mrb[0].mxu0
        %v2007 = vpop.f32.mrb[0].mxu0
        %v2008 = vadd.f32 %v1432, %v2007
        %v2009 = vpop.f32.mrb[0].mxu0
        %2010 = vmatprep.mubr.bf16.mxu0 %v1175
        %2011 = vmatmul.mubr.bf16.gmra.mrb[0].mxu0 %v1111
        %v2012 = vpop.f32.mrb[0].mxu0
        %v2013 = vadd.f32 %v1432, %v2012
        %v2014 = vpop.f32.mrb[0].mxu0
        %v2015 = vpop.f32.mrb[0].mxu0
        %v2016 = vadd.f32 %v1432, %v2015
        %v2017 = vpop.f32.mrb[0].mxu0
        %2018 = vmatprep.mubr.bf16.mxu0 %v1176
        %2019 = vmatmul.mubr.bf16.gmra.mrb[0].mxu0 %v1112
        %v2020 = vpop.f32.mrb[0].mxu0
        %v2021 = vadd.f32 %v1432, %v2020
        %v2022 = vpop.f32.mrb[0].mxu0
        %v2023 = vpop.f32.mrb[0].mxu0
        %v2024 = vadd.f32 %v1432, %v2023
        %v2025 = vpop.f32.mrb[0].mxu0
        %2026 = vdwg.mxu0
        %2027 = vmatprep.subr.bf16.mxu0 0
        %2028 = vmatpush1.bf16.msra.mxu0 %v1738
        %2029 = vmatprep.subr.bf16.mxu0 0
        %2030 = vmatpush1.bf16.msra.mxu0 %v1739
        %2031 = vmatprep.subr.bf16.mxu0 0
        %2032 = vmatpush1.bf16.msra.mxu0 %v1740
        %2033 = vmatprep.subr.bf16.mxu0 0
        %2034 = vmatpush1.bf16.msra.mxu0 %v1741
        %2035 = vmatprep.subr.bf16.mxu0 0
        %2036 = vmatpush1.bf16.msra.mxu0 %v1742
        %2037 = vmatprep.subr.bf16.mxu0 0
        %2038 = vmatpush1.bf16.msra.mxu0 %v1743
        %2039 = vmatprep.subr.bf16.mxu0 0
        %2040 = vmatpush1.bf16.msra.mxu0 %v1744
        %2041 = vmatprep.subr.bf16.mxu0 0
        %2042 = vmatpush1.bf16.msra.mxu0 %v1745
        %2043 = vmatprep.subr.bf16.mxu0 0
        %2044 = vmatpush1.bf16.msra.mxu0 %v1746
        %2045 = vmatprep.subr.bf16.mxu0 0
        %2046 = vmatpush1.bf16.msra.mxu0 %v1747
        %2047 = vmatprep.subr.bf16.mxu0 0
        %2048 = vmatpush1.bf16.msra.mxu0 %v1748
        %2049 = vmatprep.subr.bf16.mxu0 0
        %2050 = vmatpush1.bf16.msra.mxu0 %v1749
        %2051 = vmatprep.subr.bf16.mxu0 0
        %2052 = vmatpush1.bf16.msra.mxu0 %v1750
        %2053 = vmatprep.subr.bf16.mxu0 0
        %2054 = vmatpush1.bf16.msra.mxu0 %v1751
        %2055 = vmatprep.subr.bf16.mxu0 0
        %2056 = vmatpush1.bf16.msra.mxu0 %v1752
        %2057 = vmatprep.subr.bf16.mxu0 0
        %2058 = vmatpush1.bf16.msra.mxu0 %v1753
        %2059 = vmatprep.mubr.bf16.mxu0 %v1098
        %2060 = vmatmul.mubr.bf16.gmra.mrb[0].mxu0 %v1225
        %v2061 = vpop.f32.mrb[0].mxu0
        %v2062 = vadd.f32 %v1901, %v2061
        %v2063 = vpop.f32.mrb[0].mxu0
        %v2064 = vpop.f32.mrb[0].mxu0
        %v2065 = vadd.f32 %v1904, %v2064
        %v2066 = vpop.f32.mrb[0].mxu0
        %2067 = vmatprep.mubr.bf16.mxu0 %v1099
        %2068 = vmatmul.mubr.bf16.gmra.mrb[0].mxu0 %v1226
        %v2069 = vpop.f32.mrb[0].mxu0
        %v2070 = vadd.f32 %v1909, %v2069
        %v2071 = vpop.f32.mrb[0].mxu0
        %v2072 = vpop.f32.mrb[0].mxu0
        %v2073 = vadd.f32 %v1912, %v2072
        %v2074 = vpop.f32.mrb[0].mxu0
        %2075 = vmatprep.mubr.bf16.mxu0 %v1100
        %2076 = vmatmul.mubr.bf16.gmra.mrb[0].mxu0 %v1227
        %v2077 = vpop.f32.mrb[0].mxu0
        %v2078 = vadd.f32 %v1917, %v2077
        %v2079 = vpop.f32.mrb[0].mxu0
        %v2080 = vpop.f32.mrb[0].mxu0
        %v2081 = vadd.f32 %v1920, %v2080
        %v2082 = vpop.f32.mrb[0].mxu0
        %2083 = vmatprep.mubr.bf16.mxu0 %v1101
        %2084 = vmatmul.mubr.bf16.gmra.mrb[0].mxu0 %v1228
        %v2085 = vpop.f32.mrb[0].mxu0
        %v2086 = vadd.f32 %v1925, %v2085
        %v2087 = vpop.f32.mrb[0].mxu0
        %v2088 = vpop.f32.mrb[0].mxu0
        %v2089 = vadd.f32 %v1928, %v2088
        %v2090 = vpop.f32.mrb[0].mxu0
        %2091 = vmatprep.mubr.bf16.mxu0 %v1102
        %2092 = vmatmul.mubr.bf16.gmra.mrb[0].mxu0 %v1229
        %v2093 = vpop.f32.mrb[0].mxu0
        %v2094 = vadd.f32 %v1933, %v2093
        %v2095 = vpop.f32.mrb[0].mxu0
        %v2096 = vpop.f32.mrb[0].mxu0
        %v2097 = vadd.f32 %v1936, %v2096
        %v2098 = vpop.f32.mrb[0].mxu0
        %2099 = vmatprep.mubr.bf16.mxu0 %v1103
        %2100 = vmatmul.mubr.bf16.gmra.mrb[0].mxu0 %v1230
        %v2101 = vpop.f32.mrb[0].mxu0
        %v2102 = vadd.f32 %v1941, %v2101
        %v2103 = vpop.f32.mrb[0].mxu0
        %v2104 = vpop.f32.mrb[0].mxu0
        %v2105 = vadd.f32 %v1944, %v2104
        %v2106 = vpop.f32.mrb[0].mxu0
        %2107 = vmatprep.mubr.bf16.mxu0 %v1104
        %2108 = vmatmul.mubr.bf16.gmra.mrb[0].mxu0 %v1231
        %v2109 = vpop.f32.mrb[0].mxu0
        %v2110 = vadd.f32 %v1949, %v2109
        %v2111 = vpop.f32.mrb[0].mxu0
        %v2112 = vpop.f32.mrb[0].mxu0
        %v2113 = vadd.f32 %v1952, %v2112
        %v2114 = vpop.f32.mrb[0].mxu0
        %2115 = vmatprep.mubr.bf16.mxu0 %v1105
        %2116 = vmatmul.mubr.bf16.gmra.mrb[0].mxu0 %v1232
        %v2117 = vpop.f32.mrb[0].mxu0
        %v2118 = vadd.f32 %v1957, %v2117
        %v2119 = vpop.f32.mrb[0].mxu0
        %v2120 = vpop.f32.mrb[0].mxu0
        %v2121 = vadd.f32 %v1960, %v2120
        %v2122 = vpop.f32.mrb[0].mxu0
        %2123 = vmatprep.mubr.bf16.mxu0 %v1106
        %2124 = vmatmul.mubr.bf16.gmra.mrb[0].mxu0 %v1233
        %v2125 = vpop.f32.mrb[0].mxu0
        %v2126 = vadd.f32 %v1965, %v2125
        %v2127 = vpop.f32.mrb[0].mxu0
        %v2128 = vpop.f32.mrb[0].mxu0
        %v2129 = vadd.f32 %v1968, %v2128
        %v2130 = vpop.f32.mrb[0].mxu0
        %2131 = vmatprep.mubr.bf16.mxu0 %v1107
        %2132 = vmatmul.mubr.bf16.gmra.mrb[0].mxu0 %v1234
        %v2133 = vpop.f32.mrb[0].mxu0
        %v2134 = vadd.f32 %v1973, %v2133
        %v2135 = vpop.f32.mrb[0].mxu0
        %v2136 = vpop.f32.mrb[0].mxu0
        %v2137 = vadd.f32 %v1976, %v2136
        %v2138 = vpop.f32.mrb[0].mxu0
        %2139 = vmatprep.mubr.bf16.mxu0 %v1108
        %2140 = vmatmul.mubr.bf16.gmra.mrb[0].mxu0 %v1235
        %v2141 = vpop.f32.mrb[0].mxu0
        %v2142 = vadd.f32 %v1981, %v2141
        %v2143 = vpop.f32.mrb[0].mxu0
        %v2144 = vpop.f32.mrb[0].mxu0
        %v2145 = vadd.f32 %v1984, %v2144
        %v2146 = vpop.f32.mrb[0].mxu0
        %2147 = vmatprep.mubr.bf16.mxu0 %v1109
        %2148 = vmatmul.mubr.bf16.gmra.mrb[0].mxu0 %v1236
        %v2149 = vpop.f32.mrb[0].mxu0
        %v2150 = vadd.f32 %v1989, %v2149
        %v2151 = vpop.f32.mrb[0].mxu0
        %v2152 = vpop.f32.mrb[0].mxu0
        %v2153 = vadd.f32 %v1992, %v2152
        %v2154 = vpop.f32.mrb[0].mxu0
        %2155 = vmatprep.mubr.bf16.mxu0 %v1110
        %2156 = vmatmul.mubr.bf16.gmra.mrb[0].mxu0 %v1237
        %v2157 = vpop.f32.mrb[0].mxu0
        %v2158 = vadd.f32 %v1997, %v2157
        %v2159 = vpop.f32.mrb[0].mxu0
        %v2160 = vpop.f32.mrb[0].mxu0
        %v2161 = vadd.f32 %v2000, %v2160
        %v2162 = vpop.f32.mrb[0].mxu0
        %2163 = vmatprep.mubr.bf16.mxu0 %v1111
        %2164 = vmatmul.mubr.bf16.gmra.mrb[0].mxu0 %v1238
        %v2165 = vpop.f32.mrb[0].mxu0
        %v2166 = vadd.f32 %v2005, %v2165
        %v2167 = vpop.f32.mrb[0].mxu0
        %v2168 = vpop.f32.mrb[0].mxu0
        %v2169 = vadd.f32 %v2008, %v2168
        %v2170 = vpop.f32.mrb[0].mxu0
        %2171 = vmatprep.mubr.bf16.mxu0 %v1112
        %2172 = vmatmul.mubr.bf16.gmra.mrb[0].mxu0 %v1239
        %v2173 = vpop.f32.mrb[0].mxu0
        %v2174 = vadd.f32 %v2013, %v2173
        %v2175 = vpop.f32.mrb[0].mxu0
        %v2176 = vpop.f32.mrb[0].mxu0
        %v2177 = vadd.f32 %v2016, %v2176
        %v2178 = vpop.f32.mrb[0].mxu0
        %2179 = vmatprep.mubr.bf16.mxu0 %v1260
        %2180 = vmatmul.mubr.bf16.gmra.mrb[0].mxu0 %v1240
        %v2181 = vpop.f32.mrb[0].mxu0
        %v2182 = vadd.f32 %v2021, %v2181
        %v2183 = vpop.f32.mrb[0].mxu0
        %v2184 = vpop.f32.mrb[0].mxu0
        %v2185 = vadd.f32 %v2024, %v2184
        %v2186 = vpop.f32.mrb[0].mxu0
        %2187 = vdwg.mxu0
        %2188 = vmatprep.subr.bf16.mxu0 0
        %2189 = vmatpush1.bf16.msra.mxu0 %v1754
        %2190 = vmatprep.subr.bf16.mxu0 0
        %2191 = vmatpush1.bf16.msra.mxu0 %v1755
        %2192 = vmatprep.subr.bf16.mxu0 0
        %2193 = vmatpush1.bf16.msra.mxu0 %v1756
        %2194 = vmatprep.subr.bf16.mxu0 0
        %2195 = vmatpush1.bf16.msra.mxu0 %v1757
        %2196 = vmatprep.subr.bf16.mxu0 0
        %2197 = vmatpush1.bf16.msra.mxu0 %v1758
        %2198 = vmatprep.subr.bf16.mxu0 0
        %2199 = vmatpush1.bf16.msra.mxu0 %v1759
        %2200 = vmatprep.subr.bf16.mxu0 0
        %2201 = vmatpush1.bf16.msra.mxu0 %v1760
        %2202 = vmatprep.subr.bf16.mxu0 0
        %2203 = vmatpush1.bf16.msra.mxu0 %v1761
        %2204 = vmatprep.subr.bf16.mxu0 0
        %2205 = vmatpush1.bf16.msra.mxu0 %v1762
        %2206 = vmatprep.subr.bf16.mxu0 0
        %2207 = vmatpush1.bf16.msra.mxu0 %v1763
        %2208 = vmatprep.subr.bf16.mxu0 0
        %2209 = vmatpush1.bf16.msra.mxu0 %v1764
        %2210 = vmatprep.subr.bf16.mxu0 0
        %2211 = vmatpush1.bf16.msra.mxu0 %v1765
        %2212 = vmatprep.subr.bf16.mxu0 0
        %2213 = vmatpush1.bf16.msra.mxu0 %v1766
        %2214 = vmatprep.subr.bf16.mxu0 0
        %2215 = vmatpush1.bf16.msra.mxu0 %v1767
        %2216 = vmatprep.subr.bf16.mxu0 0
        %2217 = vmatpush1.bf16.msra.mxu0 %v1768
        %2218 = vmatprep.subr.bf16.mxu0 0
        %2219 = vmatpush1.bf16.msra.mxu0 %v1769
        %2220 = vmatprep.mubr.bf16.mxu0 %v1226
        %2221 = vmatmul.mubr.bf16.gmra.mrb[0].mxu0 %v1162
        %v2222 = vpop.f32.mrb[0].mxu0
        %v2223 = vadd.f32 %v2062, %v2222
        %v2224 = vpop.f32.mrb[0].mxu0
        %v2225 = vpop.f32.mrb[0].mxu0
        %v2226 = vadd.f32 %v2065, %v2225
        %v2227 = vpop.f32.mrb[0].mxu0
        %2228 = vmatprep.mubr.bf16.mxu0 %v1227
        %2229 = vmatmul.mubr.bf16.gmra.mrb[0].mxu0 %v1163
        %v2230 = vpop.f32.mrb[0].mxu0
        %v2231 = vadd.f32 %v2070, %v2230
        %v2232 = vpop.f32.mrb[0].mxu0
        %v2233 = vpop.f32.mrb[0].mxu0
        %v2234 = vadd.f32 %v2073, %v2233
        %v2235 = vpop.f32.mrb[0].mxu0
        %2236 = vmatprep.mubr.bf16.mxu0 %v1228
        %2237 = vmatmul.mubr.bf16.gmra.mrb[0].mxu0 %v1164
        %v2238 = vpop.f32.mrb[0].mxu0
        %v2239 = vadd.f32 %v2078, %v2238
        %v2240 = vpop.f32.mrb[0].mxu0
        %v2241 = vpop.f32.mrb[0].mxu0
        %v2242 = vadd.f32 %v2081, %v2241
        %v2243 = vpop.f32.mrb[0].mxu0
        %2244 = vmatprep.mubr.bf16.mxu0 %v1229
        %2245 = vmatmul.mubr.bf16.gmra.mrb[0].mxu0 %v1165
        %v2246 = vpop.f32.mrb[0].mxu0
        %v2247 = vadd.f32 %v2086, %v2246
        %v2248 = vpop.f32.mrb[0].mxu0
        %v2249 = vpop.f32.mrb[0].mxu0
        %v2250 = vadd.f32 %v2089, %v2249
        %v2251 = vpop.f32.mrb[0].mxu0
        %2252 = vmatprep.mubr.bf16.mxu0 %v1230
        %2253 = vmatmul.mubr.bf16.gmra.mrb[0].mxu0 %v1166
        %v2254 = vpop.f32.mrb[0].mxu0
        %v2255 = vadd.f32 %v2094, %v2254
        %v2256 = vpop.f32.mrb[0].mxu0
        %v2257 = vpop.f32.mrb[0].mxu0
        %v2258 = vadd.f32 %v2097, %v2257
        %v2259 = vpop.f32.mrb[0].mxu0
        %2260 = vmatprep.mubr.bf16.mxu0 %v1231
        %2261 = vmatmul.mubr.bf16.gmra.mrb[0].mxu0 %v1167
        %v2262 = vpop.f32.mrb[0].mxu0
        %v2263 = vadd.f32 %v2102, %v2262
        %v2264 = vpop.f32.mrb[0].mxu0
        %v2265 = vpop.f32.mrb[0].mxu0
        %v2266 = vadd.f32 %v2105, %v2265
        %v2267 = vpop.f32.mrb[0].mxu0
        %2268 = vmatprep.mubr.bf16.mxu0 %v1232
        %2269 = vmatmul.mubr.bf16.gmra.mrb[0].mxu0 %v1168
        %v2270 = vpop.f32.mrb[0].mxu0
        %v2271 = vadd.f32 %v2110, %v2270
        %v2272 = vpop.f32.mrb[0].mxu0
        %v2273 = vpop.f32.mrb[0].mxu0
        %v2274 = vadd.f32 %v2113, %v2273
        %v2275 = vpop.f32.mrb[0].mxu0
        %2276 = vmatprep.mubr.bf16.mxu0 %v1233
        %2277 = vmatmul.mubr.bf16.gmra.mrb[0].mxu0 %v1169
        %v2278 = vpop.f32.mrb[0].mxu0
        %v2279 = vadd.f32 %v2118, %v2278
        %v2280 = vpop.f32.mrb[0].mxu0
        %v2281 = vpop.f32.mrb[0].mxu0
        %v2282 = vadd.f32 %v2121, %v2281
        %v2283 = vpop.f32.mrb[0].mxu0
        %2284 = vmatprep.mubr.bf16.mxu0 %v1234
        %2285 = vmatmul.mubr.bf16.gmra.mrb[0].mxu0 %v1170
        %v2286 = vpop.f32.mrb[0].mxu0
        %v2287 = vadd.f32 %v2126, %v2286
        %v2288 = vpop.f32.mrb[0].mxu0
        %v2289 = vpop.f32.mrb[0].mxu0
        %v2290 = vadd.f32 %v2129, %v2289
        %v2291 = vpop.f32.mrb[0].mxu0
        %2292 = vmatprep.mubr.bf16.mxu0 %v1235
        %2293 = vmatmul.mubr.bf16.gmra.mrb[0].mxu0 %v1171
        %v2294 = vpop.f32.mrb[0].mxu0
        %v2295 = vadd.f32 %v2134, %v2294
        %v2296 = vpop.f32.mrb[0].mxu0
        %v2297 = vpop.f32.mrb[0].mxu0
        %v2298 = vadd.f32 %v2137, %v2297
        %v2299 = vpop.f32.mrb[0].mxu0
        %2300 = vmatprep.mubr.bf16.mxu0 %v1236
        %2301 = vmatmul.mubr.bf16.gmra.mrb[0].mxu0 %v1172
        %v2302 = vpop.f32.mrb[0].mxu0
        %v2303 = vadd.f32 %v2142, %v2302
        %v2304 = vpop.f32.mrb[0].mxu0
        %v2305 = vpop.f32.mrb[0].mxu0
        %v2306 = vadd.f32 %v2145, %v2305
        %v2307 = vpop.f32.mrb[0].mxu0
        %2308 = vmatprep.mubr.bf16.mxu0 %v1237
        %2309 = vmatmul.mubr.bf16.gmra.mrb[0].mxu0 %v1173
        %v2310 = vpop.f32.mrb[0].mxu0
        %v2311 = vadd.f32 %v2150, %v2310
        %v2312 = vpop.f32.mrb[0].mxu0
        %v2313 = vpop.f32.mrb[0].mxu0
        %v2314 = vadd.f32 %v2153, %v2313
        %v2315 = vpop.f32.mrb[0].mxu0
        %2316 = vmatprep.mubr.bf16.mxu0 %v1238
        %2317 = vmatmul.mubr.bf16.gmra.mrb[0].mxu0 %v1174
        %v2318 = vpop.f32.mrb[0].mxu0
        %v2319 = vadd.f32 %v2158, %v2318
        %v2320 = vpop.f32.mrb[0].mxu0
        %v2321 = vpop.f32.mrb[0].mxu0
        %v2322 = vadd.f32 %v2161, %v2321
        %v2323 = vpop.f32.mrb[0].mxu0
        %2324 = vmatprep.mubr.bf16.mxu0 %v1239
        %2325 = vmatmul.mubr.bf16.gmra.mrb[0].mxu0 %v1175
        %v2326 = vpop.f32.mrb[0].mxu0
        %v2327 = vadd.f32 %v2166, %v2326
        %v2328 = vpop.f32.mrb[0].mxu0
        %v2329 = vpop.f32.mrb[0].mxu0
        %v2330 = vadd.f32 %v2169, %v2329
        %v2331 = vpop.f32.mrb[0].mxu0
        %2332 = vmatprep.mubr.bf16.mxu0 %v1240
        %2333 = vmatmul.mubr.bf16.gmra.mrb[0].mxu0 %v1176
        %v2334 = vpop.f32.mrb[0].mxu0
        %v2335 = vadd.f32 %v2174, %v2334
        %v2336 = vpop.f32.mrb[0].mxu0
        %v2337 = vpop.f32.mrb[0].mxu0
        %v2338 = vadd.f32 %v2177, %v2337
        %v2339 = vpop.f32.mrb[0].mxu0
        %2340 = vmatprep.mubr.bf16.mxu0 %v1268
        %2341 = vmatmul.mubr.bf16.gmra.mrb[0].mxu0 %v1264
        %v2342 = vpop.f32.mrb[0].mxu0
        %v2343 = vadd.f32 %v2182, %v2342
        %v2344 = vpop.f32.mrb[0].mxu0
        %v2345 = vpop.f32.mrb[0].mxu0
        %v2346 = vadd.f32 %v2185, %v2345
        %v2347 = vpop.f32.mrb[0].mxu0
        %2348 = vdwg.mxu0
        %2349 = vmatprep.subr.bf16.mxu0 0
        %2350 = vmatpush1.bf16.msra.mxu0 %v1770
        %2351 = vmatprep.subr.bf16.mxu0 0
        %2352 = vmatpush1.bf16.msra.mxu0 %v1771
        %2353 = vmatprep.subr.bf16.mxu0 0
        %2354 = vmatpush1.bf16.msra.mxu0 %v1772
        %2355 = vmatprep.subr.bf16.mxu0 0
        %2356 = vmatpush1.bf16.msra.mxu0 %v1773
        %2357 = vmatprep.subr.bf16.mxu0 0
        %2358 = vmatpush1.bf16.msra.mxu0 %v1774
        %2359 = vmatprep.subr.bf16.mxu0 0
        %2360 = vmatpush1.bf16.msra.mxu0 %v1775
        %2361 = vmatprep.subr.bf16.mxu0 0
        %2362 = vmatpush1.bf16.msra.mxu0 %v1776
        %2363 = vmatprep.subr.bf16.mxu0 0
        %2364 = vmatpush1.bf16.msra.mxu0 %v1777
        %2365 = vmatprep.subr.bf16.mxu0 0
        %2366 = vmatpush1.bf16.msra.mxu0 %v1778
        %2367 = vmatprep.subr.bf16.mxu0 0
        %2368 = vmatpush1.bf16.msra.mxu0 %v1779
        %2369 = vmatprep.subr.bf16.mxu0 0
        %2370 = vmatpush1.bf16.msra.mxu0 %v1780
        %2371 = vmatprep.subr.bf16.mxu0 0
        %2372 = vmatpush1.bf16.msra.mxu0 %v1781
        %2373 = vmatprep.subr.bf16.mxu0 0
        %2374 = vmatpush1.bf16.msra.mxu0 %v1782
        %2375 = vmatprep.subr.bf16.mxu0 0
        %2376 = vmatpush1.bf16.msra.mxu0 %v1783
        %2377 = vmatprep.subr.bf16.mxu0 0
        %2378 = vmatpush1.bf16.msra.mxu0 %v1784
        %2379 = vmatprep.subr.bf16.mxu0 0
        %2380 = vmatpush1.bf16.msra.mxu0 %v1785
        %2381 = vmatprep.mubr.bf16.mxu0 %v1163
        %2382 = vmatmul.mubr.bf16.gmra.mrb[0].mxu0 %v1099
        %v2383 = vpop.f32.mrb[0].mxu0
        %v2384 = vadd.f32 %v2223, %v2383
        %v2385 = vpop.f32.mrb[0].mxu0
        %v2386 = vpop.f32.mrb[0].mxu0
        %v2387 = vadd.f32 %v2226, %v2386
        %v2388 = vpop.f32.mrb[0].mxu0
        %2389 = vmatprep.mubr.bf16.mxu0 %v1164
        %2390 = vmatmul.mubr.bf16.gmra.mrb[0].mxu0 %v1100
        %v2391 = vpop.f32.mrb[0].mxu0
        %v2392 = vadd.f32 %v2231, %v2391
        %v2393 = vpop.f32.mrb[0].mxu0
        %v2394 = vpop.f32.mrb[0].mxu0
        %v2395 = vadd.f32 %v2234, %v2394
        %v2396 = vpop.f32.mrb[0].mxu0
        %2397 = vmatprep.mubr.bf16.mxu0 %v1165
        %2398 = vmatmul.mubr.bf16.gmra.mrb[0].mxu0 %v1101
        %v2399 = vpop.f32.mrb[0].mxu0
        %v2400 = vadd.f32 %v2239, %v2399
        %v2401 = vpop.f32.mrb[0].mxu0
        %v2402 = vpop.f32.mrb[0].mxu0
        %v2403 = vadd.f32 %v2242, %v2402
        %v2404 = vpop.f32.mrb[0].mxu0
        %2405 = vmatprep.mubr.bf16.mxu0 %v1166
        %2406 = vmatmul.mubr.bf16.gmra.mrb[0].mxu0 %v1102
        %v2407 = vpop.f32.mrb[0].mxu0
        %v2408 = vadd.f32 %v2247, %v2407
        %v2409 = vpop.f32.mrb[0].mxu0
        %v2410 = vpop.f32.mrb[0].mxu0
        %v2411 = vadd.f32 %v2250, %v2410
        %v2412 = vpop.f32.mrb[0].mxu0
        %2413 = vmatprep.mubr.bf16.mxu0 %v1167
        %2414 = vmatmul.mubr.bf16.gmra.mrb[0].mxu0 %v1103
        %v2415 = vpop.f32.mrb[0].mxu0
        %v2416 = vadd.f32 %v2255, %v2415
        %v2417 = vpop.f32.mrb[0].mxu0
        %v2418 = vpop.f32.mrb[0].mxu0
        %v2419 = vadd.f32 %v2258, %v2418
        %v2420 = vpop.f32.mrb[0].mxu0
        %2421 = vmatprep.mubr.bf16.mxu0 %v1168
        %2422 = vmatmul.mubr.bf16.gmra.mrb[0].mxu0 %v1104
        %v2423 = vpop.f32.mrb[0].mxu0
        %v2424 = vadd.f32 %v2263, %v2423
        %v2425 = vpop.f32.mrb[0].mxu0
        %v2426 = vpop.f32.mrb[0].mxu0
        %v2427 = vadd.f32 %v2266, %v2426
        %v2428 = vpop.f32.mrb[0].mxu0
        %2429 = vmatprep.mubr.bf16.mxu0 %v1169
        %2430 = vmatmul.mubr.bf16.gmra.mrb[0].mxu0 %v1105
        %v2431 = vpop.f32.mrb[0].mxu0
        %v2432 = vadd.f32 %v2271, %v2431
        %v2433 = vpop.f32.mrb[0].mxu0
        %v2434 = vpop.f32.mrb[0].mxu0
        %v2435 = vadd.f32 %v2274, %v2434
        %v2436 = vpop.f32.mrb[0].mxu0
        %2437 = vmatprep.mubr.bf16.mxu0 %v1170
        %2438 = vmatmul.mubr.bf16.gmra.mrb[0].mxu0 %v1106
        %v2439 = vpop.f32.mrb[0].mxu0
        %v2440 = vadd.f32 %v2279, %v2439
        %v2441 = vpop.f32.mrb[0].mxu0
        %v2442 = vpop.f32.mrb[0].mxu0
        %v2443 = vadd.f32 %v2282, %v2442
        %v2444 = vpop.f32.mrb[0].mxu0
        %2445 = vmatprep.mubr.bf16.mxu0 %v1171
        %2446 = vmatmul.mubr.bf16.gmra.mrb[0].mxu0 %v1107
        %v2447 = vpop.f32.mrb[0].mxu0
        %v2448 = vadd.f32 %v2287, %v2447
        %v2449 = vpop.f32.mrb[0].mxu0
        %v2450 = vpop.f32.mrb[0].mxu0
        %v2451 = vadd.f32 %v2290, %v2450
        %v2452 = vpop.f32.mrb[0].mxu0
        %2453 = vmatprep.mubr.bf16.mxu0 %v1172
        %2454 = vmatmul.mubr.bf16.gmra.mrb[0].mxu0 %v1108
        %v2455 = vpop.f32.mrb[0].mxu0
        %v2456 = vadd.f32 %v2295, %v2455
        %v2457 = vpop.f32.mrb[0].mxu0
        %v2458 = vpop.f32.mrb[0].mxu0
        %v2459 = vadd.f32 %v2298, %v2458
        %v2460 = vpop.f32.mrb[0].mxu0
        %2461 = vmatprep.mubr.bf16.mxu0 %v1173
        %2462 = vmatmul.mubr.bf16.gmra.mrb[0].mxu0 %v1109
        %v2463 = vpop.f32.mrb[0].mxu0
        %v2464 = vadd.f32 %v2303, %v2463
        %v2465 = vpop.f32.mrb[0].mxu0
        %v2466 = vpop.f32.mrb[0].mxu0
        %v2467 = vadd.f32 %v2306, %v2466
        %v2468 = vpop.f32.mrb[0].mxu0
        %2469 = vmatprep.mubr.bf16.mxu0 %v1174
        %2470 = vmatmul.mubr.bf16.gmra.mrb[0].mxu0 %v1110
        %v2471 = vpop.f32.mrb[0].mxu0
        %v2472 = vadd.f32 %v2311, %v2471
        %v2473 = vpop.f32.mrb[0].mxu0
        %v2474 = vpop.f32.mrb[0].mxu0
        %v2475 = vadd.f32 %v2314, %v2474
        %v2476 = vpop.f32.mrb[0].mxu0
        %2477 = vmatprep.mubr.bf16.mxu0 %v1175
        %2478 = vmatmul.mubr.bf16.gmra.mrb[0].mxu0 %v1111
        %v2479 = vpop.f32.mrb[0].mxu0
        %v2480 = vadd.f32 %v2319, %v2479
        %v2481 = vpop.f32.mrb[0].mxu0
        %v2482 = vpop.f32.mrb[0].mxu0
        %v2483 = vadd.f32 %v2322, %v2482
        %v2484 = vpop.f32.mrb[0].mxu0
        %2485 = vmatprep.mubr.bf16.mxu0 %v1176
        %2486 = vmatmul.mubr.bf16.gmra.mrb[0].mxu0 %v1112
        %v2487 = vpop.f32.mrb[0].mxu0
        %v2488 = vadd.f32 %v2327, %v2487
        %v2489 = vpop.f32.mrb[0].mxu0
        %v2490 = vpop.f32.mrb[0].mxu0
        %v2491 = vadd.f32 %v2330, %v2490
        %v2492 = vpop.f32.mrb[0].mxu0
        %2493 = vmatprep.mubr.bf16.mxu0 %v1264
        %2494 = vmatmul.mubr.bf16.gmra.mrb[0].mxu0 %v1260
        %v2495 = vpop.f32.mrb[0].mxu0
        %v2496 = vadd.f32 %v2335, %v2495
        %v2497 = vpop.f32.mrb[0].mxu0
        %v2498 = vpop.f32.mrb[0].mxu0
        %v2499 = vadd.f32 %v2338, %v2498
        %v2500 = vpop.f32.mrb[0].mxu0
        %2501 = vmatprep.mubr.bf16.mxu0 %v1277
        %2502 = vmatmul.mubr.bf16.gmra.mrb[0].mxu0 %v1273
        %v2503 = vpop.f32.mrb[0].mxu0
        %v2504 = vadd.f32 %v2343, %v2503
        %v2505 = vpop.f32.mrb[0].mxu0
        %v2506 = vpop.f32.mrb[0].mxu0
        %v2507 = vadd.f32 %v2346, %v2506
        %v2508 = vpop.f32.mrb[0].mxu0
        %2509 = vdwg.mxu0
        %2510 = vmatprep.subr.bf16.mxu0 0
        %2511 = vmatpush1.bf16.msra.mxu0 %v1786
        %2512 = vmatprep.subr.bf16.mxu0 0
        %2513 = vmatpush1.bf16.msra.mxu0 %v1787
        %2514 = vmatprep.subr.bf16.mxu0 0
        %2515 = vmatpush1.bf16.msra.mxu0 %v1788
        %2516 = vmatprep.subr.bf16.mxu0 0
        %2517 = vmatpush1.bf16.msra.mxu0 %v1789
        %2518 = vmatprep.subr.bf16.mxu0 0
        %2519 = vmatpush1.bf16.msra.mxu0 %v1790
        %2520 = vmatprep.subr.bf16.mxu0 0
        %2521 = vmatpush1.bf16.msra.mxu0 %v1791
        %2522 = vmatprep.subr.bf16.mxu0 0
        %2523 = vmatpush1.bf16.msra.mxu0 %v1792
        %2524 = vmatprep.subr.bf16.mxu0 0
        %2525 = vmatpush1.bf16.msra.mxu0 %v1793
        %2526 = vmatprep.subr.bf16.mxu0 0
        %2527 = vmatpush1.bf16.msra.mxu0 0
        %2528 = vmatprep.subr.bf16.mxu0 0
        %2529 = vmatpush1.bf16.msra.mxu0 0
        %2530 = vmatprep.subr.bf16.mxu0 0
        %2531 = vmatpush1.bf16.msra.mxu0 0
        %2532 = vmatprep.subr.bf16.mxu0 0
        %2533 = vmatpush1.bf16.msra.mxu0 0
        %2534 = vmatprep.subr.bf16.mxu0 0
        %2535 = vmatpush1.bf16.msra.mxu0 0
        %2536 = vmatprep.subr.bf16.mxu0 0
        %2537 = vmatpush1.bf16.msra.mxu0 0
        %2538 = vmatprep.subr.bf16.mxu0 0
        %2539 = vmatpush1.bf16.msra.mxu0 0
        %2540 = vmatprep.subr.bf16.mxu0 0
        %2541 = vmatpush1.bf16.msra.mxu0 0
        %2542 = vmatprep.mubr.bf16.mxu0 0
        %2543 = vmatmul.mubr.bf16.gmra.mrb[0].mxu0 %v1227
        %v2544 = vpop.f32.mrb[0].mxu0
        %v2545 = vadd.f32 %v2384, %v2544
        %v2546 = vpop.f32.mrb[0].mxu0
        %v2547 = vpop.f32.mrb[0].mxu0
        %v2548 = vadd.f32 %v2387, %v2547
        %v2549 = vpop.f32.mrb[0].mxu0
        %2550 = vmatprep.mubr.bf16.mxu0 0
        %2551 = vmatmul.mubr.bf16.gmra.mrb[0].mxu0 %v1228
        %v2552 = vpop.f32.mrb[0].mxu0
        %v2553 = vadd.f32 %v2392, %v2552
        %v2554 = vpop.f32.mrb[0].mxu0
        %v2555 = vpop.f32.mrb[0].mxu0
        %v2556 = vadd.f32 %v2395, %v2555
        %v2557 = vpop.f32.mrb[0].mxu0
        %2558 = vmatprep.mubr.bf16.mxu0 0
        %2559 = vmatmul.mubr.bf16.gmra.mrb[0].mxu0 %v1229
        %v2560 = vpop.f32.mrb[0].mxu0
        %v2561 = vadd.f32 %v2400, %v2560
        %v2562 = vpop.f32.mrb[0].mxu0
        %v2563 = vpop.f32.mrb[0].mxu0
        %v2564 = vadd.f32 %v2403, %v2563
        %v2565 = vpop.f32.mrb[0].mxu0
        %2566 = vmatprep.mubr.bf16.mxu0 0
        %2567 = vmatmul.mubr.bf16.gmra.mrb[0].mxu0 %v1230
        %v2568 = vpop.f32.mrb[0].mxu0
        %v2569 = vadd.f32 %v2408, %v2568
        %v2570 = vpop.f32.mrb[0].mxu0
        %v2571 = vpop.f32.mrb[0].mxu0
        %v2572 = vadd.f32 %v2411, %v2571
        %v2573 = vpop.f32.mrb[0].mxu0
        %2574 = vmatprep.mubr.bf16.mxu0 0
        %2575 = vmatmul.mubr.bf16.gmra.mrb[0].mxu0 %v1231
        %v2576 = vpop.f32.mrb[0].mxu0
        %v2577 = vadd.f32 %v2416, %v2576
        %v2578 = vpop.f32.mrb[0].mxu0
        %v2579 = vpop.f32.mrb[0].mxu0
        %v2580 = vadd.f32 %v2419, %v2579
        %v2581 = vpop.f32.mrb[0].mxu0
        %2582 = vmatprep.mubr.bf16.mxu0 0
        %2583 = vmatmul.mubr.bf16.gmra.mrb[0].mxu0 %v1232
        %v2584 = vpop.f32.mrb[0].mxu0
        %v2585 = vadd.f32 %v2424, %v2584
        %v2586 = vpop.f32.mrb[0].mxu0
        %v2587 = vpop.f32.mrb[0].mxu0
        %v2588 = vadd.f32 %v2427, %v2587
        %v2589 = vpop.f32.mrb[0].mxu0
        %2590 = vmatprep.mubr.bf16.mxu0 0
        %2591 = vmatmul.mubr.bf16.gmra.mrb[0].mxu0 %v1233
        %v2592 = vpop.f32.mrb[0].mxu0
        %v2593 = vadd.f32 %v2432, %v2592
        %v2594 = vpop.f32.mrb[0].mxu0
        %v2595 = vpop.f32.mrb[0].mxu0
        %v2596 = vadd.f32 %v2435, %v2595
        %v2597 = vpop.f32.mrb[0].mxu0
        %2598 = vmatprep.mubr.bf16.mxu0 0
        %2599 = vmatmul.mubr.bf16.gmra.mrb[0].mxu0 %v1234
        %v2600 = vpop.f32.mrb[0].mxu0
        %v2601 = vadd.f32 %v2440, %v2600
        %v2602 = vpop.f32.mrb[0].mxu0
        %v2603 = vpop.f32.mrb[0].mxu0
        %v2604 = vadd.f32 %v2443, %v2603
        %v2605 = vpop.f32.mrb[0].mxu0
        %2606 = vmatprep.mubr.bf16.mxu0 0
        %2607 = vmatmul.mubr.bf16.gmra.mrb[0].mxu0 %v1235
        %v2608 = vpop.f32.mrb[0].mxu0
        %v2609 = vadd.f32 %v2448, %v2608
        %v2610 = vpop.f32.mrb[0].mxu0
        %v2611 = vpop.f32.mrb[0].mxu0
        %v2612 = vadd.f32 %v2451, %v2611
        %v2613 = vpop.f32.mrb[0].mxu0
        %2614 = vmatprep.mubr.bf16.mxu0 0
        %2615 = vmatmul.mubr.bf16.gmra.mrb[0].mxu0 %v1236
        %v2616 = vpop.f32.mrb[0].mxu0
        %v2617 = vadd.f32 %v2456, %v2616
        %v2618 = vpop.f32.mrb[0].mxu0
        %v2619 = vpop.f32.mrb[0].mxu0
        %v2620 = vadd.f32 %v2459, %v2619
        %v2621 = vpop.f32.mrb[0].mxu0
        %2622 = vmatprep.mubr.bf16.mxu0 0
        %2623 = vmatmul.mubr.bf16.gmra.mrb[0].mxu0 %v1237
        %v2624 = vpop.f32.mrb[0].mxu0
        %v2625 = vadd.f32 %v2464, %v2624
        %v2626 = vpop.f32.mrb[0].mxu0
        %v2627 = vpop.f32.mrb[0].mxu0
        %v2628 = vadd.f32 %v2467, %v2627
        %v2629 = vpop.f32.mrb[0].mxu0
        %2630 = vmatprep.mubr.bf16.mxu0 0
        %2631 = vmatmul.mubr.bf16.gmra.mrb[0].mxu0 %v1238
        %v2632 = vpop.f32.mrb[0].mxu0
        %v2633 = vadd.f32 %v2472, %v2632
        %v2634 = vpop.f32.mrb[0].mxu0
        %v2635 = vpop.f32.mrb[0].mxu0
        %v2636 = vadd.f32 %v2475, %v2635
        %v2637 = vpop.f32.mrb[0].mxu0
        %2638 = vmatprep.mubr.bf16.mxu0 0
        %2639 = vmatmul.mubr.bf16.gmra.mrb[0].mxu0 %v1239
        %v2640 = vpop.f32.mrb[0].mxu0
        %v2641 = vadd.f32 %v2480, %v2640
        %v2642 = vpop.f32.mrb[0].mxu0
        %v2643 = vpop.f32.mrb[0].mxu0
        %v2644 = vadd.f32 %v2483, %v2643
        %v2645 = vpop.f32.mrb[0].mxu0
        %2646 = vmatprep.mubr.bf16.mxu0 0
        %2647 = vmatmul.mubr.bf16.gmra.mrb[0].mxu0 %v1240
        %v2648 = vpop.f32.mrb[0].mxu0
        %v2649 = vadd.f32 %v2488, %v2648
        %v2650 = vpop.f32.mrb[0].mxu0
        %v2651 = vpop.f32.mrb[0].mxu0
        %v2652 = vadd.f32 %v2491, %v2651
        %v2653 = vpop.f32.mrb[0].mxu0
        %2654 = vmatprep.mubr.bf16.mxu0 0
        %2655 = vmatmul.mubr.bf16.gmra.mrb[0].mxu0 %v1268
        %v2656 = vpop.f32.mrb[0].mxu0
        %v2657 = vadd.f32 %v2496, %v2656
        %v2658 = vpop.f32.mrb[0].mxu0
        %v2659 = vpop.f32.mrb[0].mxu0
        %v2660 = vadd.f32 %v2499, %v2659
        %v2661 = vpop.f32.mrb[0].mxu0
        %2662 = vmatprep.mubr.bf16.mxu0 0
        %2663 = vmatmul.mubr.bf16.gmra.mrb[0].mxu0 %v1281
        %v2664 = vpop.f32.mrb[0].mxu0
        %v2665 = vadd.f32 %v2504, %v2664
        %v2666 = vpop.f32.mrb[0].mxu0
        %v2667 = vpop.f32.mrb[0].mxu0
        %v2668 = vadd.f32 %v2507, %v2667
        %v2669 = vpop.f32.mrb[0].mxu0
        %2670 = vdwg.mxu0
        %v2671 = vmax.f32 %v2545, 0.0
        %v2672 = vmax.f32 %v2548, 0.0
        %v2673 = vmax.f32 %v2553, 0.0
        %v2674 = vmax.f32 %v2556, 0.0
        %v2675 = vmax.f32 %v2561, 0.0
        %v2676 = vmax.f32 %v2564, 0.0
        %v2677 = vmax.f32 %v2569, 0.0
        %v2678 = vmax.f32 %v2572, 0.0
        %v2679 = vmax.f32 %v2577, 0.0
        %v2680 = vmax.f32 %v2580, 0.0
        %v2681 = vmax.f32 %v2585, 0.0
        %v2682 = vmax.f32 %v2588, 0.0
        %v2683 = vmax.f32 %v2593, 0.0
        %v2684 = vmax.f32 %v2596, 0.0
        %v2685 = vmax.f32 %v2601, 0.0
        %v2686 = vmax.f32 %v2604, 0.0
        %v2687 = vmax.f32 %v2609, 0.0
        %v2688 = vmax.f32 %v2612, 0.0
        %v2689 = vmax.f32 %v2617, 0.0
        %v2690 = vmax.f32 %v2620, 0.0
        %v2691 = vmax.f32 %v2625, 0.0
        %v2692 = vmax.f32 %v2628, 0.0
        %v2693 = vmax.f32 %v2633, 0.0
        %v2694 = vmax.f32 %v2636, 0.0
        %v2695 = vmax.f32 %v2641, 0.0
        %v2696 = vmax.f32 %v2644, 0.0
        %v2697 = vmax.f32 %v2649, 0.0
        %v2698 = vmax.f32 %v2652, 0.0
        %v2699 = vmax.f32 %v2657, 0.0
        %v2700 = vmax.f32 %v2660, 0.0
        %v2701 = vmax.f32 %v2665, 0.0
        %v2702 = vmax.f32 %v2668, 0.0
        %v2703 = vpack.c.bf16 %v2672, %v2671
        %v2704 = vpack.c.bf16 %v2674, %v2673
        %v2705 = vpack.c.bf16 %v2676, %v2675
        %v2706 = vpack.c.bf16 %v2678, %v2677
        %v2707 = vpack.c.bf16 %v2680, %v2679
        %v2708 = vpack.c.bf16 %v2682, %v2681
        %v2709 = vpack.c.bf16 %v2684, %v2683
        %v2710 = vpack.c.bf16 %v2686, %v2685
        %v2711 = vpack.c.bf16 %v2688, %v2687
        %v2712 = vpack.c.bf16 %v2690, %v2689
        %v2713 = vpack.c.bf16 %v2692, %v2691
        %v2714 = vpack.c.bf16 %v2694, %v2693
        %v2715 = vpack.c.bf16 %v2696, %v2695
        %v2716 = vpack.c.bf16 %v2698, %v2697
        %v2717 = vpack.c.bf16 %v2700, %v2699
        %v2718 = vpack.c.bf16 %v2702, %v2701
        %v2735 = vunpack.c.l.b16 %v2703
        %v2736 = vunpack.c.h.b16 %v2703
        %v2737 = vunpack.c.l.b16 %v2704
        %v2738 = vunpack.c.h.b16 %v2704
        %v2739 = vunpack.c.l.b16 %v2705
        %v2740 = vunpack.c.h.b16 %v2705
        %v2741 = vunpack.c.l.b16 %v2706
        %v2742 = vunpack.c.h.b16 %v2706
        %v2743 = vunpack.c.l.b16 %v2707
        %v2744 = vunpack.c.h.b16 %v2707
        %v2745 = vunpack.c.l.b16 %v2708
        %v2746 = vunpack.c.h.b16 %v2708
        %v2747 = vunpack.c.l.b16 %v2709
        %v2748 = vunpack.c.h.b16 %v2709
        %v2749 = vunpack.c.l.b16 %v2710
        %v2750 = vunpack.c.h.b16 %v2710
        %v2751 = vunpack.c.l.b16 %v2711
        %v2752 = vunpack.c.h.b16 %v2711
        %v2753 = vunpack.c.l.b16 %v2712
        %v2754 = vunpack.c.h.b16 %v2712
        %v2755 = vunpack.c.l.b16 %v2713
        %v2756 = vunpack.c.h.b16 %v2713
        %v2757 = vunpack.c.l.b16 %v2714
        %v2758 = vunpack.c.h.b16 %v2714
        %v2759 = vunpack.c.l.b16 %v2715
        %v2760 = vunpack.c.h.b16 %v2715
        %v2761 = vunpack.c.l.b16 %v2716
        %v2762 = vunpack.c.h.b16 %v2716
        %v2763 = vunpack.c.l.b16 %v2717
        %v2764 = vunpack.c.h.b16 %v2717
        %v2765 = vunpack.c.l.b16 %v2718
        %v2766 = vunpack.c.h.b16 %v2718
        %v2767 = vpack.c.b16 %v2735, %v2735
        %v2768 = vpack.c.b16 %v2736, %v2736
        %v2769 = vpack.c.b16 %v2737, %v2737
        %v2770 = vpack.c.b16 %v2738, %v2738
        %v2771 = vpack.c.b16 %v2739, %v2739
        %v2772 = vpack.c.b16 %v2740, %v2740
        %v2773 = vpack.c.b16 %v2741, %v2741
        %v2774 = vpack.c.b16 %v2742, %v2742
        %v2775 = vpack.c.b16 %v2743, %v2743
        %v2776 = vpack.c.b16 %v2744, %v2744
        %v2777 = vpack.c.b16 %v2745, %v2745
        %v2778 = vpack.c.b16 %v2746, %v2746
        %v2779 = vpack.c.b16 %v2747, %v2747
        %v2780 = vpack.c.b16 %v2748, %v2748
        %v2781 = vpack.c.b16 %v2749, %v2749
        %v2782 = vpack.c.b16 %v2750, %v2750
        %v2783 = vpack.c.b16 %v2751, %v2751
        %v2784 = vpack.c.b16 %v2752, %v2752
        %v2785 = vpack.c.b16 %v2753, %v2753
        %v2786 = vpack.c.b16 %v2754, %v2754
        %v2787 = vpack.c.b16 %v2755, %v2755
        %v2788 = vpack.c.b16 %v2756, %v2756
        %v2789 = vpack.c.b16 %v2757, %v2757
        %v2790 = vpack.c.b16 %v2758, %v2758
        %v2791 = vpack.c.b16 %v2759, %v2759
        %v2792 = vpack.c.b16 %v2760, %v2760
        %v2793 = vpack.c.b16 %v2761, %v2761
        %v2794 = vpack.c.b16 %v2762, %v2762
        %v2795 = vpack.c.b16 %v2763, %v2763
        %v2796 = vpack.c.b16 %v2764, %v2764
        %v2797 = vpack.c.b16 %v2765, %v2765
        %v2798 = vpack.c.b16 %v2766, %v2766
        %vm2799 = vsmask.f32 4368
        %vm2800 = vmor %vm247, %vm2799
        %v2802 = vshrl.u32 %v2767, 16
        %v2804 = vrot.slane %v2802, 7
        %v2805 = vshll.u32 %v2767, 16
        %v2807 = vor.u32 %v2804, %v2805
        %v2808 = vrot.slane %v2804, 4
        %v2810 = vshrl.u32 %v2768, 16
        %v2812 = vrot.slane %v2810, 7
        %v2813 = vshll.u32 %v2768, 16
        %v2815 = vor.u32 %v2812, %v2813
        %v2816 = vsel %vm2800, %v2808, %v2815
        %v2817 = vrot.slane %v2812, 4
        %v2819 = vshrl.u32 %v2769, 16
        %v2821 = vrot.slane %v2819, 7
        %v2822 = vshll.u32 %v2769, 16
        %v2824 = vor.u32 %v2821, %v2822
        %v2825 = vrot.slane %v2821, 4
        %v2827 = vshrl.u32 %v2770, 16
        %v2829 = vrot.slane %v2827, 7
        %v2830 = vshll.u32 %v2770, 16
        %v2832 = vor.u32 %v2829, %v2830
        %v2833 = vsel %vm2800, %v2825, %v2832
        %v2834 = vrot.slane %v2829, 4
        %v2836 = vshrl.u32 %v2771, 16
        %v2838 = vrot.slane %v2836, 7
        %v2839 = vshll.u32 %v2771, 16
        %v2841 = vor.u32 %v2838, %v2839
        %v2842 = vrot.slane %v2838, 4
        %v2844 = vshrl.u32 %v2772, 16
        %v2846 = vrot.slane %v2844, 7
        %v2847 = vshll.u32 %v2772, 16
        %v2849 = vor.u32 %v2846, %v2847
        %v2850 = vsel %vm2800, %v2842, %v2849
        %v2851 = vrot.slane %v2846, 4
        %v2853 = vshrl.u32 %v2773, 16
        %v2855 = vrot.slane %v2853, 7
        %v2856 = vshll.u32 %v2773, 16
        %v2858 = vor.u32 %v2855, %v2856
        %v2859 = vrot.slane %v2855, 4
        %v2861 = vshrl.u32 %v2774, 16
        %v2863 = vrot.slane %v2861, 7
        %v2864 = vshll.u32 %v2774, 16
        %v2866 = vor.u32 %v2863, %v2864
        %v2867 = vsel %vm2800, %v2859, %v2866
        %v2868 = vrot.slane %v2863, 4
        %v2870 = vshrl.u32 %v2775, 16
        %v2872 = vrot.slane %v2870, 7
        %v2873 = vshll.u32 %v2775, 16
        %v2875 = vor.u32 %v2872, %v2873
        %v2876 = vrot.slane %v2872, 4
        %v2878 = vshrl.u32 %v2776, 16
        %v2880 = vrot.slane %v2878, 7
        %v2881 = vshll.u32 %v2776, 16
        %v2883 = vor.u32 %v2880, %v2881
        %v2884 = vsel %vm2800, %v2876, %v2883
        %v2885 = vrot.slane %v2880, 4
        %v2887 = vshrl.u32 %v2777, 16
        %v2889 = vrot.slane %v2887, 7
        %v2890 = vshll.u32 %v2777, 16
        %v2892 = vor.u32 %v2889, %v2890
        %v2893 = vrot.slane %v2889, 4
        %v2895 = vshrl.u32 %v2778, 16
        %v2897 = vrot.slane %v2895, 7
        %v2898 = vshll.u32 %v2778, 16
        %v2900 = vor.u32 %v2897, %v2898
        %v2901 = vsel %vm2800, %v2893, %v2900
        %v2902 = vrot.slane %v2897, 4
        %v2904 = vshrl.u32 %v2779, 16
        %v2906 = vrot.slane %v2904, 7
        %v2907 = vshll.u32 %v2779, 16
        %v2909 = vor.u32 %v2906, %v2907
        %v2910 = vrot.slane %v2906, 4
        %v2912 = vshrl.u32 %v2780, 16
        %v2914 = vrot.slane %v2912, 7
        %v2915 = vshll.u32 %v2780, 16
        %v2917 = vor.u32 %v2914, %v2915
        %v2918 = vsel %vm2800, %v2910, %v2917
        %v2919 = vrot.slane %v2914, 4
        %v2921 = vshrl.u32 %v2781, 16
        %v2923 = vrot.slane %v2921, 7
        %v2924 = vshll.u32 %v2781, 16
        %v2926 = vor.u32 %v2923, %v2924
        %v2927 = vrot.slane %v2923, 4
        %v2929 = vshrl.u32 %v2782, 16
        %v2931 = vrot.slane %v2929, 7
        %v2932 = vshll.u32 %v2782, 16
        %v2934 = vor.u32 %v2931, %v2932
        %v2935 = vsel %vm2800, %v2927, %v2934
        %v2936 = vrot.slane %v2931, 4
        %v2938 = vshrl.u32 %v2783, 16
        %v2940 = vrot.slane %v2938, 7
        %v2941 = vshll.u32 %v2783, 16
        %v2943 = vor.u32 %v2940, %v2941
        %v2944 = vrot.slane %v2940, 4
        %v2946 = vshrl.u32 %v2784, 16
        %v2948 = vrot.slane %v2946, 7
        %v2949 = vshll.u32 %v2784, 16
        %v2951 = vor.u32 %v2948, %v2949
        %v2952 = vsel %vm2800, %v2944, %v2951
        %v2953 = vrot.slane %v2948, 4
        %v2955 = vshrl.u32 %v2785, 16
        %v2957 = vrot.slane %v2955, 7
        %v2958 = vshll.u32 %v2785, 16
        %v2960 = vor.u32 %v2957, %v2958
        %v2961 = vrot.slane %v2957, 4
        %v2963 = vshrl.u32 %v2786, 16
        %v2965 = vrot.slane %v2963, 7
        %v2966 = vshll.u32 %v2786, 16
        %v2968 = vor.u32 %v2965, %v2966
        %v2969 = vsel %vm2800, %v2961, %v2968
        %v2970 = vrot.slane %v2965, 4
        %v2972 = vshrl.u32 %v2787, 16
        %v2974 = vrot.slane %v2972, 7
        %v2975 = vshll.u32 %v2787, 16
        %v2977 = vor.u32 %v2974, %v2975
        %v2978 = vrot.slane %v2974, 4
        %v2980 = vshrl.u32 %v2788, 16
        %v2982 = vrot.slane %v2980, 7
        %v2983 = vshll.u32 %v2788, 16
        %v2985 = vor.u32 %v2982, %v2983
        %v2986 = vsel %vm2800, %v2978, %v2985
        %v2987 = vrot.slane %v2982, 4
        %v2989 = vshrl.u32 %v2789, 16
        %v2991 = vrot.slane %v2989, 7
        %v2992 = vshll.u32 %v2789, 16
        %v2994 = vor.u32 %v2991, %v2992
        %v2995 = vrot.slane %v2991, 4
        %v2997 = vshrl.u32 %v2790, 16
        %v2999 = vrot.slane %v2997, 7
        %v3000 = vshll.u32 %v2790, 16
        %v3002 = vor.u32 %v2999, %v3000
        %v3003 = vsel %vm2800, %v2995, %v3002
        %v3004 = vrot.slane %v2999, 4
        %v3006 = vshrl.u32 %v2791, 16
        %v3008 = vrot.slane %v3006, 7
        %v3009 = vshll.u32 %v2791, 16
        %v3011 = vor.u32 %v3008, %v3009
        %v3012 = vrot.slane %v3008, 4
        %v3014 = vshrl.u32 %v2792, 16
        %v3016 = vrot.slane %v3014, 7
        %v3017 = vshll.u32 %v2792, 16
        %v3019 = vor.u32 %v3016, %v3017
        %v3020 = vsel %vm2800, %v3012, %v3019
        %v3021 = vrot.slane %v3016, 4
        %v3023 = vshrl.u32 %v2793, 16
        %v3025 = vrot.slane %v3023, 7
        %v3026 = vshll.u32 %v2793, 16
        %v3028 = vor.u32 %v3025, %v3026
        %v3029 = vrot.slane %v3025, 4
        %v3031 = vshrl.u32 %v2794, 16
        %v3033 = vrot.slane %v3031, 7
        %v3034 = vshll.u32 %v2794, 16
        %v3036 = vor.u32 %v3033, %v3034
        %v3037 = vsel %vm2800, %v3029, %v3036
        %v3038 = vrot.slane %v3033, 4
        %v3040 = vshrl.u32 %v2795, 16
        %v3042 = vrot.slane %v3040, 7
        %v3043 = vshll.u32 %v2795, 16
        %v3045 = vor.u32 %v3042, %v3043
        %v3046 = vrot.slane %v3042, 4
        %v3048 = vshrl.u32 %v2796, 16
        %v3050 = vrot.slane %v3048, 7
        %v3051 = vshll.u32 %v2796, 16
        %v3053 = vor.u32 %v3050, %v3051
        %v3054 = vsel %vm2800, %v3046, %v3053
        %v3055 = vrot.slane %v3050, 4
        %v3057 = vshrl.u32 %v2797, 16
        %v3059 = vrot.slane %v3057, 7
        %v3060 = vshll.u32 %v2797, 16
        %v3062 = vor.u32 %v3059, %v3060
        %v3063 = vrot.slane %v3059, 4
        %v3065 = vshrl.u32 %v2798, 16
        %v3067 = vrot.slane %v3065, 7
        %v3068 = vshll.u32 %v2798, 16
        %v3070 = vor.u32 %v3067, %v3068
        %v3071 = vsel %vm2800, %v3063, %v3070
        %v3072 = vrot.slane %v3067, 4
        %s3121 = scalar_lea.vmem [#allocation2], 12
        %vm3122 = vcmask 1043456
        %vm3123 = vmand %vm3122, %vm303
        %v3124 = vld [vmem:[%s3121] sm:$0xf]
        %v3125 = vsel %vm3123, %v2807, %v3124
        %3126 = vst [vmem:[%s3121] sm:$0xf] %v3125
        %3127 = vst [vmem:[%s3121 + $0x4] sm:$0xf] %v2816
        %v3128 = vld [vmem:[%s3121 + $0x8] sm:$0x1]
        %v3129 = vsel %vm248, %v2817, %v3128
        %3130 = vst [vmem:[%s3121 + $0x8] sm:$0x1] %v3129
        %v3131 = vld [vmem:[%s3121 + $0xc] sm:$0xf]
        %v3132 = vsel %vm3123, %v2824, %v3131
        %3133 = vst [vmem:[%s3121 + $0xc] sm:$0xf] %v3132
        %3134 = vst [vmem:[%s3121 + $0x10] sm:$0xf] %v2833
        %v3135 = vld [vmem:[%s3121 + $0x14] sm:$0x1]
        %v3136 = vsel %vm248, %v2834, %v3135
        %3137 = vst [vmem:[%s3121 + $0x14] sm:$0x1] %v3136
        %v3138 = vld [vmem:[%s3121 + $0x18] sm:$0xf]
        %v3139 = vsel %vm3123, %v2841, %v3138
        %3140 = vst [vmem:[%s3121 + $0x18] sm:$0xf] %v3139
        %3141 = vst [vmem:[%s3121 + $0x1c] sm:$0xf] %v2850
        %v3142 = vld [vmem:[%s3121 + $0x20] sm:$0x1]
        %v3143 = vsel %vm248, %v2851, %v3142
        %3144 = vst [vmem:[%s3121 + $0x20] sm:$0x1] %v3143
        %v3145 = vld [vmem:[%s3121 + $0x24] sm:$0xf]
        %v3146 = vsel %vm3123, %v2858, %v3145
        %3147 = vst [vmem:[%s3121 + $0x24] sm:$0xf] %v3146
        %3148 = vst [vmem:[%s3121 + $0x28] sm:$0xf] %v2867
        %v3149 = vld [vmem:[%s3121 + $0x2c] sm:$0x1]
        %v3150 = vsel %vm248, %v2868, %v3149
        %3151 = vst [vmem:[%s3121 + $0x2c] sm:$0x1] %v3150
        %v3152 = vld [vmem:[%s3121 + $0x30] sm:$0xf]
        %v3153 = vsel %vm3123, %v2875, %v3152
        %3154 = vst [vmem:[%s3121 + $0x30] sm:$0xf] %v3153
        %3155 = vst [vmem:[%s3121 + $0x34] sm:$0xf] %v2884
        %v3156 = vld [vmem:[%s3121 + $0x38] sm:$0x1]
        %v3157 = vsel %vm248, %v2885, %v3156
        %3158 = vst [vmem:[%s3121 + $0x38] sm:$0x1] %v3157
        %v3159 = vld [vmem:[%s3121 + $0x3c] sm:$0xf]
        %v3160 = vsel %vm3123, %v2892, %v3159
        %3161 = vst [vmem:[%s3121 + $0x3c] sm:$0xf] %v3160
        %3162 = vst [vmem:[%s3121 + $0x40] sm:$0xf] %v2901
        %v3163 = vld [vmem:[%s3121 + $0x44] sm:$0x1]
        %v3164 = vsel %vm248, %v2902, %v3163
        %3165 = vst [vmem:[%s3121 + $0x44] sm:$0x1] %v3164
        %v3166 = vld [vmem:[%s3121 + $0x48] sm:$0xf]
        %v3167 = vsel %vm3123, %v2909, %v3166
        %3168 = vst [vmem:[%s3121 + $0x48] sm:$0xf] %v3167
        %3169 = vst [vmem:[%s3121 + $0x4c] sm:$0xf] %v2918
        %v3170 = vld [vmem:[%s3121 + $0x50] sm:$0x1]
        %v3171 = vsel %vm248, %v2919, %v3170
        %3172 = vst [vmem:[%s3121 + $0x50] sm:$0x1] %v3171
        %v3173 = vld [vmem:[%s3121 + $0x54] sm:$0xf]
        %v3174 = vsel %vm3123, %v2926, %v3173
        %3175 = vst [vmem:[%s3121 + $0x54] sm:$0xf] %v3174
        %3176 = vst [vmem:[%s3121 + $0x58] sm:$0xf] %v2935
        %v3177 = vld [vmem:[%s3121 + $0x5c] sm:$0x1]
        %v3178 = vsel %vm248, %v2936, %v3177
        %3179 = vst [vmem:[%s3121 + $0x5c] sm:$0x1] %v3178
        %v3180 = vld [vmem:[%s3121 + $0x60] sm:$0xf]
        %v3181 = vsel %vm3123, %v2943, %v3180
        %3182 = vst [vmem:[%s3121 + $0x60] sm:$0xf] %v3181
        %3183 = vst [vmem:[%s3121 + $0x64] sm:$0xf] %v2952
        %v3184 = vld [vmem:[%s3121 + $0x68] sm:$0x1]
        %v3185 = vsel %vm248, %v2953, %v3184
        %3186 = vst [vmem:[%s3121 + $0x68] sm:$0x1] %v3185
        %v3187 = vld [vmem:[%s3121 + $0x6c] sm:$0xf]
        %v3188 = vsel %vm3123, %v2960, %v3187
        %3189 = vst [vmem:[%s3121 + $0x6c] sm:$0xf] %v3188
        %3190 = vst [vmem:[%s3121 + $0x70] sm:$0xf] %v2969
        %v3191 = vld [vmem:[%s3121 + $0x74] sm:$0x1]
        %v3192 = vsel %vm248, %v2970, %v3191
        %3193 = vst [vmem:[%s3121 + $0x74] sm:$0x1] %v3192
        %v3194 = vld [vmem:[%s3121 + $0x78] sm:$0xf]
        %v3195 = vsel %vm3123, %v2977, %v3194
        %3196 = vst [vmem:[%s3121 + $0x78] sm:$0xf] %v3195
        %3197 = vst [vmem:[%s3121 + $0x7c] sm:$0xf] %v2986
        %v3198 = vld [vmem:[%s3121 + $0x80] sm:$0x1]
        %v3199 = vsel %vm248, %v2987, %v3198
        %3200 = vst [vmem:[%s3121 + $0x80] sm:$0x1] %v3199
        %v3201 = vld [vmem:[%s3121 + $0x84] sm:$0xf]
        %v3202 = vsel %vm3123, %v2994, %v3201
        %3203 = vst [vmem:[%s3121 + $0x84] sm:$0xf] %v3202
        %3204 = vst [vmem:[%s3121 + $0x88] sm:$0xf] %v3003
        %v3205 = vld [vmem:[%s3121 + $0x8c] sm:$0x1]
        %v3206 = vsel %vm248, %v3004, %v3205
        %3207 = vst [vmem:[%s3121 + $0x8c] sm:$0x1] %v3206
        %v3208 = vld [vmem:[%s3121 + $0x90] sm:$0xf]
        %v3209 = vsel %vm3123, %v3011, %v3208
        %3210 = vst [vmem:[%s3121 + $0x90] sm:$0xf] %v3209
        %3211 = vst [vmem:[%s3121 + $0x94] sm:$0xf] %v3020
        %v3212 = vld [vmem:[%s3121 + $0x98] sm:$0x1]
        %v3213 = vsel %vm248, %v3021, %v3212
        %3214 = vst [vmem:[%s3121 + $0x98] sm:$0x1] %v3213
        %v3215 = vld [vmem:[%s3121 + $0x9c] sm:$0xf]
        %v3216 = vsel %vm3123, %v3028, %v3215
        %3217 = vst [vmem:[%s3121 + $0x9c] sm:$0xf] %v3216
        %3218 = vst [vmem:[%s3121 + $0xa0] sm:$0xf] %v3037
        %v3219 = vld [vmem:[%s3121 + $0xa4] sm:$0x1]
        %v3220 = vsel %vm248, %v3038, %v3219
        %3221 = vst [vmem:[%s3121 + $0xa4] sm:$0x1] %v3220
        %v3222 = vld [vmem:[%s3121 + $0xa8] sm:$0xf]
        %v3223 = vsel %vm3123, %v3045, %v3222
        %3224 = vst [vmem:[%s3121 + $0xa8] sm:$0xf] %v3223
        %3225 = vst [vmem:[%s3121 + $0xac] sm:$0xf] %v3054
        %v3226 = vld [vmem:[%s3121 + $0xb0] sm:$0x1]
        %v3227 = vsel %vm248, %v3055, %v3226
        %3228 = vst [vmem:[%s3121 + $0xb0] sm:$0x1] %v3227
        %v3229 = vld [vmem:[%s3121 + $0xb4] sm:$0xf]
        %v3230 = vsel %vm3123, %v3062, %v3229
        %3231 = vst [vmem:[%s3121 + $0xb4] sm:$0xf] %v3230
        %3232 = vst [vmem:[%s3121 + $0xb8] sm:$0xf] %v3071
        %v3233 = vld [vmem:[%s3121 + $0xbc] sm:$0x1]
        %v3234 = vsel %vm248, %v3072, %v3233
        %3235 = vst [vmem:[%s3121 + $0xbc] sm:$0x1] %v3234
        %v3236 = vld [vmem:[#allocation2] sm:$0xf]
        %v3237 = vld [vmem:[#allocation2 + $0x4] sm:$0xf]
        %v3238 = vld [vmem:[#allocation2 + $0xc] sm:$0xf]
        %v3239 = vld [vmem:[#allocation2 + $0x10] sm:$0xf]
        %v3240 = vld [vmem:[#allocation2 + $0x18] sm:$0xf]
        %v3241 = vld [vmem:[#allocation2 + $0x1c] sm:$0xf]
        %v3242 = vld [vmem:[#allocation2 + $0x24] sm:$0xf]
        %v3243 = vld [vmem:[#allocation2 + $0x28] sm:$0xf]
        %v3244 = vld [vmem:[#allocation2 + $0x30] sm:$0xf]
        %v3245 = vld [vmem:[#allocation2 + $0x34] sm:$0xf]
        %v3246 = vld [vmem:[#allocation2 + $0x3c] sm:$0xf]
        %v3247 = vld [vmem:[#allocation2 + $0x40] sm:$0xf]
        %v3248 = vld [vmem:[#allocation2 + $0x48] sm:$0xf]
        %v3249 = vld [vmem:[#allocation2 + $0x4c] sm:$0xf]
        %v3250 = vld [vmem:[#allocation2 + $0x54] sm:$0xf]
        %v3251 = vld [vmem:[#allocation2 + $0x58] sm:$0xf]
        %v3252 = vld [vmem:[#allocation2 + $0x60] sm:$0xf]
        %v3253 = vld [vmem:[#allocation2 + $0x64] sm:$0xf]
        %v3254 = vld [vmem:[#allocation2 + $0x6c] sm:$0xf]
        %v3255 = vld [vmem:[#allocation2 + $0x70] sm:$0xf]
        %v3256 = vld [vmem:[#allocation2 + $0x78] sm:$0xf]
        %v3257 = vld [vmem:[#allocation2 + $0x7c] sm:$0xf]
        %v3258 = vld [vmem:[#allocation2 + $0x84] sm:$0xf]
        %v3259 = vld [vmem:[#allocation2 + $0x88] sm:$0xf]
        %v3260 = vld [vmem:[#allocation2 + $0x90] sm:$0xf]
        %v3261 = vld [vmem:[#allocation2 + $0x94] sm:$0xf]
        %v3262 = vld [vmem:[#allocation2 + $0x9c] sm:$0xf]
        %v3263 = vld [vmem:[#allocation2 + $0xa0] sm:$0xf]
        %v3264 = vld [vmem:[#allocation2 + $0xa8] sm:$0xf]
        %v3265 = vld [vmem:[#allocation2 + $0xac] sm:$0xf]
        %v3266 = vld [vmem:[#allocation2 + $0xb4] sm:$0xf]
        %v3267 = vld [vmem:[#allocation2 + $0xb8] sm:$0xf]
        %v3268 = vld [vmem:[#allocation2 + $0xc0] sm:$0xf]
        %v3269 = vld [vmem:[#allocation2 + $0xc4] sm:$0xf]
        %v3270 = vld [vmem:[#allocation2 + $0xcc] sm:$0xf]
        %v3271 = vld [vmem:[#allocation2 + $0xd0] sm:$0xf]
        %v3272 = vld [vmem:[#allocation2 + $0x8] sm:$0x1]
        %v3273 = vld [vmem:[#allocation2 + $0x14] sm:$0x1]
        %v3274 = vld [vmem:[#allocation2 + $0x20] sm:$0x1]
        %v3275 = vld [vmem:[#allocation2 + $0x2c] sm:$0x1]
        %v3276 = vld [vmem:[#allocation2 + $0x38] sm:$0x1]
        %v3277 = vld [vmem:[#allocation2 + $0x44] sm:$0x1]
        %v3278 = vld [vmem:[#allocation2 + $0x50] sm:$0x1]
        %v3279 = vld [vmem:[#allocation2 + $0x5c] sm:$0x1]
        %v3280 = vld [vmem:[#allocation2 + $0x68] sm:$0x1]
        %v3281 = vld [vmem:[#allocation2 + $0x74] sm:$0x1]
        %v3282 = vld [vmem:[#allocation2 + $0x80] sm:$0x1]
        %v3283 = vld [vmem:[#allocation2 + $0x8c] sm:$0x1]
        %v3284 = vld [vmem:[#allocation2 + $0x98] sm:$0x1]
        %v3285 = vld [vmem:[#allocation2 + $0xa4] sm:$0x1]
        %v3286 = vld [vmem:[#allocation2 + $0xb0] sm:$0x1]
        %v3287 = vld [vmem:[#allocation2 + $0xbc] sm:$0x1]
        %v3288 = vld [vmem:[#allocation2 + $0xc8] sm:$0x1]
        %v3289 = vld [vmem:[#allocation2 + $0xd4] sm:$0x1]
        %v3290 = vld [vmem:[#allocation2] sm:$0xe]
        %v3291 = vld [vmem:[#allocation2 + $0xc] sm:$0xe]
        %v3292 = vld [vmem:[#allocation2 + $0x18] sm:$0xe]
        %v3293 = vld [vmem:[#allocation2 + $0x24] sm:$0xe]
        %v3294 = vld [vmem:[#allocation2 + $0x30] sm:$0xe]
        %v3295 = vld [vmem:[#allocation2 + $0x3c] sm:$0xe]
        %v3296 = vld [vmem:[#allocation2 + $0x48] sm:$0xe]
        %v3297 = vld [vmem:[#allocation2 + $0x54] sm:$0xe]
        %v3298 = vld [vmem:[#allocation2 + $0x60] sm:$0xe]
        %v3299 = vld [vmem:[#allocation2 + $0x6c] sm:$0xe]
        %v3300 = vld [vmem:[#allocation2 + $0x78] sm:$0xe]
        %v3301 = vld [vmem:[#allocation2 + $0x84] sm:$0xe]
        %v3302 = vld [vmem:[#allocation2 + $0x90] sm:$0xe]
        %v3303 = vld [vmem:[#allocation2 + $0x9c] sm:$0xe]
        %v3304 = vld [vmem:[#allocation2 + $0xa8] sm:$0xe]
        %v3305 = vld [vmem:[#allocation2 + $0xb4] sm:$0xe]
        %v3306 = vld [vmem:[#allocation2 + $0xc0] sm:$0xe]
        %v3307 = vld [vmem:[#allocation2 + $0xcc] sm:$0xe]
        %v3309 = vshrl.u32 %v3236, 16
        %v3311 = vrot.slane %v3309, 4
        %v3312 = vshll.u32 %v3236, 16
        %v3314 = vrot.slane %v3312, 5
        %v3315 = vor.u32 %v3311, %v3314
        %v3316 = vrot.slane %v3315, 4
        %v3318 = vshll.u32 %v3237, 16
        %v3320 = vrot.slane %v3318, 5
        %v3321 = vsel %vm433, %v3316, %v3320
        %v3322 = vshrl.u32 %v3237, 16
        %v3324 = vrot.slane %v3322, 4
        %v3325 = vor.u32 %v3324, %v3320
        %v3326 = vrot.slane %v3325, 4
        %v3328 = vshll.u32 %v3272, 16
        %v3330 = vrot.slane %v3328, 5
        %v3331 = vsel %vm433, %v3326, %v3330
        %v3333 = vshrl.u32 %v3238, 16
        %v3335 = vrot.slane %v3333, 4
        %v3336 = vshll.u32 %v3238, 16
        %v3338 = vrot.slane %v3336, 5
        %v3339 = vor.u32 %v3335, %v3338
        %v3340 = vrot.slane %v3339, 4
        %v3342 = vshll.u32 %v3239, 16
        %v3344 = vrot.slane %v3342, 5
        %v3345 = vsel %vm433, %v3340, %v3344
        %v3346 = vshrl.u32 %v3239, 16
        %v3348 = vrot.slane %v3346, 4
        %v3349 = vor.u32 %v3348, %v3344
        %v3350 = vrot.slane %v3349, 4
        %v3352 = vshll.u32 %v3273, 16
        %v3354 = vrot.slane %v3352, 5
        %v3355 = vsel %vm433, %v3350, %v3354
        %v3357 = vshrl.u32 %v3240, 16
        %v3359 = vrot.slane %v3357, 4
        %v3360 = vshll.u32 %v3240, 16
        %v3362 = vrot.slane %v3360, 5
        %v3363 = vor.u32 %v3359, %v3362
        %v3364 = vrot.slane %v3363, 4
        %v3366 = vshll.u32 %v3241, 16
        %v3368 = vrot.slane %v3366, 5
        %v3369 = vsel %vm433, %v3364, %v3368
        %v3370 = vshrl.u32 %v3241, 16
        %v3372 = vrot.slane %v3370, 4
        %v3373 = vor.u32 %v3372, %v3368
        %v3374 = vrot.slane %v3373, 4
        %v3376 = vshll.u32 %v3274, 16
        %v3378 = vrot.slane %v3376, 5
        %v3379 = vsel %vm433, %v3374, %v3378
        %v3381 = vshrl.u32 %v3242, 16
        %v3383 = vrot.slane %v3381, 4
        %v3384 = vshll.u32 %v3242, 16
        %v3386 = vrot.slane %v3384, 5
        %v3387 = vor.u32 %v3383, %v3386
        %v3388 = vrot.slane %v3387, 4
        %v3390 = vshll.u32 %v3243, 16
        %v3392 = vrot.slane %v3390, 5
        %v3393 = vsel %vm433, %v3388, %v3392
        %v3394 = vshrl.u32 %v3243, 16
        %v3396 = vrot.slane %v3394, 4
        %v3397 = vor.u32 %v3396, %v3392
        %v3398 = vrot.slane %v3397, 4
        %v3400 = vshll.u32 %v3275, 16
        %v3402 = vrot.slane %v3400, 5
        %v3403 = vsel %vm433, %v3398, %v3402
        %v3405 = vshrl.u32 %v3244, 16
        %v3407 = vrot.slane %v3405, 4
        %v3408 = vshll.u32 %v3244, 16
        %v3410 = vrot.slane %v3408, 5
        %v3411 = vor.u32 %v3407, %v3410
        %v3412 = vrot.slane %v3411, 4
        %v3414 = vshll.u32 %v3245, 16
        %v3416 = vrot.slane %v3414, 5
        %v3417 = vsel %vm433, %v3412, %v3416
        %v3418 = vshrl.u32 %v3245, 16
        %v3420 = vrot.slane %v3418, 4
        %v3421 = vor.u32 %v3420, %v3416
        %v3422 = vrot.slane %v3421, 4
        %v3424 = vshll.u32 %v3276, 16
        %v3426 = vrot.slane %v3424, 5
        %v3427 = vsel %vm433, %v3422, %v3426
        %v3429 = vshrl.u32 %v3246, 16
        %v3431 = vrot.slane %v3429, 4
        %v3432 = vshll.u32 %v3246, 16
        %v3434 = vrot.slane %v3432, 5
        %v3435 = vor.u32 %v3431, %v3434
        %v3436 = vrot.slane %v3435, 4
        %v3438 = vshll.u32 %v3247, 16
        %v3440 = vrot.slane %v3438, 5
        %v3441 = vsel %vm433, %v3436, %v3440
        %v3442 = vshrl.u32 %v3247, 16
        %v3444 = vrot.slane %v3442, 4
        %v3445 = vor.u32 %v3444, %v3440
        %v3446 = vrot.slane %v3445, 4
        %v3448 = vshll.u32 %v3277, 16
        %v3450 = vrot.slane %v3448, 5
        %v3451 = vsel %vm433, %v3446, %v3450
        %v3453 = vshrl.u32 %v3248, 16
        %v3455 = vrot.slane %v3453, 4
        %v3456 = vshll.u32 %v3248, 16
        %v3458 = vrot.slane %v3456, 5
        %v3459 = vor.u32 %v3455, %v3458
        %v3460 = vrot.slane %v3459, 4
        %v3462 = vshll.u32 %v3249, 16
        %v3464 = vrot.slane %v3462, 5
        %v3465 = vsel %vm433, %v3460, %v3464
        %v3466 = vshrl.u32 %v3249, 16
        %v3468 = vrot.slane %v3466, 4
        %v3469 = vor.u32 %v3468, %v3464
        %v3470 = vrot.slane %v3469, 4
        %v3472 = vshll.u32 %v3278, 16
        %v3474 = vrot.slane %v3472, 5
        %v3475 = vsel %vm433, %v3470, %v3474
        %v3477 = vshrl.u32 %v3250, 16
        %v3479 = vrot.slane %v3477, 4
        %v3480 = vshll.u32 %v3250, 16
        %v3482 = vrot.slane %v3480, 5
        %v3483 = vor.u32 %v3479, %v3482
        %v3484 = vrot.slane %v3483, 4
        %v3486 = vshll.u32 %v3251, 16
        %v3488 = vrot.slane %v3486, 5
        %v3489 = vsel %vm433, %v3484, %v3488
        %v3490 = vshrl.u32 %v3251, 16
        %v3492 = vrot.slane %v3490, 4
        %v3493 = vor.u32 %v3492, %v3488
        %v3494 = vrot.slane %v3493, 4
        %v3496 = vshll.u32 %v3279, 16
        %v3498 = vrot.slane %v3496, 5
        %v3499 = vsel %vm433, %v3494, %v3498
        %v3501 = vshrl.u32 %v3252, 16
        %v3503 = vrot.slane %v3501, 4
        %v3504 = vshll.u32 %v3252, 16
        %v3506 = vrot.slane %v3504, 5
        %v3507 = vor.u32 %v3503, %v3506
        %v3508 = vrot.slane %v3507, 4
        %v3510 = vshll.u32 %v3253, 16
        %v3512 = vrot.slane %v3510, 5
        %v3513 = vsel %vm433, %v3508, %v3512
        %v3514 = vshrl.u32 %v3253, 16
        %v3516 = vrot.slane %v3514, 4
        %v3517 = vor.u32 %v3516, %v3512
        %v3518 = vrot.slane %v3517, 4
        %v3520 = vshll.u32 %v3280, 16
        %v3522 = vrot.slane %v3520, 5
        %v3523 = vsel %vm433, %v3518, %v3522
        %v3525 = vshrl.u32 %v3254, 16
        %v3527 = vrot.slane %v3525, 4
        %v3528 = vshll.u32 %v3254, 16
        %v3530 = vrot.slane %v3528, 5
        %v3531 = vor.u32 %v3527, %v3530
        %v3532 = vrot.slane %v3531, 4
        %v3534 = vshll.u32 %v3255, 16
        %v3536 = vrot.slane %v3534, 5
        %v3537 = vsel %vm433, %v3532, %v3536
        %v3538 = vshrl.u32 %v3255, 16
        %v3540 = vrot.slane %v3538, 4
        %v3541 = vor.u32 %v3540, %v3536
        %v3542 = vrot.slane %v3541, 4
        %v3544 = vshll.u32 %v3281, 16
        %v3546 = vrot.slane %v3544, 5
        %v3547 = vsel %vm433, %v3542, %v3546
        %v3549 = vshrl.u32 %v3256, 16
        %v3551 = vrot.slane %v3549, 4
        %v3552 = vshll.u32 %v3256, 16
        %v3554 = vrot.slane %v3552, 5
        %v3555 = vor.u32 %v3551, %v3554
        %v3556 = vrot.slane %v3555, 4
        %v3558 = vshll.u32 %v3257, 16
        %v3560 = vrot.slane %v3558, 5
        %v3561 = vsel %vm433, %v3556, %v3560
        %v3562 = vshrl.u32 %v3257, 16
        %v3564 = vrot.slane %v3562, 4
        %v3565 = vor.u32 %v3564, %v3560
        %v3566 = vrot.slane %v3565, 4
        %v3568 = vshll.u32 %v3282, 16
        %v3570 = vrot.slane %v3568, 5
        %v3571 = vsel %vm433, %v3566, %v3570
        %v3573 = vshrl.u32 %v3258, 16
        %v3575 = vrot.slane %v3573, 4
        %v3576 = vshll.u32 %v3258, 16
        %v3578 = vrot.slane %v3576, 5
        %v3579 = vor.u32 %v3575, %v3578
        %v3580 = vrot.slane %v3579, 4
        %v3582 = vshll.u32 %v3259, 16
        %v3584 = vrot.slane %v3582, 5
        %v3585 = vsel %vm433, %v3580, %v3584
        %v3586 = vshrl.u32 %v3259, 16
        %v3588 = vrot.slane %v3586, 4
        %v3589 = vor.u32 %v3588, %v3584
        %v3590 = vrot.slane %v3589, 4
        %v3592 = vshll.u32 %v3283, 16
        %v3594 = vrot.slane %v3592, 5
        %v3595 = vsel %vm433, %v3590, %v3594
        %v3597 = vshrl.u32 %v3260, 16
        %v3599 = vrot.slane %v3597, 4
        %v3600 = vshll.u32 %v3260, 16
        %v3602 = vrot.slane %v3600, 5
        %v3603 = vor.u32 %v3599, %v3602
        %v3604 = vrot.slane %v3603, 4
        %v3606 = vshll.u32 %v3261, 16
        %v3608 = vrot.slane %v3606, 5
        %v3609 = vsel %vm433, %v3604, %v3608
        %v3610 = vshrl.u32 %v3261, 16
        %v3612 = vrot.slane %v3610, 4
        %v3613 = vor.u32 %v3612, %v3608
        %v3614 = vrot.slane %v3613, 4
        %v3616 = vshll.u32 %v3284, 16
        %v3618 = vrot.slane %v3616, 5
        %v3619 = vsel %vm433, %v3614, %v3618
        %v3621 = vshrl.u32 %v3262, 16
        %v3623 = vrot.slane %v3621, 4
        %v3624 = vshll.u32 %v3262, 16
        %v3626 = vrot.slane %v3624, 5
        %v3627 = vor.u32 %v3623, %v3626
        %v3628 = vrot.slane %v3627, 4
        %v3630 = vshll.u32 %v3263, 16
        %v3632 = vrot.slane %v3630, 5
        %v3633 = vsel %vm433, %v3628, %v3632
        %v3634 = vshrl.u32 %v3263, 16
        %v3636 = vrot.slane %v3634, 4
        %v3637 = vor.u32 %v3636, %v3632
        %v3638 = vrot.slane %v3637, 4
        %v3640 = vshll.u32 %v3285, 16
        %v3642 = vrot.slane %v3640, 5
        %v3643 = vsel %vm433, %v3638, %v3642
        %v3645 = vshrl.u32 %v3264, 16
        %v3647 = vrot.slane %v3645, 4
        %v3648 = vshll.u32 %v3264, 16
        %v3650 = vrot.slane %v3648, 5
        %v3651 = vor.u32 %v3647, %v3650
        %v3652 = vrot.slane %v3651, 4
        %v3654 = vshll.u32 %v3265, 16
        %v3656 = vrot.slane %v3654, 5
        %v3657 = vsel %vm433, %v3652, %v3656
        %v3658 = vshrl.u32 %v3265, 16
        %v3660 = vrot.slane %v3658, 4
        %v3661 = vor.u32 %v3660, %v3656
        %v3662 = vrot.slane %v3661, 4
        %v3664 = vshll.u32 %v3286, 16
        %v3666 = vrot.slane %v3664, 5
        %v3667 = vsel %vm433, %v3662, %v3666
        %v3669 = vshrl.u32 %v3266, 16
        %v3671 = vrot.slane %v3669, 4
        %v3672 = vshll.u32 %v3266, 16
        %v3674 = vrot.slane %v3672, 5
        %v3675 = vor.u32 %v3671, %v3674
        %v3676 = vrot.slane %v3675, 4
        %v3678 = vshll.u32 %v3267, 16
        %v3680 = vrot.slane %v3678, 5
        %v3681 = vsel %vm433, %v3676, %v3680
        %v3682 = vshrl.u32 %v3267, 16
        %v3684 = vrot.slane %v3682, 4
        %v3685 = vor.u32 %v3684, %v3680
        %v3686 = vrot.slane %v3685, 4
        %v3688 = vshll.u32 %v3287, 16
        %v3690 = vrot.slane %v3688, 5
        %v3691 = vsel %vm433, %v3686, %v3690
        %v3740 = vrot.slane %v3290, 5
        %v3741 = vrot.slane %v3740, 4
        %v3742 = vrot.slane %v3237, 5
        %v3743 = vsel %vm868, %v3741, %v3742
        %v3744 = vrot.slane %v3742, 4
        %v3745 = vrot.slane %v3272, 5
        %v3746 = vsel %vm868, %v3744, %v3745
        %v3747 = vrot.slane %v3291, 5
        %v3748 = vrot.slane %v3747, 4
        %v3749 = vrot.slane %v3239, 5
        %v3750 = vsel %vm868, %v3748, %v3749
        %v3751 = vrot.slane %v3749, 4
        %v3752 = vrot.slane %v3273, 5
        %v3753 = vsel %vm868, %v3751, %v3752
        %v3754 = vrot.slane %v3292, 5
        %v3755 = vrot.slane %v3754, 4
        %v3756 = vrot.slane %v3241, 5
        %v3757 = vsel %vm868, %v3755, %v3756
        %v3758 = vrot.slane %v3756, 4
        %v3759 = vrot.slane %v3274, 5
        %v3760 = vsel %vm868, %v3758, %v3759
        %v3761 = vrot.slane %v3293, 5
        %v3762 = vrot.slane %v3761, 4
        %v3763 = vrot.slane %v3243, 5
        %v3764 = vsel %vm868, %v3762, %v3763
        %v3765 = vrot.slane %v3763, 4
        %v3766 = vrot.slane %v3275, 5
        %v3767 = vsel %vm868, %v3765, %v3766
        %v3768 = vrot.slane %v3294, 5
        %v3769 = vrot.slane %v3768, 4
        %v3770 = vrot.slane %v3245, 5
        %v3771 = vsel %vm868, %v3769, %v3770
        %v3772 = vrot.slane %v3770, 4
        %v3773 = vrot.slane %v3276, 5
        %v3774 = vsel %vm868, %v3772, %v3773
        %v3775 = vrot.slane %v3295, 5
        %v3776 = vrot.slane %v3775, 4
        %v3777 = vrot.slane %v3247, 5
        %v3778 = vsel %vm868, %v3776, %v3777
        %v3779 = vrot.slane %v3777, 4
        %v3780 = vrot.slane %v3277, 5
        %v3781 = vsel %vm868, %v3779, %v3780
        %v3782 = vrot.slane %v3296, 5
        %v3783 = vrot.slane %v3782, 4
        %v3784 = vrot.slane %v3249, 5
        %v3785 = vsel %vm868, %v3783, %v3784
        %v3786 = vrot.slane %v3784, 4
        %v3787 = vrot.slane %v3278, 5
        %v3788 = vsel %vm868, %v3786, %v3787
        %v3789 = vrot.slane %v3297, 5
        %v3790 = vrot.slane %v3789, 4
        %v3791 = vrot.slane %v3251, 5
        %v3792 = vsel %vm868, %v3790, %v3791
        %v3793 = vrot.slane %v3791, 4
        %v3794 = vrot.slane %v3279, 5
        %v3795 = vsel %vm868, %v3793, %v3794
        %v3796 = vrot.slane %v3298, 5
        %v3797 = vrot.slane %v3796, 4
        %v3798 = vrot.slane %v3253, 5
        %v3799 = vsel %vm868, %v3797, %v3798
        %v3800 = vrot.slane %v3798, 4
        %v3801 = vrot.slane %v3280, 5
        %v3802 = vsel %vm868, %v3800, %v3801
        %v3803 = vrot.slane %v3299, 5
        %v3804 = vrot.slane %v3803, 4
        %v3805 = vrot.slane %v3255, 5
        %v3806 = vsel %vm868, %v3804, %v3805
        %v3807 = vrot.slane %v3805, 4
        %v3808 = vrot.slane %v3281, 5
        %v3809 = vsel %vm868, %v3807, %v3808
        %v3810 = vrot.slane %v3300, 5
        %v3811 = vrot.slane %v3810, 4
        %v3812 = vrot.slane %v3257, 5
        %v3813 = vsel %vm868, %v3811, %v3812
        %v3814 = vrot.slane %v3812, 4
        %v3815 = vrot.slane %v3282, 5
        %v3816 = vsel %vm868, %v3814, %v3815
        %v3817 = vrot.slane %v3301, 5
        %v3818 = vrot.slane %v3817, 4
        %v3819 = vrot.slane %v3259, 5
        %v3820 = vsel %vm868, %v3818, %v3819
        %v3821 = vrot.slane %v3819, 4
        %v3822 = vrot.slane %v3283, 5
        %v3823 = vsel %vm868, %v3821, %v3822
        %v3824 = vrot.slane %v3302, 5
        %v3825 = vrot.slane %v3824, 4
        %v3826 = vrot.slane %v3261, 5
        %v3827 = vsel %vm868, %v3825, %v3826
        %v3828 = vrot.slane %v3826, 4
        %v3829 = vrot.slane %v3284, 5
        %v3830 = vsel %vm868, %v3828, %v3829
        %v3831 = vrot.slane %v3303, 5
        %v3832 = vrot.slane %v3831, 4
        %v3833 = vrot.slane %v3263, 5
        %v3834 = vsel %vm868, %v3832, %v3833
        %v3835 = vrot.slane %v3833, 4
        %v3836 = vrot.slane %v3285, 5
        %v3837 = vsel %vm868, %v3835, %v3836
        %v3838 = vrot.slane %v3304, 5
        %v3839 = vrot.slane %v3838, 4
        %v3840 = vrot.slane %v3265, 5
        %v3841 = vsel %vm868, %v3839, %v3840
        %v3842 = vrot.slane %v3840, 4
        %v3843 = vrot.slane %v3286, 5
        %v3844 = vsel %vm868, %v3842, %v3843
        %v3845 = vrot.slane %v3305, 5
        %v3846 = vrot.slane %v3845, 4
        %v3847 = vrot.slane %v3267, 5
        %v3848 = vsel %vm868, %v3846, %v3847
        %v3849 = vrot.slane %v3847, 4
        %v3850 = vrot.slane %v3287, 5
        %v3851 = vsel %vm868, %v3849, %v3850
        %v3853 = vshrl.u32 %v3268, 16
        %v3855 = vrot.slane %v3853, 4
        %v3856 = vshll.u32 %v3268, 16
        %v3858 = vrot.slane %v3856, 5
        %v3859 = vor.u32 %v3855, %v3858
        %v3860 = vrot.slane %v3859, 4
        %v3862 = vshll.u32 %v3269, 16
        %v3864 = vrot.slane %v3862, 5
        %v3865 = vsel %vm433, %v3860, %v3864
        %v3866 = vshrl.u32 %v3269, 16
        %v3868 = vrot.slane %v3866, 4
        %v3869 = vor.u32 %v3868, %v3864
        %v3870 = vrot.slane %v3869, 4
        %v3872 = vshll.u32 %v3288, 16
        %v3874 = vrot.slane %v3872, 5
        %v3875 = vsel %vm433, %v3870, %v3874
        %v3879 = vrot.slane %v3306, 5
        %v3880 = vrot.slane %v3879, 4
        %v3881 = vrot.slane %v3269, 5
        %v3882 = vsel %vm868, %v3880, %v3881
        %v3883 = vrot.slane %v3881, 4
        %v3884 = vrot.slane %v3288, 5
        %v3885 = vsel %vm868, %v3883, %v3884
        %v3887 = vshrl.u32 %v3270, 16
        %v3889 = vrot.slane %v3887, 4
        %v3890 = vshll.u32 %v3270, 16
        %v3892 = vrot.slane %v3890, 5
        %v3893 = vor.u32 %v3889, %v3892
        %v3894 = vrot.slane %v3893, 4
        %v3896 = vshll.u32 %v3271, 16
        %v3898 = vrot.slane %v3896, 5
        %v3899 = vsel %vm433, %v3894, %v3898
        %v3900 = vshrl.u32 %v3271, 16
        %v3902 = vrot.slane %v3900, 4
        %v3903 = vor.u32 %v3902, %v3898
        %v3904 = vrot.slane %v3903, 4
        %v3906 = vshll.u32 %v3289, 16
        %v3908 = vrot.slane %v3906, 5
        %v3909 = vsel %vm433, %v3904, %v3908
        %v3913 = vrot.slane %v3307, 5
        %v3914 = vrot.slane %v3913, 4
        %v3915 = vrot.slane %v3271, 5
        %v3916 = vsel %vm868, %v3914, %v3915
        %v3917 = vrot.slane %v3915, 4
        %v3918 = vrot.slane %v3289, 5
        %v3919 = vsel %vm868, %v3917, %v3918
        %s3920 = scalar_lea.vmem %s237, 12
        %v3921 = vld [vmem:[%s3920] sm:$0xf]
        %v3922 = vld [vmem:[%s3920 + $0x4] sm:$0xf]
        %v3923 = vld [vmem:[%s3920 + $0x8] sm:$0x1]
        %v3924 = vld [vmem:[%s3920 + $0xc] sm:$0xf]
        %v3925 = vld [vmem:[%s3920 + $0x10] sm:$0xf]
        %v3926 = vld [vmem:[%s3920 + $0x14] sm:$0x1]
        %v3927 = vld [vmem:[%s3920 + $0x18] sm:$0xf]
        %v3928 = vld [vmem:[%s3920 + $0x1c] sm:$0xf]
        %v3929 = vld [vmem:[%s3920 + $0x20] sm:$0x1]
        %v3930 = vld [vmem:[%s3920 + $0x24] sm:$0xf]
        %v3931 = vld [vmem:[%s3920 + $0x28] sm:$0xf]
        %v3932 = vld [vmem:[%s3920 + $0x2c] sm:$0x1]
        %v3933 = vld [vmem:[%s3920 + $0x30] sm:$0xf]
        %v3934 = vld [vmem:[%s3920 + $0x34] sm:$0xf]
        %v3935 = vld [vmem:[%s3920 + $0x38] sm:$0x1]
        %v3936 = vld [vmem:[%s3920 + $0x3c] sm:$0xf]
        %v3937 = vld [vmem:[%s3920 + $0x40] sm:$0xf]
        %v3938 = vld [vmem:[%s3920 + $0x44] sm:$0x1]
        %v3939 = vld [vmem:[%s3920 + $0x48] sm:$0xf]
        %v3940 = vld [vmem:[%s3920 + $0x4c] sm:$0xf]
        %v3941 = vld [vmem:[%s3920 + $0x50] sm:$0x1]
        %v3942 = vld [vmem:[%s3920 + $0x54] sm:$0xf]
        %v3943 = vld [vmem:[%s3920 + $0x58] sm:$0xf]
        %v3944 = vld [vmem:[%s3920 + $0x5c] sm:$0x1]
        %v3945 = vld [vmem:[%s3920 + $0x60] sm:$0xf]
        %v3946 = vld [vmem:[%s3920 + $0x64] sm:$0xf]
        %v3947 = vld [vmem:[%s3920 + $0x68] sm:$0x1]
        %v3948 = vld [vmem:[%s3920 + $0x6c] sm:$0xf]
        %v3949 = vld [vmem:[%s3920 + $0x70] sm:$0xf]
        %v3950 = vld [vmem:[%s3920 + $0x74] sm:$0x1]
        %v3951 = vld [vmem:[%s3920 + $0x78] sm:$0xf]
        %v3952 = vld [vmem:[%s3920 + $0x7c] sm:$0xf]
        %v3953 = vld [vmem:[%s3920 + $0x80] sm:$0x1]
        %v3954 = vld [vmem:[%s3920 + $0x84] sm:$0xf]
        %v3955 = vld [vmem:[%s3920 + $0x88] sm:$0xf]
        %v3956 = vld [vmem:[%s3920 + $0x8c] sm:$0x1]
        %v3957 = vld [vmem:[%s3920 + $0x90] sm:$0xf]
        %v3958 = vld [vmem:[%s3920 + $0x94] sm:$0xf]
        %v3959 = vld [vmem:[%s3920 + $0x98] sm:$0x1]
        %v3960 = vld [vmem:[%s3920 + $0x9c] sm:$0xf]
        %v3961 = vld [vmem:[%s3920 + $0xa0] sm:$0xf]
        %v3962 = vld [vmem:[%s3920 + $0xa4] sm:$0x1]
        %v3963 = vld [vmem:[%s3920 + $0xa8] sm:$0xf]
        %v3964 = vld [vmem:[%s3920 + $0xac] sm:$0xf]
        %v3965 = vld [vmem:[%s3920 + $0xb0] sm:$0x1]
        %v3966 = vld [vmem:[%s3920 + $0xb4] sm:$0xf]
        %v3967 = vld [vmem:[%s3920 + $0xb8] sm:$0xf]
        %v3968 = vld [vmem:[%s3920 + $0xbc] sm:$0x1]
        %v3970 = vshrl.u32 %v3921, 16
        %v3972 = vrot.slane %v3970, 4
        %v3973 = vshll.u32 %v3921, 16
        %v3975 = vrot.slane %v3973, 5
        %v3976 = vor.u32 %v3972, %v3975
        %v3977 = vrot.slane %v3976, 4
        %v3979 = vshll.u32 %v3922, 16
        %v3981 = vrot.slane %v3979, 5
        %v3982 = vsel %vm433, %v3977, %v3981
        %v3983 = vshrl.u32 %v3922, 16
        %v3985 = vrot.slane %v3983, 4
        %v3986 = vor.u32 %v3985, %v3981
        %v3987 = vrot.slane %v3986, 4
        %v3989 = vshll.u32 %v3923, 16
        %v3991 = vrot.slane %v3989, 5
        %v3992 = vsel %vm433, %v3987, %v3991
        %v3994 = vshrl.u32 %v3924, 16
        %v3996 = vrot.slane %v3994, 4
        %v3997 = vshll.u32 %v3924, 16
        %v3999 = vrot.slane %v3997, 5
        %v4000 = vor.u32 %v3996, %v3999
        %v4001 = vrot.slane %v4000, 4
        %v4003 = vshll.u32 %v3925, 16
        %v4005 = vrot.slane %v4003, 5
        %v4006 = vsel %vm433, %v4001, %v4005
        %v4007 = vshrl.u32 %v3925, 16
        %v4009 = vrot.slane %v4007, 4
        %v4010 = vor.u32 %v4009, %v4005
        %v4011 = vrot.slane %v4010, 4
        %v4013 = vshll.u32 %v3926, 16
        %v4015 = vrot.slane %v4013, 5
        %v4016 = vsel %vm433, %v4011, %v4015
        %v4018 = vshrl.u32 %v3927, 16
        %v4020 = vrot.slane %v4018, 4
        %v4021 = vshll.u32 %v3927, 16
        %v4023 = vrot.slane %v4021, 5
        %v4024 = vor.u32 %v4020, %v4023
        %v4025 = vrot.slane %v4024, 4
        %v4027 = vshll.u32 %v3928, 16
        %v4029 = vrot.slane %v4027, 5
        %v4030 = vsel %vm433, %v4025, %v4029
        %v4031 = vshrl.u32 %v3928, 16
        %v4033 = vrot.slane %v4031, 4
        %v4034 = vor.u32 %v4033, %v4029
        %v4035 = vrot.slane %v4034, 4
        %v4037 = vshll.u32 %v3929, 16
        %v4039 = vrot.slane %v4037, 5
        %v4040 = vsel %vm433, %v4035, %v4039
        %v4042 = vshrl.u32 %v3930, 16
        %v4044 = vrot.slane %v4042, 4
        %v4045 = vshll.u32 %v3930, 16
        %v4047 = vrot.slane %v4045, 5
        %v4048 = vor.u32 %v4044, %v4047
        %v4049 = vrot.slane %v4048, 4
        %v4051 = vshll.u32 %v3931, 16
        %v4053 = vrot.slane %v4051, 5
        %v4054 = vsel %vm433, %v4049, %v4053
        %v4055 = vshrl.u32 %v3931, 16
        %v4057 = vrot.slane %v4055, 4
        %v4058 = vor.u32 %v4057, %v4053
        %v4059 = vrot.slane %v4058, 4
        %v4061 = vshll.u32 %v3932, 16
        %v4063 = vrot.slane %v4061, 5
        %v4064 = vsel %vm433, %v4059, %v4063
        %v4066 = vshrl.u32 %v3933, 16
        %v4068 = vrot.slane %v4066, 4
        %v4069 = vshll.u32 %v3933, 16
        %v4071 = vrot.slane %v4069, 5
        %v4072 = vor.u32 %v4068, %v4071
        %v4073 = vrot.slane %v4072, 4
        %v4075 = vshll.u32 %v3934, 16
        %v4077 = vrot.slane %v4075, 5
        %v4078 = vsel %vm433, %v4073, %v4077
        %v4079 = vshrl.u32 %v3934, 16
        %v4081 = vrot.slane %v4079, 4
        %v4082 = vor.u32 %v4081, %v4077
        %v4083 = vrot.slane %v4082, 4
        %v4085 = vshll.u32 %v3935, 16
        %v4087 = vrot.slane %v4085, 5
        %v4088 = vsel %vm433, %v4083, %v4087
        %v4090 = vshrl.u32 %v3936, 16
        %v4092 = vrot.slane %v4090, 4
        %v4093 = vshll.u32 %v3936, 16
        %v4095 = vrot.slane %v4093, 5
        %v4096 = vor.u32 %v4092, %v4095
        %v4097 = vrot.slane %v4096, 4
        %v4099 = vshll.u32 %v3937, 16
        %v4101 = vrot.slane %v4099, 5
        %v4102 = vsel %vm433, %v4097, %v4101
        %v4103 = vshrl.u32 %v3937, 16
        %v4105 = vrot.slane %v4103, 4
        %v4106 = vor.u32 %v4105, %v4101
        %v4107 = vrot.slane %v4106, 4
        %v4109 = vshll.u32 %v3938, 16
        %v4111 = vrot.slane %v4109, 5
        %v4112 = vsel %vm433, %v4107, %v4111
        %v4114 = vshrl.u32 %v3939, 16
        %v4116 = vrot.slane %v4114, 4
        %v4117 = vshll.u32 %v3939, 16
        %v4119 = vrot.slane %v4117, 5
        %v4120 = vor.u32 %v4116, %v4119
        %v4121 = vrot.slane %v4120, 4
        %v4123 = vshll.u32 %v3940, 16
        %v4125 = vrot.slane %v4123, 5
        %v4126 = vsel %vm433, %v4121, %v4125
        %v4127 = vshrl.u32 %v3940, 16
        %v4129 = vrot.slane %v4127, 4
        %v4130 = vor.u32 %v4129, %v4125
        %v4131 = vrot.slane %v4130, 4
        %v4133 = vshll.u32 %v3941, 16
        %v4135 = vrot.slane %v4133, 5
        %v4136 = vsel %vm433, %v4131, %v4135
        %v4138 = vshrl.u32 %v3942, 16
        %v4140 = vrot.slane %v4138, 4
        %v4141 = vshll.u32 %v3942, 16
        %v4143 = vrot.slane %v4141, 5
        %v4144 = vor.u32 %v4140, %v4143
        %v4145 = vrot.slane %v4144, 4
        %v4147 = vshll.u32 %v3943, 16
        %v4149 = vrot.slane %v4147, 5
        %v4150 = vsel %vm433, %v4145, %v4149
        %v4151 = vshrl.u32 %v3943, 16
        %v4153 = vrot.slane %v4151, 4
        %v4154 = vor.u32 %v4153, %v4149
        %v4155 = vrot.slane %v4154, 4
        %v4157 = vshll.u32 %v3944, 16
        %v4159 = vrot.slane %v4157, 5
        %v4160 = vsel %vm433, %v4155, %v4159
        %v4162 = vshrl.u32 %v3945, 16
        %v4164 = vrot.slane %v4162, 4
        %v4165 = vshll.u32 %v3945, 16
        %v4167 = vrot.slane %v4165, 5
        %v4168 = vor.u32 %v4164, %v4167
        %v4169 = vrot.slane %v4168, 4
        %v4171 = vshll.u32 %v3946, 16
        %v4173 = vrot.slane %v4171, 5
        %v4174 = vsel %vm433, %v4169, %v4173
        %v4175 = vshrl.u32 %v3946, 16
        %v4177 = vrot.slane %v4175, 4
        %v4178 = vor.u32 %v4177, %v4173
        %v4179 = vrot.slane %v4178, 4
        %v4181 = vshll.u32 %v3947, 16
        %v4183 = vrot.slane %v4181, 5
        %v4184 = vsel %vm433, %v4179, %v4183
        %v4186 = vshrl.u32 %v3948, 16
        %v4188 = vrot.slane %v4186, 4
        %v4189 = vshll.u32 %v3948, 16
        %v4191 = vrot.slane %v4189, 5
        %v4192 = vor.u32 %v4188, %v4191
        %v4193 = vrot.slane %v4192, 4
        %v4195 = vshll.u32 %v3949, 16
        %v4197 = vrot.slane %v4195, 5
        %v4198 = vsel %vm433, %v4193, %v4197
        %v4199 = vshrl.u32 %v3949, 16
        %v4201 = vrot.slane %v4199, 4
        %v4202 = vor.u32 %v4201, %v4197
        %v4203 = vrot.slane %v4202, 4
        %v4205 = vshll.u32 %v3950, 16
        %v4207 = vrot.slane %v4205, 5
        %v4208 = vsel %vm433, %v4203, %v4207
        %v4210 = vshrl.u32 %v3951, 16
        %v4212 = vrot.slane %v4210, 4
        %v4213 = vshll.u32 %v3951, 16
        %v4215 = vrot.slane %v4213, 5
        %v4216 = vor.u32 %v4212, %v4215
        %v4217 = vrot.slane %v4216, 4
        %v4219 = vshll.u32 %v3952, 16
        %v4221 = vrot.slane %v4219, 5
        %v4222 = vsel %vm433, %v4217, %v4221
        %v4223 = vshrl.u32 %v3952, 16
        %v4225 = vrot.slane %v4223, 4
        %v4226 = vor.u32 %v4225, %v4221
        %v4227 = vrot.slane %v4226, 4
        %v4229 = vshll.u32 %v3953, 16
        %v4231 = vrot.slane %v4229, 5
        %v4232 = vsel %vm433, %v4227, %v4231
        %v4234 = vshrl.u32 %v3954, 16
        %v4236 = vrot.slane %v4234, 4
        %v4237 = vshll.u32 %v3954, 16
        %v4239 = vrot.slane %v4237, 5
        %v4240 = vor.u32 %v4236, %v4239
        %v4241 = vrot.slane %v4240, 4
        %v4243 = vshll.u32 %v3955, 16
        %v4245 = vrot.slane %v4243, 5
        %v4246 = vsel %vm433, %v4241, %v4245
        %v4247 = vshrl.u32 %v3955, 16
        %v4249 = vrot.slane %v4247, 4
        %v4250 = vor.u32 %v4249, %v4245
        %v4251 = vrot.slane %v4250, 4
        %v4253 = vshll.u32 %v3956, 16
        %v4255 = vrot.slane %v4253, 5
        %v4256 = vsel %vm433, %v4251, %v4255
        %v4258 = vshrl.u32 %v3957, 16
        %v4260 = vrot.slane %v4258, 4
        %v4261 = vshll.u32 %v3957, 16
        %v4263 = vrot.slane %v4261, 5
        %v4264 = vor.u32 %v4260, %v4263
        %v4265 = vrot.slane %v4264, 4
        %v4267 = vshll.u32 %v3958, 16
        %v4269 = vrot.slane %v4267, 5
        %v4270 = vsel %vm433, %v4265, %v4269
        %v4271 = vshrl.u32 %v3958, 16
        %v4273 = vrot.slane %v4271, 4
        %v4274 = vor.u32 %v4273, %v4269
        %v4275 = vrot.slane %v4274, 4
        %v4277 = vshll.u32 %v3959, 16
        %v4279 = vrot.slane %v4277, 5
        %v4280 = vsel %vm433, %v4275, %v4279
        %v4282 = vshrl.u32 %v3960, 16
        %v4284 = vrot.slane %v4282, 4
        %v4285 = vshll.u32 %v3960, 16
        %v4287 = vrot.slane %v4285, 5
        %v4288 = vor.u32 %v4284, %v4287
        %v4289 = vrot.slane %v4288, 4
        %v4291 = vshll.u32 %v3961, 16
        %v4293 = vrot.slane %v4291, 5
        %v4294 = vsel %vm433, %v4289, %v4293
        %v4295 = vshrl.u32 %v3961, 16
        %v4297 = vrot.slane %v4295, 4
        %v4298 = vor.u32 %v4297, %v4293
        %v4299 = vrot.slane %v4298, 4
        %v4301 = vshll.u32 %v3962, 16
        %v4303 = vrot.slane %v4301, 5
        %v4304 = vsel %vm433, %v4299, %v4303
        %v4306 = vshrl.u32 %v3963, 16
        %v4308 = vrot.slane %v4306, 4
        %v4309 = vshll.u32 %v3963, 16
        %v4311 = vrot.slane %v4309, 5
        %v4312 = vor.u32 %v4308, %v4311
        %v4313 = vrot.slane %v4312, 4
        %v4315 = vshll.u32 %v3964, 16
        %v4317 = vrot.slane %v4315, 5
        %v4318 = vsel %vm433, %v4313, %v4317
        %v4319 = vshrl.u32 %v3964, 16
        %v4321 = vrot.slane %v4319, 4
        %v4322 = vor.u32 %v4321, %v4317
        %v4323 = vrot.slane %v4322, 4
        %v4325 = vshll.u32 %v3965, 16
        %v4327 = vrot.slane %v4325, 5
        %v4328 = vsel %vm433, %v4323, %v4327
        %v4330 = vshrl.u32 %v3966, 16
        %v4332 = vrot.slane %v4330, 4
        %v4333 = vshll.u32 %v3966, 16
        %v4335 = vrot.slane %v4333, 5
        %v4336 = vor.u32 %v4332, %v4335
        %v4337 = vrot.slane %v4336, 4
        %v4339 = vshll.u32 %v3967, 16
        %v4341 = vrot.slane %v4339, 5
        %v4342 = vsel %vm433, %v4337, %v4341
        %v4343 = vshrl.u32 %v3967, 16
        %v4345 = vrot.slane %v4343, 4
        %v4346 = vor.u32 %v4345, %v4341
        %v4347 = vrot.slane %v4346, 4
        %v4349 = vshll.u32 %v3968, 16
        %v4351 = vrot.slane %v4349, 5
        %v4352 = vsel %vm433, %v4347, %v4351
        %v4369 = vunpack.c.l.b16 %v3236
        %v4370 = vunpack.c.l.b16 %v3237
        %v4371 = vunpack.c.l.b16 %v3238
        %v4372 = vunpack.c.l.b16 %v3239
        %v4373 = vunpack.c.l.b16 %v3240
        %v4374 = vunpack.c.l.b16 %v3241
        %v4375 = vunpack.c.l.b16 %v3242
        %v4376 = vunpack.c.l.b16 %v3243
        %v4377 = vunpack.c.l.b16 %v3244
        %v4378 = vunpack.c.l.b16 %v3245
        %v4379 = vunpack.c.l.b16 %v3246
        %v4380 = vunpack.c.l.b16 %v3247
        %v4381 = vunpack.c.l.b16 %v3248
        %v4382 = vunpack.c.l.b16 %v3249
        %v4383 = vunpack.c.l.b16 %v3250
        %v4384 = vunpack.c.l.b16 %v3251
        %v4385 = vunpack.c.l.b16 %v3252
        %v4386 = vunpack.c.l.b16 %v3253
        %v4387 = vunpack.c.l.b16 %v3254
        %v4388 = vunpack.c.l.b16 %v3255
        %v4389 = vunpack.c.l.b16 %v3256
        %v4390 = vunpack.c.l.b16 %v3257
        %v4391 = vunpack.c.l.b16 %v3258
        %v4392 = vunpack.c.l.b16 %v3259
        %v4393 = vunpack.c.l.b16 %v3260
        %v4394 = vunpack.c.l.b16 %v3261
        %v4395 = vunpack.c.l.b16 %v3262
        %v4396 = vunpack.c.l.b16 %v3263
        %v4397 = vunpack.c.l.b16 %v3264
        %v4398 = vunpack.c.l.b16 %v3265
        %v4399 = vunpack.c.l.b16 %v3266
        %v4400 = vunpack.c.l.b16 %v3267
        %v4401 = vpack.c.b16 %v4370, %v4369
        %v4402 = vpack.c.b16 %v4372, %v4371
        %v4403 = vpack.c.b16 %v4374, %v4373
        %v4404 = vpack.c.b16 %v4376, %v4375
        %v4405 = vpack.c.b16 %v4378, %v4377
        %v4406 = vpack.c.b16 %v4380, %v4379
        %v4407 = vpack.c.b16 %v4382, %v4381
        %v4408 = vpack.c.b16 %v4384, %v4383
        %v4409 = vpack.c.b16 %v4386, %v4385
        %v4410 = vpack.c.b16 %v4388, %v4387
        %v4411 = vpack.c.b16 %v4390, %v4389
        %v4412 = vpack.c.b16 %v4392, %v4391
        %v4413 = vpack.c.b16 %v4394, %v4393
        %v4414 = vpack.c.b16 %v4396, %v4395
        %v4415 = vpack.c.b16 %v4398, %v4397
        %v4416 = vpack.c.b16 %v4400, %v4399
        %v4433 = vunpack.c.l.b16 %v3321
        %v4434 = vunpack.c.l.b16 %v3331
        %v4435 = vunpack.c.l.b16 %v3345
        %v4436 = vunpack.c.l.b16 %v3355
        %v4437 = vunpack.c.l.b16 %v3369
        %v4438 = vunpack.c.l.b16 %v3379
        %v4439 = vunpack.c.l.b16 %v3393
        %v4440 = vunpack.c.l.b16 %v3403
        %v4441 = vunpack.c.l.b16 %v3417
        %v4442 = vunpack.c.l.b16 %v3427
        %v4443 = vunpack.c.l.b16 %v3441
        %v4444 = vunpack.c.l.b16 %v3451
        %v4445 = vunpack.c.l.b16 %v3465
        %v4446 = vunpack.c.l.b16 %v3475
        %v4447 = vunpack.c.l.b16 %v3489
        %v4448 = vunpack.c.l.b16 %v3499
        %v4449 = vunpack.c.l.b16 %v3513
        %v4450 = vunpack.c.l.b16 %v3523
        %v4451 = vunpack.c.l.b16 %v3537
        %v4452 = vunpack.c.l.b16 %v3547
        %v4453 = vunpack.c.l.b16 %v3561
        %v4454 = vunpack.c.l.b16 %v3571
        %v4455 = vunpack.c.l.b16 %v3585
        %v4456 = vunpack.c.l.b16 %v3595
        %v4457 = vunpack.c.l.b16 %v3609
        %v4458 = vunpack.c.l.b16 %v3619
        %v4459 = vunpack.c.l.b16 %v3633
        %v4460 = vunpack.c.l.b16 %v3643
        %v4461 = vunpack.c.l.b16 %v3657
        %v4462 = vunpack.c.l.b16 %v3667
        %v4463 = vunpack.c.l.b16 %v3681
        %v4464 = vunpack.c.l.b16 %v3691
        %v4465 = vpack.c.b16 %v4434, %v4433
        %v4466 = vpack.c.b16 %v4436, %v4435
        %v4467 = vpack.c.b16 %v4438, %v4437
        %v4468 = vpack.c.b16 %v4440, %v4439
        %v4469 = vpack.c.b16 %v4442, %v4441
        %v4470 = vpack.c.b16 %v4444, %v4443
        %v4471 = vpack.c.b16 %v4446, %v4445
        %v4472 = vpack.c.b16 %v4448, %v4447
        %v4473 = vpack.c.b16 %v4450, %v4449
        %v4474 = vpack.c.b16 %v4452, %v4451
        %v4475 = vpack.c.b16 %v4454, %v4453
        %v4476 = vpack.c.b16 %v4456, %v4455
        %v4477 = vpack.c.b16 %v4458, %v4457
        %v4478 = vpack.c.b16 %v4460, %v4459
        %v4479 = vpack.c.b16 %v4462, %v4461
        %v4480 = vpack.c.b16 %v4464, %v4463
        %v4497 = vunpack.c.l.b16 %v3743
        %v4498 = vunpack.c.l.b16 %v3746
        %v4499 = vunpack.c.l.b16 %v3750
        %v4500 = vunpack.c.l.b16 %v3753
        %v4501 = vunpack.c.l.b16 %v3757
        %v4502 = vunpack.c.l.b16 %v3760
        %v4503 = vunpack.c.l.b16 %v3764
        %v4504 = vunpack.c.l.b16 %v3767
        %v4505 = vunpack.c.l.b16 %v3771
        %v4506 = vunpack.c.l.b16 %v3774
        %v4507 = vunpack.c.l.b16 %v3778
        %v4508 = vunpack.c.l.b16 %v3781
        %v4509 = vunpack.c.l.b16 %v3785
        %v4510 = vunpack.c.l.b16 %v3788
        %v4511 = vunpack.c.l.b16 %v3792
        %v4512 = vunpack.c.l.b16 %v3795
        %v4513 = vunpack.c.l.b16 %v3799
        %v4514 = vunpack.c.l.b16 %v3802
        %v4515 = vunpack.c.l.b16 %v3806
        %v4516 = vunpack.c.l.b16 %v3809
        %v4517 = vunpack.c.l.b16 %v3813
        %v4518 = vunpack.c.l.b16 %v3816
        %v4519 = vunpack.c.l.b16 %v3820
        %v4520 = vunpack.c.l.b16 %v3823
        %v4521 = vunpack.c.l.b16 %v3827
        %v4522 = vunpack.c.l.b16 %v3830
        %v4523 = vunpack.c.l.b16 %v3834
        %v4524 = vunpack.c.l.b16 %v3837
        %v4525 = vunpack.c.l.b16 %v3841
        %v4526 = vunpack.c.l.b16 %v3844
        %v4527 = vunpack.c.l.b16 %v3848
        %v4528 = vunpack.c.l.b16 %v3851
        %v4529 = vpack.c.b16 %v4498, %v4497
        %v4530 = vpack.c.b16 %v4500, %v4499
        %v4531 = vpack.c.b16 %v4502, %v4501
        %v4532 = vpack.c.b16 %v4504, %v4503
        %v4533 = vpack.c.b16 %v4506, %v4505
        %v4534 = vpack.c.b16 %v4508, %v4507
        %v4535 = vpack.c.b16 %v4510, %v4509
        %v4536 = vpack.c.b16 %v4512, %v4511
        %v4537 = vpack.c.b16 %v4514, %v4513
        %v4538 = vpack.c.b16 %v4516, %v4515
        %v4539 = vpack.c.b16 %v4518, %v4517
        %v4540 = vpack.c.b16 %v4520, %v4519
        %v4541 = vpack.c.b16 %v4522, %v4521
        %v4542 = vpack.c.b16 %v4524, %v4523
        %v4543 = vpack.c.b16 %v4526, %v4525
        %v4544 = vpack.c.b16 %v4528, %v4527
        %v4562 = vunpack.c.l.b16 %v3268
        %v4563 = vunpack.c.l.b16 %v3269
        %v4564 = vpack.c.b16 %v4563, %v4562
        %v4566 = vunpack.c.l.b16 %v3865
        %v4567 = vunpack.c.l.b16 %v3875
        %v4568 = vpack.c.b16 %v4567, %v4566
        %v4570 = vunpack.c.l.b16 %v3882
        %v4571 = vunpack.c.l.b16 %v3885
        %v4572 = vpack.c.b16 %v4571, %v4570
        %v4575 = vunpack.c.l.b16 %v3270
        %v4576 = vunpack.c.l.b16 %v3271
        %v4577 = vpack.c.b16 %v4576, %v4575
        %v4579 = vunpack.c.l.b16 %v3899
        %v4580 = vunpack.c.l.b16 %v3909
        %v4581 = vpack.c.b16 %v4580, %v4579
        %v4583 = vunpack.c.l.b16 %v3916
        %v4584 = vunpack.c.l.b16 %v3919
        %v4585 = vpack.c.b16 %v4584, %v4583
        %v4587 = vunpack.c.l.b16 %v3982
        %v4588 = vunpack.c.l.b16 %v3992
        %v4589 = vunpack.c.l.b16 %v4006
        %v4590 = vunpack.c.l.b16 %v4016
        %v4591 = vunpack.c.l.b16 %v4030
        %v4592 = vunpack.c.l.b16 %v4040
        %v4593 = vunpack.c.l.b16 %v4054
        %v4594 = vunpack.c.l.b16 %v4064
        %v4595 = vunpack.c.l.b16 %v4078
        %v4596 = vunpack.c.l.b16 %v4088
        %v4597 = vunpack.c.l.b16 %v4102
        %v4598 = vunpack.c.l.b16 %v4112
        %v4599 = vunpack.c.l.b16 %v4126
        %v4600 = vunpack.c.l.b16 %v4136
        %v4601 = vunpack.c.l.b16 %v4150
        %v4602 = vunpack.c.l.b16 %v4160
        %v4603 = vunpack.c.l.b16 %v4174
        %v4604 = vunpack.c.l.b16 %v4184
        %v4605 = vunpack.c.l.b16 %v4198
        %v4606 = vunpack.c.l.b16 %v4208
        %v4607 = vunpack.c.l.b16 %v4222
        %v4608 = vunpack.c.l.b16 %v4232
        %v4609 = vunpack.c.l.b16 %v4246
        %v4610 = vunpack.c.l.b16 %v4256
        %v4611 = vunpack.c.l.b16 %v4270
        %v4612 = vunpack.c.l.b16 %v4280
        %v4613 = vunpack.c.l.b16 %v4294
        %v4614 = vunpack.c.l.b16 %v4304
        %v4615 = vunpack.c.l.b16 %v4318
        %v4616 = vunpack.c.l.b16 %v4328
        %v4617 = vunpack.c.l.b16 %v4342
        %v4618 = vunpack.c.l.b16 %v4352
        %v4619 = vpack.c.b16 %v4588, %v4587
        %v4620 = vpack.c.b16 %v4590, %v4589
        %v4621 = vpack.c.b16 %v4592, %v4591
        %v4622 = vpack.c.b16 %v4594, %v4593
        %v4623 = vpack.c.b16 %v4596, %v4595
        %v4624 = vpack.c.b16 %v4598, %v4597
        %v4625 = vpack.c.b16 %v4600, %v4599
        %v4626 = vpack.c.b16 %v4602, %v4601
        %v4627 = vpack.c.b16 %v4604, %v4603
        %v4628 = vpack.c.b16 %v4606, %v4605
        %v4629 = vpack.c.b16 %v4608, %v4607
        %v4630 = vpack.c.b16 %v4610, %v4609
        %v4631 = vpack.c.b16 %v4612, %v4611
        %v4632 = vpack.c.b16 %v4614, %v4613
        %v4633 = vpack.c.b16 %v4616, %v4615
        %v4634 = vpack.c.b16 %v4618, %v4617
        %v4651 = vld [vmem:[%s3] sm:$0xf]
        %v4652 = vld [vmem:[%s3 + $0x4] sm:$0xf]
        %v4653 = vld [vmem:[%s3 + $0x8] sm:$0xf]
        %v4654 = vld [vmem:[%s3 + $0xc] sm:$0xf]
        %v4655 = vld [vmem:[%s3 + $0x10] sm:$0xf]
        %v4656 = vld [vmem:[%s3 + $0x14] sm:$0xf]
        %v4657 = vld [vmem:[%s3 + $0x18] sm:$0xf]
        %v4658 = vld [vmem:[%s3 + $0x1c] sm:$0xf]
        %v4659 = vld [vmem:[%s3 + $0x20] sm:$0xf]
        %v4660 = vld [vmem:[%s3 + $0x24] sm:$0xf]
        %v4661 = vld [vmem:[%s3 + $0x28] sm:$0xf]
        %v4662 = vld [vmem:[%s3 + $0x2c] sm:$0xf]
        %v4663 = vld [vmem:[%s3 + $0x30] sm:$0xf]
        %v4664 = vld [vmem:[%s3 + $0x34] sm:$0xf]
        %v4665 = vld [vmem:[%s3 + $0x38] sm:$0xf]
        %v4666 = vld [vmem:[%s3 + $0x3c] sm:$0xf]
        %v4667 = vld [vmem:[%s3 + $0x40] sm:$0xf]
        %v4668 = vld [vmem:[%s3 + $0x44] sm:$0xf]
        %v4669 = vld [vmem:[%s3 + $0x48] sm:$0xf]
        %v4670 = vld [vmem:[%s3 + $0x4c] sm:$0xf]
        %v4671 = vld [vmem:[%s3 + $0x50] sm:$0xf]
        %v4672 = vld [vmem:[%s3 + $0x54] sm:$0xf]
        %v4673 = vld [vmem:[%s3 + $0x58] sm:$0xf]
        %v4674 = vld [vmem:[%s3 + $0x5c] sm:$0xf]
        %v4675 = vld [vmem:[%s3 + $0x60] sm:$0xf]
        %v4676 = vld [vmem:[%s3 + $0x64] sm:$0xf]
        %v4677 = vld [vmem:[%s3 + $0x68] sm:$0xf]
        %v4678 = vld [vmem:[%s3 + $0x6c] sm:$0xf]
        %v4679 = vld [vmem:[%s3 + $0x70] sm:$0xf]
        %v4680 = vld [vmem:[%s3 + $0x74] sm:$0xf]
        %v4681 = vld [vmem:[%s3 + $0x78] sm:$0xf]
        %v4682 = vld [vmem:[%s3 + $0x7c] sm:$0xf]
        %v4683 = vld [vmem:[%s3 + $0x80] sm:$0xf]
        %v4684 = vld [vmem:[%s3 + $0x84] sm:$0xf]
        %v4685 = vld [vmem:[%s3 + $0x88] sm:$0xf]
        %v4686 = vld [vmem:[%s3 + $0x8c] sm:$0xf]
        %v4687 = vld [vmem:[%s3 + $0x90] sm:$0xf]
        %v4688 = vld [vmem:[%s3 + $0x94] sm:$0xf]
        %v4689 = vld [vmem:[%s3 + $0x98] sm:$0xf]
        %v4690 = vld [vmem:[%s3 + $0x9c] sm:$0xf]
        %v4691 = vld [vmem:[%s3 + $0xa0] sm:$0xf]
        %v4692 = vld [vmem:[%s3 + $0xa4] sm:$0xf]
        %v4693 = vld [vmem:[%s3 + $0xa8] sm:$0xf]
        %v4694 = vld [vmem:[%s3 + $0xac] sm:$0xf]
        %v4695 = vld [vmem:[%s3 + $0xb0] sm:$0xf]
        %v4696 = vld [vmem:[%s3 + $0xb4] sm:$0xf]
        %v4697 = vld [vmem:[%s3 + $0xb8] sm:$0xf]
        %v4698 = vld [vmem:[%s3 + $0xbc] sm:$0xf]
        %v4699 = vld [vmem:[%s3 + $0xc0] sm:$0xf]
        %v4700 = vld [vmem:[%s3 + $0xc4] sm:$0xf]
        %v4701 = vld [vmem:[%s3 + $0xc8] sm:$0xf]
        %v4702 = vld [vmem:[%s3 + $0xcc] sm:$0xf]
        %v4703 = vld [vmem:[%s3 + $0xd0] sm:$0xf]
        %v4704 = vld [vmem:[%s3 + $0xd4] sm:$0xf]
        %v4705 = vld [vmem:[%s3 + $0xd8] sm:$0xf]
        %v4706 = vld [vmem:[%s3 + $0xdc] sm:$0xf]
        %v4707 = vld [vmem:[%s3 + $0xe0] sm:$0xf]
        %v4708 = vld [vmem:[%s3 + $0xe4] sm:$0xf]
        %v4709 = vld [vmem:[%s3 + $0xe8] sm:$0xf]
        %v4710 = vld [vmem:[%s3 + $0xec] sm:$0xf]
        %v4711 = vld [vmem:[%s3 + $0xf0] sm:$0xf]
        %v4712 = vld [vmem:[%s3 + $0xf4] sm:$0xf]
        %v4713 = vld [vmem:[%s3 + $0xf8] sm:$0xf]
        %v4714 = vld [vmem:[%s3 + $0xfc] sm:$0xf]
        %v4715 = vld [vmem:[%s3 + $0x100] sm:$0xf]
        %v4716 = vld [vmem:[%s3 + $0x104] sm:$0xf]
        %v4717 = vld [vmem:[%s3 + $0x108] sm:$0xf]
        %v4718 = vld [vmem:[%s3 + $0x10c] sm:$0xf]
        %v4719 = vld [vmem:[%s3 + $0x110] sm:$0xf]
        %v4720 = vld [vmem:[%s3 + $0x114] sm:$0xf]
        %v4721 = vld [vmem:[%s3 + $0x118] sm:$0xf]
        %v4722 = vld [vmem:[%s3 + $0x11c] sm:$0xf]
        %v4723 = vld [vmem:[%s3 + $0x120] sm:$0xf]
        %v4724 = vld [vmem:[%s3 + $0x124] sm:$0xf]
        %v4725 = vld [vmem:[%s3 + $0x128] sm:$0xf]
        %v4726 = vld [vmem:[%s3 + $0x12c] sm:$0xf]
        %v4727 = vld [vmem:[%s3 + $0x130] sm:$0xf]
        %v4728 = vld [vmem:[%s3 + $0x134] sm:$0xf]
        %v4729 = vld [vmem:[%s3 + $0x138] sm:$0xf]
        %v4730 = vld [vmem:[%s3 + $0x13c] sm:$0xf]
        %v4731 = vld [vmem:[%s3 + $0x140] sm:$0xf]
        %v4732 = vld [vmem:[%s3 + $0x144] sm:$0xf]
        %v4733 = vld [vmem:[%s3 + $0x148] sm:$0xf]
        %v4734 = vld [vmem:[%s3 + $0x14c] sm:$0xf]
        %v4735 = vld [vmem:[%s3 + $0x150] sm:$0xf]
        %v4736 = vld [vmem:[%s3 + $0x154] sm:$0xf]
        %v4737 = vld [vmem:[%s3 + $0x158] sm:$0xf]
        %v4738 = vld [vmem:[%s3 + $0x15c] sm:$0xf]
        %v4739 = vld [vmem:[%s3 + $0x160] sm:$0xf]
        %v4740 = vld [vmem:[%s3 + $0x164] sm:$0xf]
        %v4741 = vld [vmem:[%s3 + $0x168] sm:$0xf]
        %v4742 = vld [vmem:[%s3 + $0x16c] sm:$0xf]
        %v4743 = vld [vmem:[%s3 + $0x170] sm:$0xf]
        %v4744 = vld [vmem:[%s3 + $0x174] sm:$0xf]
        %v4745 = vld [vmem:[%s3 + $0x178] sm:$0xf]
        %v4746 = vld [vmem:[%s3 + $0x17c] sm:$0xf]
        %v4747 = vld [vmem:[%s3 + $0x180] sm:$0xf]
        %v4748 = vld [vmem:[%s3 + $0x184] sm:$0xf]
        %v4749 = vld [vmem:[%s3 + $0x188] sm:$0xf]
        %v4750 = vld [vmem:[%s3 + $0x18c] sm:$0xf]
        %v4751 = vld [vmem:[%s3 + $0x190] sm:$0xf]
        %v4752 = vld [vmem:[%s3 + $0x194] sm:$0xf]
        %v4753 = vld [vmem:[%s3 + $0x198] sm:$0xf]
        %v4754 = vld [vmem:[%s3 + $0x19c] sm:$0xf]
        %v4755 = vld [vmem:[%s3 + $0x1a0] sm:$0xf]
        %v4756 = vld [vmem:[%s3 + $0x1a4] sm:$0xf]
        %v4757 = vld [vmem:[%s3 + $0x1a8] sm:$0xf]
        %v4758 = vld [vmem:[%s3 + $0x1ac] sm:$0xf]
        %v4759 = vld [vmem:[%s3 + $0x1b0] sm:$0xf]
        %v4760 = vld [vmem:[%s3 + $0x1b4] sm:$0xf]
        %v4761 = vld [vmem:[%s3 + $0x1b8] sm:$0xf]
        %v4762 = vld [vmem:[%s3 + $0x1bc] sm:$0xf]
        %v4763 = vld [vmem:[%s3 + $0x1c0] sm:$0xf]
        %v4764 = vld [vmem:[%s3 + $0x1c4] sm:$0xf]
        %v4765 = vld [vmem:[%s3 + $0x1c8] sm:$0xf]
        %v4766 = vld [vmem:[%s3 + $0x1cc] sm:$0xf]
        %v4767 = vld [vmem:[%s3 + $0x1d0] sm:$0xf]
        %v4768 = vld [vmem:[%s3 + $0x1d4] sm:$0xf]
        %v4769 = vld [vmem:[%s3 + $0x1d8] sm:$0xf]
        %v4770 = vld [vmem:[%s3 + $0x1dc] sm:$0xf]
        %v4771 = vld [vmem:[%s3 + $0x1e0] sm:$0xf]
        %v4772 = vld [vmem:[%s3 + $0x1e4] sm:$0xf]
        %v4773 = vld [vmem:[%s3 + $0x1e8] sm:$0xf]
        %v4774 = vld [vmem:[%s3 + $0x1ec] sm:$0xf]
        %v4775 = vld [vmem:[%s3 + $0x1f0] sm:$0xf]
        %v4776 = vld [vmem:[%s3 + $0x1f4] sm:$0xf]
        %v4777 = vld [vmem:[%s3 + $0x1f8] sm:$0xf]
        %v4778 = vld [vmem:[%s3 + $0x1fc] sm:$0xf]
        %v4779 = vld [vmem:[%s3 + $0x200] sm:$0xf]
        %v4780 = vld [vmem:[%s3 + $0x204] sm:$0xf]
        %v4781 = vld [vmem:[%s3 + $0x208] sm:$0xf]
        %v4782 = vld [vmem:[%s3 + $0x20c] sm:$0xf]
        %v4783 = vld [vmem:[%s3 + $0x210] sm:$0xf]
        %v4784 = vld [vmem:[%s3 + $0x214] sm:$0xf]
        %v4785 = vld [vmem:[%s3 + $0x218] sm:$0xf]
        %v4786 = vld [vmem:[%s3 + $0x21c] sm:$0xf]
        %v4787 = vld [vmem:[%s3 + $0x220] sm:$0xf]
        %v4788 = vld [vmem:[%s3 + $0x224] sm:$0xf]
        %v4789 = vld [vmem:[%s3 + $0x228] sm:$0xf]
        %v4790 = vld [vmem:[%s3 + $0x22c] sm:$0xf]
        %v4791 = vld [vmem:[%s3 + $0x230] sm:$0xf]
        %v4792 = vld [vmem:[%s3 + $0x234] sm:$0xf]
        %v4793 = vld [vmem:[%s3 + $0x238] sm:$0xf]
        %v4794 = vld [vmem:[%s3 + $0x23c] sm:$0xf]
        %v4795 = vld [vmem:[%s3 + $0x240] sm:$0xf]
        %v4796 = vld [vmem:[%s3 + $0x244] sm:$0xf]
        %v4797 = vld [vmem:[%s3 + $0x248] sm:$0xf]
        %v4798 = vld [vmem:[%s3 + $0x24c] sm:$0xf]
        %v4799 = vld [vmem:[%s3 + $0x250] sm:$0xf]
        %v4800 = vld [vmem:[%s3 + $0x254] sm:$0xf]
        %v4801 = vld [vmem:[%s3 + $0x258] sm:$0xf]
        %v4802 = vld [vmem:[%s3 + $0x25c] sm:$0xf]
        %v4803 = vld [vmem:[%s3 + $0x260] sm:$0xf]
        %v4804 = vld [vmem:[%s3 + $0x264] sm:$0xf]
        %v4805 = vld [vmem:[%s3 + $0x268] sm:$0xf]
        %v4806 = vld [vmem:[%s3 + $0x26c] sm:$0xf]
        %v4807 = vld [vmem:[%s3 + $0x270] sm:$0xf]
        %v4808 = vld [vmem:[%s3 + $0x274] sm:$0xf]
        %v4809 = vld [vmem:[%s3 + $0x278] sm:$0xf]
        %v4810 = vld [vmem:[%s3 + $0x27c] sm:$0xf]
        %v4811 = vld [vmem:[%s4] sm:$0x1]
        %v4813 = vlaneseq
        %v4814 = vshrl.u32 %v4813, 7
        %v4815 = vsub.s32 0, %v4814
        %v4816 = vrot.slane %v4811, %v4815
        %v4978 = vunpack.c.l.b16 %v4651
        %v4979 = vunpack.c.l.b16 %v4652
        %v4980 = vunpack.c.l.b16 %v4653
        %v4981 = vunpack.c.l.b16 %v4654
        %v4982 = vunpack.c.l.b16 %v4655
        %v4983 = vunpack.c.l.b16 %v4656
        %v4984 = vunpack.c.l.b16 %v4657
        %v4985 = vunpack.c.l.b16 %v4658
        %v4986 = vunpack.c.l.b16 %v4659
        %v4987 = vunpack.c.l.b16 %v4660
        %v4988 = vunpack.c.l.b16 %v4661
        %v4989 = vunpack.c.l.b16 %v4662
        %v4990 = vunpack.c.l.b16 %v4663
        %v4991 = vunpack.c.l.b16 %v4664
        %v4992 = vunpack.c.l.b16 %v4665
        %v4993 = vunpack.c.l.b16 %v4666
        %v4994 = vunpack.c.l.b16 %v4667
        %v4995 = vunpack.c.l.b16 %v4668
        %v4996 = vunpack.c.l.b16 %v4669
        %v4997 = vunpack.c.l.b16 %v4670
        %v4998 = vunpack.c.l.b16 %v4671
        %v4999 = vunpack.c.l.b16 %v4672
        %v5000 = vunpack.c.l.b16 %v4673
        %v5001 = vunpack.c.l.b16 %v4674
        %v5002 = vunpack.c.l.b16 %v4675
        %v5003 = vunpack.c.l.b16 %v4676
        %v5004 = vunpack.c.l.b16 %v4677
        %v5005 = vunpack.c.l.b16 %v4678
        %v5006 = vunpack.c.l.b16 %v4679
        %v5007 = vunpack.c.l.b16 %v4680
        %v5008 = vunpack.c.l.b16 %v4681
        %v5009 = vunpack.c.l.b16 %v4682
        %v5010 = vunpack.c.l.b16 %v4683
        %v5011 = vunpack.c.l.b16 %v4684
        %v5012 = vunpack.c.l.b16 %v4685
        %v5013 = vunpack.c.l.b16 %v4686
        %v5014 = vunpack.c.l.b16 %v4687
        %v5015 = vunpack.c.l.b16 %v4688
        %v5016 = vunpack.c.l.b16 %v4689
        %v5017 = vunpack.c.l.b16 %v4690
        %v5018 = vunpack.c.l.b16 %v4691
        %v5019 = vunpack.c.l.b16 %v4692
        %v5020 = vunpack.c.l.b16 %v4693
        %v5021 = vunpack.c.l.b16 %v4694
        %v5022 = vunpack.c.l.b16 %v4695
        %v5023 = vunpack.c.l.b16 %v4696
        %v5024 = vunpack.c.l.b16 %v4697
        %v5025 = vunpack.c.l.b16 %v4698
        %v5026 = vunpack.c.l.b16 %v4699
        %v5027 = vunpack.c.l.b16 %v4700
        %v5028 = vunpack.c.l.b16 %v4701
        %v5029 = vunpack.c.l.b16 %v4702
        %v5030 = vunpack.c.l.b16 %v4703
        %v5031 = vunpack.c.l.b16 %v4704
        %v5032 = vunpack.c.l.b16 %v4705
        %v5033 = vunpack.c.l.b16 %v4706
        %v5034 = vunpack.c.l.b16 %v4707
        %v5035 = vunpack.c.l.b16 %v4708
        %v5036 = vunpack.c.l.b16 %v4709
        %v5037 = vunpack.c.l.b16 %v4710
        %v5038 = vunpack.c.l.b16 %v4711
        %v5039 = vunpack.c.l.b16 %v4712
        %v5040 = vunpack.c.l.b16 %v4713
        %v5041 = vunpack.c.l.b16 %v4714
        %v5042 = vunpack.c.l.b16 %v4715
        %v5043 = vunpack.c.l.b16 %v4716
        %v5044 = vunpack.c.l.b16 %v4717
        %v5045 = vunpack.c.l.b16 %v4718
        %v5046 = vunpack.c.l.b16 %v4719
        %v5047 = vunpack.c.l.b16 %v4720
        %v5048 = vunpack.c.l.b16 %v4721
        %v5049 = vunpack.c.l.b16 %v4722
        %v5050 = vunpack.c.l.b16 %v4723
        %v5051 = vunpack.c.l.b16 %v4724
        %v5052 = vunpack.c.l.b16 %v4725
        %v5053 = vunpack.c.l.b16 %v4726
        %v5054 = vunpack.c.l.b16 %v4727
        %v5055 = vunpack.c.l.b16 %v4728
        %v5056 = vunpack.c.l.b16 %v4729
        %v5057 = vunpack.c.l.b16 %v4730
        %v5058 = vunpack.c.l.b16 %v4731
        %v5059 = vunpack.c.l.b16 %v4732
        %v5060 = vunpack.c.l.b16 %v4733
        %v5061 = vunpack.c.l.b16 %v4734
        %v5062 = vunpack.c.l.b16 %v4735
        %v5063 = vunpack.c.l.b16 %v4736
        %v5064 = vunpack.c.l.b16 %v4737
        %v5065 = vunpack.c.l.b16 %v4738
        %v5066 = vunpack.c.l.b16 %v4739
        %v5067 = vunpack.c.l.b16 %v4740
        %v5068 = vunpack.c.l.b16 %v4741
        %v5069 = vunpack.c.l.b16 %v4742
        %v5070 = vunpack.c.l.b16 %v4743
        %v5071 = vunpack.c.l.b16 %v4744
        %v5072 = vunpack.c.l.b16 %v4745
        %v5073 = vunpack.c.l.b16 %v4746
        %v5074 = vunpack.c.l.b16 %v4747
        %v5075 = vunpack.c.l.b16 %v4748
        %v5076 = vunpack.c.l.b16 %v4749
        %v5077 = vunpack.c.l.b16 %v4750
        %v5078 = vunpack.c.l.b16 %v4751
        %v5079 = vunpack.c.l.b16 %v4752
        %v5080 = vunpack.c.l.b16 %v4753
        %v5081 = vunpack.c.l.b16 %v4754
        %v5082 = vunpack.c.l.b16 %v4755
        %v5083 = vunpack.c.l.b16 %v4756
        %v5084 = vunpack.c.l.b16 %v4757
        %v5085 = vunpack.c.l.b16 %v4758
        %v5086 = vunpack.c.l.b16 %v4759
        %v5087 = vunpack.c.l.b16 %v4760
        %v5088 = vunpack.c.l.b16 %v4761
        %v5089 = vunpack.c.l.b16 %v4762
        %v5090 = vunpack.c.l.b16 %v4763
        %v5091 = vunpack.c.l.b16 %v4764
        %v5092 = vunpack.c.l.b16 %v4765
        %v5093 = vunpack.c.l.b16 %v4766
        %v5094 = vunpack.c.l.b16 %v4767
        %v5095 = vunpack.c.l.b16 %v4768
        %v5096 = vunpack.c.l.b16 %v4769
        %v5097 = vunpack.c.l.b16 %v4770
        %v5098 = vunpack.c.l.b16 %v4771
        %v5099 = vunpack.c.l.b16 %v4772
        %v5100 = vunpack.c.l.b16 %v4773
        %v5101 = vunpack.c.l.b16 %v4774
        %v5102 = vunpack.c.l.b16 %v4775
        %v5103 = vunpack.c.l.b16 %v4776
        %v5104 = vunpack.c.l.b16 %v4777
        %v5105 = vunpack.c.l.b16 %v4778
        %v5106 = vunpack.c.l.b16 %v4779
        %v5107 = vunpack.c.l.b16 %v4780
        %v5108 = vunpack.c.l.b16 %v4781
        %v5109 = vunpack.c.l.b16 %v4782
        %v5110 = vunpack.c.l.b16 %v4783
        %v5111 = vunpack.c.l.b16 %v4784
        %v5112 = vunpack.c.l.b16 %v4785
        %v5113 = vunpack.c.l.b16 %v4786
        %v5114 = vunpack.c.l.b16 %v4787
        %v5115 = vunpack.c.l.b16 %v4788
        %v5116 = vunpack.c.l.b16 %v4789
        %v5117 = vunpack.c.l.b16 %v4790
        %v5118 = vunpack.c.l.b16 %v4791
        %v5119 = vunpack.c.l.b16 %v4792
        %v5120 = vunpack.c.l.b16 %v4793
        %v5121 = vunpack.c.l.b16 %v4794
        %v5122 = vunpack.c.l.b16 %v4795
        %v5123 = vunpack.c.l.b16 %v4796
        %v5124 = vunpack.c.l.b16 %v4797
        %v5125 = vunpack.c.l.b16 %v4798
        %v5126 = vunpack.c.l.b16 %v4799
        %v5127 = vunpack.c.l.b16 %v4800
        %v5128 = vunpack.c.l.b16 %v4801
        %v5129 = vunpack.c.l.b16 %v4802
        %v5130 = vunpack.c.l.b16 %v4803
        %v5131 = vunpack.c.l.b16 %v4804
        %v5132 = vunpack.c.l.b16 %v4805
        %v5133 = vunpack.c.l.b16 %v4806
        %v5134 = vunpack.c.l.b16 %v4807
        %v5135 = vunpack.c.l.b16 %v4808
        %v5136 = vunpack.c.l.b16 %v4809
        %v5137 = vunpack.c.l.b16 %v4810
        %v5138 = vpack.c.b16 %v4979, %v4978
        %v5139 = vpack.c.b16 %v4981, %v4980
        %v5140 = vpack.c.b16 %v4983, %v4982
        %v5141 = vpack.c.b16 %v4985, %v4984
        %v5142 = vpack.c.b16 %v4987, %v4986
        %v5143 = vpack.c.b16 %v4989, %v4988
        %v5144 = vpack.c.b16 %v4991, %v4990
        %v5145 = vpack.c.b16 %v4993, %v4992
        %v5146 = vpack.c.b16 %v4995, %v4994
        %v5147 = vpack.c.b16 %v4997, %v4996
        %v5148 = vpack.c.b16 %v4999, %v4998
        %v5149 = vpack.c.b16 %v5001, %v5000
        %v5150 = vpack.c.b16 %v5003, %v5002
        %v5151 = vpack.c.b16 %v5005, %v5004
        %v5152 = vpack.c.b16 %v5007, %v5006
        %v5153 = vpack.c.b16 %v5009, %v5008
        %v5154 = vpack.c.b16 %v5011, %v5010
        %v5155 = vpack.c.b16 %v5013, %v5012
        %v5156 = vpack.c.b16 %v5015, %v5014
        %v5157 = vpack.c.b16 %v5017, %v5016
        %v5158 = vpack.c.b16 %v5019, %v5018
        %v5159 = vpack.c.b16 %v5021, %v5020
        %v5160 = vpack.c.b16 %v5023, %v5022
        %v5161 = vpack.c.b16 %v5025, %v5024
        %v5162 = vpack.c.b16 %v5027, %v5026
        %v5163 = vpack.c.b16 %v5029, %v5028
        %v5164 = vpack.c.b16 %v5031, %v5030
        %v5165 = vpack.c.b16 %v5033, %v5032
        %v5166 = vpack.c.b16 %v5035, %v5034
        %v5167 = vpack.c.b16 %v5037, %v5036
        %v5168 = vpack.c.b16 %v5039, %v5038
        %v5169 = vpack.c.b16 %v5041, %v5040
        %v5170 = vpack.c.b16 %v5043, %v5042
        %v5171 = vpack.c.b16 %v5045, %v5044
        %v5172 = vpack.c.b16 %v5047, %v5046
        %v5173 = vpack.c.b16 %v5049, %v5048
        %v5174 = vpack.c.b16 %v5051, %v5050
        %v5175 = vpack.c.b16 %v5053, %v5052
        %v5176 = vpack.c.b16 %v5055, %v5054
        %v5177 = vpack.c.b16 %v5057, %v5056
        %v5178 = vpack.c.b16 %v5059, %v5058
        %v5179 = vpack.c.b16 %v5061, %v5060
        %v5180 = vpack.c.b16 %v5063, %v5062
        %v5181 = vpack.c.b16 %v5065, %v5064
        %v5182 = vpack.c.b16 %v5067, %v5066
        %v5183 = vpack.c.b16 %v5069, %v5068
        %v5184 = vpack.c.b16 %v5071, %v5070
        %v5185 = vpack.c.b16 %v5073, %v5072
        %v5186 = vpack.c.b16 %v5075, %v5074
        %v5187 = vpack.c.b16 %v5077, %v5076
        %v5188 = vpack.c.b16 %v5079, %v5078
        %v5189 = vpack.c.b16 %v5081, %v5080
        %v5190 = vpack.c.b16 %v5083, %v5082
        %v5191 = vpack.c.b16 %v5085, %v5084
        %v5192 = vpack.c.b16 %v5087, %v5086
        %v5193 = vpack.c.b16 %v5089, %v5088
        %v5194 = vpack.c.b16 %v5091, %v5090
        %v5195 = vpack.c.b16 %v5093, %v5092
        %v5196 = vpack.c.b16 %v5095, %v5094
        %v5197 = vpack.c.b16 %v5097, %v5096
        %v5198 = vpack.c.b16 %v5099, %v5098
        %v5199 = vpack.c.b16 %v5101, %v5100
        %v5200 = vpack.c.b16 %v5103, %v5102
        %v5201 = vpack.c.b16 %v5105, %v5104
        %v5202 = vpack.c.b16 %v5107, %v5106
        %v5203 = vpack.c.b16 %v5109, %v5108
        %v5204 = vpack.c.b16 %v5111, %v5110
        %v5205 = vpack.c.b16 %v5113, %v5112
        %v5206 = vpack.c.b16 %v5115, %v5114
        %v5207 = vpack.c.b16 %v5117, %v5116
        %v5208 = vpack.c.b16 %v5119, %v5118
        %v5209 = vpack.c.b16 %v5121, %v5120
        %v5210 = vpack.c.b16 %v5123, %v5122
        %v5211 = vpack.c.b16 %v5125, %v5124
        %v5212 = vpack.c.b16 %v5127, %v5126
        %v5213 = vpack.c.b16 %v5129, %v5128
        %v5214 = vpack.c.b16 %v5131, %v5130
        %v5215 = vpack.c.b16 %v5133, %v5132
        %v5216 = vpack.c.b16 %v5135, %v5134
        %v5217 = vpack.c.b16 %v5137, %v5136
        %5298 = vmatprep.subr.bf16.mxu0 0
        %5299 = vmatpush1.bf16.msra.mxu0 %v5138
        %5300 = vmatprep.subr.bf16.mxu0 0
        %5301 = vmatpush1.bf16.msra.mxu0 %v5139
        %5302 = vmatprep.subr.bf16.mxu0 0
        %5303 = vmatpush1.bf16.msra.mxu0 %v5140
        %5304 = vmatprep.subr.bf16.mxu0 0
        %5305 = vmatpush1.bf16.msra.mxu0 %v5141
        %5306 = vmatprep.subr.bf16.mxu0 0
        %5307 = vmatpush1.bf16.msra.mxu0 %v5142
        %5308 = vmatprep.subr.bf16.mxu0 0
        %5309 = vmatpush1.bf16.msra.mxu0 %v5143
        %5310 = vmatprep.subr.bf16.mxu0 0
        %5311 = vmatpush1.bf16.msra.mxu0 %v5144
        %5312 = vmatprep.subr.bf16.mxu0 0
        %5313 = vmatpush1.bf16.msra.mxu0 %v5145
        %5314 = vmatprep.subr.bf16.mxu0 0
        %5315 = vmatpush1.bf16.msra.mxu0 %v5146
        %5316 = vmatprep.subr.bf16.mxu0 0
        %5317 = vmatpush1.bf16.msra.mxu0 %v5147
        %5318 = vmatprep.subr.bf16.mxu0 0
        %5319 = vmatpush1.bf16.msra.mxu0 %v5148
        %5320 = vmatprep.subr.bf16.mxu0 0
        %5321 = vmatpush1.bf16.msra.mxu0 %v5149
        %5322 = vmatprep.subr.bf16.mxu0 0
        %5323 = vmatpush1.bf16.msra.mxu0 %v5150
        %5324 = vmatprep.subr.bf16.mxu0 0
        %5325 = vmatpush1.bf16.msra.mxu0 %v5151
        %5326 = vmatprep.subr.bf16.mxu0 0
        %5327 = vmatpush1.bf16.msra.mxu0 %v5152
        %5328 = vmatprep.subr.bf16.mxu0 0
        %5329 = vmatpush1.bf16.msra.mxu0 %v5153
        %5330 = vmatprep.mubr.bf16.mxu0 %v4465
        %5331 = vmatmul.mubr.bf16.gmra.mrb[0].mxu0 %v4401
        %v5332 = vpop.f32.mrb[0].mxu0
        %v5333 = vadd.f32 %v4816, %v5332
        %v5334 = vpop.f32.mrb[0].mxu0
        %v5335 = vpop.f32.mrb[0].mxu0
        %v5336 = vadd.f32 %v4816, %v5335
        %v5337 = vpop.f32.mrb[0].mxu0
        %5338 = vmatprep.mubr.bf16.mxu0 %v4466
        %5339 = vmatmul.mubr.bf16.gmra.mrb[0].mxu0 %v4402
        %v5340 = vpop.f32.mrb[0].mxu0
        %v5341 = vadd.f32 %v4816, %v5340
        %v5342 = vpop.f32.mrb[0].mxu0
        %v5343 = vpop.f32.mrb[0].mxu0
        %v5344 = vadd.f32 %v4816, %v5343
        %v5345 = vpop.f32.mrb[0].mxu0
        %5346 = vmatprep.mubr.bf16.mxu0 %v4467
        %5347 = vmatmul.mubr.bf16.gmra.mrb[0].mxu0 %v4403
        %v5348 = vpop.f32.mrb[0].mxu0
        %v5349 = vadd.f32 %v4816, %v5348
        %v5350 = vpop.f32.mrb[0].mxu0
        %v5351 = vpop.f32.mrb[0].mxu0
        %v5352 = vadd.f32 %v4816, %v5351
        %v5353 = vpop.f32.mrb[0].mxu0
        %5354 = vmatprep.mubr.bf16.mxu0 %v4468
        %5355 = vmatmul.mubr.bf16.gmra.mrb[0].mxu0 %v4404
        %v5356 = vpop.f32.mrb[0].mxu0
        %v5357 = vadd.f32 %v4816, %v5356
        %v5358 = vpop.f32.mrb[0].mxu0
        %v5359 = vpop.f32.mrb[0].mxu0
        %v5360 = vadd.f32 %v4816, %v5359
        %v5361 = vpop.f32.mrb[0].mxu0
        %5362 = vmatprep.mubr.bf16.mxu0 %v4469
        %5363 = vmatmul.mubr.bf16.gmra.mrb[0].mxu0 %v4405
        %v5364 = vpop.f32.mrb[0].mxu0
        %v5365 = vadd.f32 %v4816, %v5364
        %v5366 = vpop.f32.mrb[0].mxu0
        %v5367 = vpop.f32.mrb[0].mxu0
        %v5368 = vadd.f32 %v4816, %v5367
        %v5369 = vpop.f32.mrb[0].mxu0
        %5370 = vmatprep.mubr.bf16.mxu0 %v4470
        %5371 = vmatmul.mubr.bf16.gmra.mrb[0].mxu0 %v4406
        %v5372 = vpop.f32.mrb[0].mxu0
        %v5373 = vadd.f32 %v4816, %v5372
        %v5374 = vpop.f32.mrb[0].mxu0
        %v5375 = vpop.f32.mrb[0].mxu0
        %v5376 = vadd.f32 %v4816, %v5375
        %v5377 = vpop.f32.mrb[0].mxu0
        %5378 = vmatprep.mubr.bf16.mxu0 %v4471
        %5379 = vmatmul.mubr.bf16.gmra.mrb[0].mxu0 %v4407
        %v5380 = vpop.f32.mrb[0].mxu0
        %v5381 = vadd.f32 %v4816, %v5380
        %v5382 = vpop.f32.mrb[0].mxu0
        %v5383 = vpop.f32.mrb[0].mxu0
        %v5384 = vadd.f32 %v4816, %v5383
        %v5385 = vpop.f32.mrb[0].mxu0
        %5386 = vmatprep.mubr.bf16.mxu0 %v4472
        %5387 = vmatmul.mubr.bf16.gmra.mrb[0].mxu0 %v4408
        %v5388 = vpop.f32.mrb[0].mxu0
        %v5389 = vadd.f32 %v4816, %v5388
        %v5390 = vpop.f32.mrb[0].mxu0
        %v5391 = vpop.f32.mrb[0].mxu0
        %v5392 = vadd.f32 %v4816, %v5391
        %v5393 = vpop.f32.mrb[0].mxu0
        %5394 = vmatprep.mubr.bf16.mxu0 %v4473
        %5395 = vmatmul.mubr.bf16.gmra.mrb[0].mxu0 %v4409
        %v5396 = vpop.f32.mrb[0].mxu0
        %v5397 = vadd.f32 %v4816, %v5396
        %v5398 = vpop.f32.mrb[0].mxu0
        %v5399 = vpop.f32.mrb[0].mxu0
        %v5400 = vadd.f32 %v4816, %v5399
        %v5401 = vpop.f32.mrb[0].mxu0
        %5402 = vmatprep.mubr.bf16.mxu0 %v4474
        %5403 = vmatmul.mubr.bf16.gmra.mrb[0].mxu0 %v4410
        %v5404 = vpop.f32.mrb[0].mxu0
        %v5405 = vadd.f32 %v4816, %v5404
        %v5406 = vpop.f32.mrb[0].mxu0
        %v5407 = vpop.f32.mrb[0].mxu0
        %v5408 = vadd.f32 %v4816, %v5407
        %v5409 = vpop.f32.mrb[0].mxu0
        %5410 = vmatprep.mubr.bf16.mxu0 %v4475
        %5411 = vmatmul.mubr.bf16.gmra.mrb[0].mxu0 %v4411
        %v5412 = vpop.f32.mrb[0].mxu0
        %v5413 = vadd.f32 %v4816, %v5412
        %v5414 = vpop.f32.mrb[0].mxu0
        %v5415 = vpop.f32.mrb[0].mxu0
        %v5416 = vadd.f32 %v4816, %v5415
        %v5417 = vpop.f32.mrb[0].mxu0
        %5418 = vmatprep.mubr.bf16.mxu0 %v4476
        %5419 = vmatmul.mubr.bf16.gmra.mrb[0].mxu0 %v4412
        %v5420 = vpop.f32.mrb[0].mxu0
        %v5421 = vadd.f32 %v4816, %v5420
        %v5422 = vpop.f32.mrb[0].mxu0
        %v5423 = vpop.f32.mrb[0].mxu0
        %v5424 = vadd.f32 %v4816, %v5423
        %v5425 = vpop.f32.mrb[0].mxu0
        %5426 = vmatprep.mubr.bf16.mxu0 %v4477
        %5427 = vmatmul.mubr.bf16.gmra.mrb[0].mxu0 %v4413
        %v5428 = vpop.f32.mrb[0].mxu0
        %v5429 = vadd.f32 %v4816, %v5428
        %v5430 = vpop.f32.mrb[0].mxu0
        %v5431 = vpop.f32.mrb[0].mxu0
        %v5432 = vadd.f32 %v4816, %v5431
        %v5433 = vpop.f32.mrb[0].mxu0
        %5434 = vmatprep.mubr.bf16.mxu0 %v4478
        %5435 = vmatmul.mubr.bf16.gmra.mrb[0].mxu0 %v4414
        %v5436 = vpop.f32.mrb[0].mxu0
        %v5437 = vadd.f32 %v4816, %v5436
        %v5438 = vpop.f32.mrb[0].mxu0
        %v5439 = vpop.f32.mrb[0].mxu0
        %v5440 = vadd.f32 %v4816, %v5439
        %v5441 = vpop.f32.mrb[0].mxu0
        %5442 = vmatprep.mubr.bf16.mxu0 %v4479
        %5443 = vmatmul.mubr.bf16.gmra.mrb[0].mxu0 %v4415
        %v5444 = vpop.f32.mrb[0].mxu0
        %v5445 = vadd.f32 %v4816, %v5444
        %v5446 = vpop.f32.mrb[0].mxu0
        %v5447 = vpop.f32.mrb[0].mxu0
        %v5448 = vadd.f32 %v4816, %v5447
        %v5449 = vpop.f32.mrb[0].mxu0
        %5450 = vmatprep.mubr.bf16.mxu0 %v4480
        %5451 = vmatmul.mubr.bf16.gmra.mrb[0].mxu0 %v4416
        %v5452 = vpop.f32.mrb[0].mxu0
        %v5453 = vadd.f32 %v4816, %v5452
        %v5454 = vpop.f32.mrb[0].mxu0
        %v5455 = vpop.f32.mrb[0].mxu0
        %v5456 = vadd.f32 %v4816, %v5455
        %v5457 = vpop.f32.mrb[0].mxu0
        %5458 = vdwg.mxu0
        %5459 = vmatprep.subr.bf16.mxu0 0
        %5460 = vmatpush1.bf16.msra.mxu0 %v5154
        %5461 = vmatprep.subr.bf16.mxu0 0
        %5462 = vmatpush1.bf16.msra.mxu0 %v5155
        %5463 = vmatprep.subr.bf16.mxu0 0
        %5464 = vmatpush1.bf16.msra.mxu0 %v5156
        %5465 = vmatprep.subr.bf16.mxu0 0
        %5466 = vmatpush1.bf16.msra.mxu0 %v5157
        %5467 = vmatprep.subr.bf16.mxu0 0
        %5468 = vmatpush1.bf16.msra.mxu0 %v5158
        %5469 = vmatprep.subr.bf16.mxu0 0
        %5470 = vmatpush1.bf16.msra.mxu0 %v5159
        %5471 = vmatprep.subr.bf16.mxu0 0
        %5472 = vmatpush1.bf16.msra.mxu0 %v5160
        %5473 = vmatprep.subr.bf16.mxu0 0
        %5474 = vmatpush1.bf16.msra.mxu0 %v5161
        %5475 = vmatprep.subr.bf16.mxu0 0
        %5476 = vmatpush1.bf16.msra.mxu0 %v5162
        %5477 = vmatprep.subr.bf16.mxu0 0
        %5478 = vmatpush1.bf16.msra.mxu0 %v5163
        %5479 = vmatprep.subr.bf16.mxu0 0
        %5480 = vmatpush1.bf16.msra.mxu0 %v5164
        %5481 = vmatprep.subr.bf16.mxu0 0
        %5482 = vmatpush1.bf16.msra.mxu0 %v5165
        %5483 = vmatprep.subr.bf16.mxu0 0
        %5484 = vmatpush1.bf16.msra.mxu0 %v5166
        %5485 = vmatprep.subr.bf16.mxu0 0
        %5486 = vmatpush1.bf16.msra.mxu0 %v5167
        %5487 = vmatprep.subr.bf16.mxu0 0
        %5488 = vmatpush1.bf16.msra.mxu0 %v5168
        %5489 = vmatprep.subr.bf16.mxu0 0
        %5490 = vmatpush1.bf16.msra.mxu0 %v5169
        %5491 = vmatprep.mubr.bf16.mxu0 %v4402
        %5492 = vmatmul.mubr.bf16.gmra.mrb[0].mxu0 %v4529
        %v5493 = vpop.f32.mrb[0].mxu0
        %v5494 = vadd.f32 %v5333, %v5493
        %v5495 = vpop.f32.mrb[0].mxu0
        %v5496 = vpop.f32.mrb[0].mxu0
        %v5497 = vadd.f32 %v5336, %v5496
        %v5498 = vpop.f32.mrb[0].mxu0
        %5499 = vmatprep.mubr.bf16.mxu0 %v4403
        %5500 = vmatmul.mubr.bf16.gmra.mrb[0].mxu0 %v4530
        %v5501 = vpop.f32.mrb[0].mxu0
        %v5502 = vadd.f32 %v5341, %v5501
        %v5503 = vpop.f32.mrb[0].mxu0
        %v5504 = vpop.f32.mrb[0].mxu0
        %v5505 = vadd.f32 %v5344, %v5504
        %v5506 = vpop.f32.mrb[0].mxu0
        %5507 = vmatprep.mubr.bf16.mxu0 %v4404
        %5508 = vmatmul.mubr.bf16.gmra.mrb[0].mxu0 %v4531
        %v5509 = vpop.f32.mrb[0].mxu0
        %v5510 = vadd.f32 %v5349, %v5509
        %v5511 = vpop.f32.mrb[0].mxu0
        %v5512 = vpop.f32.mrb[0].mxu0
        %v5513 = vadd.f32 %v5352, %v5512
        %v5514 = vpop.f32.mrb[0].mxu0
        %5515 = vmatprep.mubr.bf16.mxu0 %v4405
        %5516 = vmatmul.mubr.bf16.gmra.mrb[0].mxu0 %v4532
        %v5517 = vpop.f32.mrb[0].mxu0
        %v5518 = vadd.f32 %v5357, %v5517
        %v5519 = vpop.f32.mrb[0].mxu0
        %v5520 = vpop.f32.mrb[0].mxu0
        %v5521 = vadd.f32 %v5360, %v5520
        %v5522 = vpop.f32.mrb[0].mxu0
        %5523 = vmatprep.mubr.bf16.mxu0 %v4406
        %5524 = vmatmul.mubr.bf16.gmra.mrb[0].mxu0 %v4533
        %v5525 = vpop.f32.mrb[0].mxu0
        %v5526 = vadd.f32 %v5365, %v5525
        %v5527 = vpop.f32.mrb[0].mxu0
        %v5528 = vpop.f32.mrb[0].mxu0
        %v5529 = vadd.f32 %v5368, %v5528
        %v5530 = vpop.f32.mrb[0].mxu0
        %5531 = vmatprep.mubr.bf16.mxu0 %v4407
        %5532 = vmatmul.mubr.bf16.gmra.mrb[0].mxu0 %v4534
        %v5533 = vpop.f32.mrb[0].mxu0
        %v5534 = vadd.f32 %v5373, %v5533
        %v5535 = vpop.f32.mrb[0].mxu0
        %v5536 = vpop.f32.mrb[0].mxu0
        %v5537 = vadd.f32 %v5376, %v5536
        %v5538 = vpop.f32.mrb[0].mxu0
        %5539 = vmatprep.mubr.bf16.mxu0 %v4408
        %5540 = vmatmul.mubr.bf16.gmra.mrb[0].mxu0 %v4535
        %v5541 = vpop.f32.mrb[0].mxu0
        %v5542 = vadd.f32 %v5381, %v5541
        %v5543 = vpop.f32.mrb[0].mxu0
        %v5544 = vpop.f32.mrb[0].mxu0
        %v5545 = vadd.f32 %v5384, %v5544
        %v5546 = vpop.f32.mrb[0].mxu0
        %5547 = vmatprep.mubr.bf16.mxu0 %v4409
        %5548 = vmatmul.mubr.bf16.gmra.mrb[0].mxu0 %v4536
        %v5549 = vpop.f32.mrb[0].mxu0
        %v5550 = vadd.f32 %v5389, %v5549
        %v5551 = vpop.f32.mrb[0].mxu0
        %v5552 = vpop.f32.mrb[0].mxu0
        %v5553 = vadd.f32 %v5392, %v5552
        %v5554 = vpop.f32.mrb[0].mxu0
        %5555 = vmatprep.mubr.bf16.mxu0 %v4410
        %5556 = vmatmul.mubr.bf16.gmra.mrb[0].mxu0 %v4537
        %v5557 = vpop.f32.mrb[0].mxu0
        %v5558 = vadd.f32 %v5397, %v5557
        %v5559 = vpop.f32.mrb[0].mxu0
        %v5560 = vpop.f32.mrb[0].mxu0
        %v5561 = vadd.f32 %v5400, %v5560
        %v5562 = vpop.f32.mrb[0].mxu0
        %5563 = vmatprep.mubr.bf16.mxu0 %v4411
        %5564 = vmatmul.mubr.bf16.gmra.mrb[0].mxu0 %v4538
        %v5565 = vpop.f32.mrb[0].mxu0
        %v5566 = vadd.f32 %v5405, %v5565
        %v5567 = vpop.f32.mrb[0].mxu0
        %v5568 = vpop.f32.mrb[0].mxu0
        %v5569 = vadd.f32 %v5408, %v5568
        %v5570 = vpop.f32.mrb[0].mxu0
        %5571 = vmatprep.mubr.bf16.mxu0 %v4412
        %5572 = vmatmul.mubr.bf16.gmra.mrb[0].mxu0 %v4539
        %v5573 = vpop.f32.mrb[0].mxu0
        %v5574 = vadd.f32 %v5413, %v5573
        %v5575 = vpop.f32.mrb[0].mxu0
        %v5576 = vpop.f32.mrb[0].mxu0
        %v5577 = vadd.f32 %v5416, %v5576
        %v5578 = vpop.f32.mrb[0].mxu0
        %5579 = vmatprep.mubr.bf16.mxu0 %v4413
        %5580 = vmatmul.mubr.bf16.gmra.mrb[0].mxu0 %v4540
        %v5581 = vpop.f32.mrb[0].mxu0
        %v5582 = vadd.f32 %v5421, %v5581
        %v5583 = vpop.f32.mrb[0].mxu0
        %v5584 = vpop.f32.mrb[0].mxu0
        %v5585 = vadd.f32 %v5424, %v5584
        %v5586 = vpop.f32.mrb[0].mxu0
        %5587 = vmatprep.mubr.bf16.mxu0 %v4414
        %5588 = vmatmul.mubr.bf16.gmra.mrb[0].mxu0 %v4541
        %v5589 = vpop.f32.mrb[0].mxu0
        %v5590 = vadd.f32 %v5429, %v5589
        %v5591 = vpop.f32.mrb[0].mxu0
        %v5592 = vpop.f32.mrb[0].mxu0
        %v5593 = vadd.f32 %v5432, %v5592
        %v5594 = vpop.f32.mrb[0].mxu0
        %5595 = vmatprep.mubr.bf16.mxu0 %v4415
        %5596 = vmatmul.mubr.bf16.gmra.mrb[0].mxu0 %v4542
        %v5597 = vpop.f32.mrb[0].mxu0
        %v5598 = vadd.f32 %v5437, %v5597
        %v5599 = vpop.f32.mrb[0].mxu0
        %v5600 = vpop.f32.mrb[0].mxu0
        %v5601 = vadd.f32 %v5440, %v5600
        %v5602 = vpop.f32.mrb[0].mxu0
        %5603 = vmatprep.mubr.bf16.mxu0 %v4416
        %5604 = vmatmul.mubr.bf16.gmra.mrb[0].mxu0 %v4543
        %v5605 = vpop.f32.mrb[0].mxu0
        %v5606 = vadd.f32 %v5445, %v5605
        %v5607 = vpop.f32.mrb[0].mxu0
        %v5608 = vpop.f32.mrb[0].mxu0
        %v5609 = vadd.f32 %v5448, %v5608
        %v5610 = vpop.f32.mrb[0].mxu0
        %5611 = vmatprep.mubr.bf16.mxu0 %v4564
        %5612 = vmatmul.mubr.bf16.gmra.mrb[0].mxu0 %v4544
        %v5613 = vpop.f32.mrb[0].mxu0
        %v5614 = vadd.f32 %v5453, %v5613
        %v5615 = vpop.f32.mrb[0].mxu0
        %v5616 = vpop.f32.mrb[0].mxu0
        %v5617 = vadd.f32 %v5456, %v5616
        %v5618 = vpop.f32.mrb[0].mxu0
        %5619 = vdwg.mxu0
        %5620 = vmatprep.subr.bf16.mxu0 0
        %5621 = vmatpush1.bf16.msra.mxu0 %v5170
        %5622 = vmatprep.subr.bf16.mxu0 0
        %5623 = vmatpush1.bf16.msra.mxu0 %v5171
        %5624 = vmatprep.subr.bf16.mxu0 0
        %5625 = vmatpush1.bf16.msra.mxu0 %v5172
        %5626 = vmatprep.subr.bf16.mxu0 0
        %5627 = vmatpush1.bf16.msra.mxu0 %v5173
        %5628 = vmatprep.subr.bf16.mxu0 0
        %5629 = vmatpush1.bf16.msra.mxu0 %v5174
        %5630 = vmatprep.subr.bf16.mxu0 0
        %5631 = vmatpush1.bf16.msra.mxu0 %v5175
        %5632 = vmatprep.subr.bf16.mxu0 0
        %5633 = vmatpush1.bf16.msra.mxu0 %v5176
        %5634 = vmatprep.subr.bf16.mxu0 0
        %5635 = vmatpush1.bf16.msra.mxu0 %v5177
        %5636 = vmatprep.subr.bf16.mxu0 0
        %5637 = vmatpush1.bf16.msra.mxu0 %v5178
        %5638 = vmatprep.subr.bf16.mxu0 0
        %5639 = vmatpush1.bf16.msra.mxu0 %v5179
        %5640 = vmatprep.subr.bf16.mxu0 0
        %5641 = vmatpush1.bf16.msra.mxu0 %v5180
        %5642 = vmatprep.subr.bf16.mxu0 0
        %5643 = vmatpush1.bf16.msra.mxu0 %v5181
        %5644 = vmatprep.subr.bf16.mxu0 0
        %5645 = vmatpush1.bf16.msra.mxu0 %v5182
        %5646 = vmatprep.subr.bf16.mxu0 0
        %5647 = vmatpush1.bf16.msra.mxu0 %v5183
        %5648 = vmatprep.subr.bf16.mxu0 0
        %5649 = vmatpush1.bf16.msra.mxu0 %v5184
        %5650 = vmatprep.subr.bf16.mxu0 0
        %5651 = vmatpush1.bf16.msra.mxu0 %v5185
        %5652 = vmatprep.mubr.bf16.mxu0 %v4530
        %5653 = vmatmul.mubr.bf16.gmra.mrb[0].mxu0 %v4466
        %v5654 = vpop.f32.mrb[0].mxu0
        %v5655 = vadd.f32 %v5494, %v5654
        %v5656 = vpop.f32.mrb[0].mxu0
        %v5657 = vpop.f32.mrb[0].mxu0
        %v5658 = vadd.f32 %v5497, %v5657
        %v5659 = vpop.f32.mrb[0].mxu0
        %5660 = vmatprep.mubr.bf16.mxu0 %v4531
        %5661 = vmatmul.mubr.bf16.gmra.mrb[0].mxu0 %v4467
        %v5662 = vpop.f32.mrb[0].mxu0
        %v5663 = vadd.f32 %v5502, %v5662
        %v5664 = vpop.f32.mrb[0].mxu0
        %v5665 = vpop.f32.mrb[0].mxu0
        %v5666 = vadd.f32 %v5505, %v5665
        %v5667 = vpop.f32.mrb[0].mxu0
        %5668 = vmatprep.mubr.bf16.mxu0 %v4532
        %5669 = vmatmul.mubr.bf16.gmra.mrb[0].mxu0 %v4468
        %v5670 = vpop.f32.mrb[0].mxu0
        %v5671 = vadd.f32 %v5510, %v5670
        %v5672 = vpop.f32.mrb[0].mxu0
        %v5673 = vpop.f32.mrb[0].mxu0
        %v5674 = vadd.f32 %v5513, %v5673
        %v5675 = vpop.f32.mrb[0].mxu0
        %5676 = vmatprep.mubr.bf16.mxu0 %v4533
        %5677 = vmatmul.mubr.bf16.gmra.mrb[0].mxu0 %v4469
        %v5678 = vpop.f32.mrb[0].mxu0
        %v5679 = vadd.f32 %v5518, %v5678
        %v5680 = vpop.f32.mrb[0].mxu0
        %v5681 = vpop.f32.mrb[0].mxu0
        %v5682 = vadd.f32 %v5521, %v5681
        %v5683 = vpop.f32.mrb[0].mxu0
        %5684 = vmatprep.mubr.bf16.mxu0 %v4534
        %5685 = vmatmul.mubr.bf16.gmra.mrb[0].mxu0 %v4470
        %v5686 = vpop.f32.mrb[0].mxu0
        %v5687 = vadd.f32 %v5526, %v5686
        %v5688 = vpop.f32.mrb[0].mxu0
        %v5689 = vpop.f32.mrb[0].mxu0
        %v5690 = vadd.f32 %v5529, %v5689
        %v5691 = vpop.f32.mrb[0].mxu0
        %5692 = vmatprep.mubr.bf16.mxu0 %v4535
        %5693 = vmatmul.mubr.bf16.gmra.mrb[0].mxu0 %v4471
        %v5694 = vpop.f32.mrb[0].mxu0
        %v5695 = vadd.f32 %v5534, %v5694
        %v5696 = vpop.f32.mrb[0].mxu0
        %v5697 = vpop.f32.mrb[0].mxu0
        %v5698 = vadd.f32 %v5537, %v5697
        %v5699 = vpop.f32.mrb[0].mxu0
        %5700 = vmatprep.mubr.bf16.mxu0 %v4536
        %5701 = vmatmul.mubr.bf16.gmra.mrb[0].mxu0 %v4472
        %v5702 = vpop.f32.mrb[0].mxu0
        %v5703 = vadd.f32 %v5542, %v5702
        %v5704 = vpop.f32.mrb[0].mxu0
        %v5705 = vpop.f32.mrb[0].mxu0
        %v5706 = vadd.f32 %v5545, %v5705
        %v5707 = vpop.f32.mrb[0].mxu0
        %5708 = vmatprep.mubr.bf16.mxu0 %v4537
        %5709 = vmatmul.mubr.bf16.gmra.mrb[0].mxu0 %v4473
        %v5710 = vpop.f32.mrb[0].mxu0
        %v5711 = vadd.f32 %v5550, %v5710
        %v5712 = vpop.f32.mrb[0].mxu0
        %v5713 = vpop.f32.mrb[0].mxu0
        %v5714 = vadd.f32 %v5553, %v5713
        %v5715 = vpop.f32.mrb[0].mxu0
        %5716 = vmatprep.mubr.bf16.mxu0 %v4538
        %5717 = vmatmul.mubr.bf16.gmra.mrb[0].mxu0 %v4474
        %v5718 = vpop.f32.mrb[0].mxu0
        %v5719 = vadd.f32 %v5558, %v5718
        %v5720 = vpop.f32.mrb[0].mxu0
        %v5721 = vpop.f32.mrb[0].mxu0
        %v5722 = vadd.f32 %v5561, %v5721
        %v5723 = vpop.f32.mrb[0].mxu0
        %5724 = vmatprep.mubr.bf16.mxu0 %v4539
        %5725 = vmatmul.mubr.bf16.gmra.mrb[0].mxu0 %v4475
        %v5726 = vpop.f32.mrb[0].mxu0
        %v5727 = vadd.f32 %v5566, %v5726
        %v5728 = vpop.f32.mrb[0].mxu0
        %v5729 = vpop.f32.mrb[0].mxu0
        %v5730 = vadd.f32 %v5569, %v5729
        %v5731 = vpop.f32.mrb[0].mxu0
        %5732 = vmatprep.mubr.bf16.mxu0 %v4540
        %5733 = vmatmul.mubr.bf16.gmra.mrb[0].mxu0 %v4476
        %v5734 = vpop.f32.mrb[0].mxu0
        %v5735 = vadd.f32 %v5574, %v5734
        %v5736 = vpop.f32.mrb[0].mxu0
        %v5737 = vpop.f32.mrb[0].mxu0
        %v5738 = vadd.f32 %v5577, %v5737
        %v5739 = vpop.f32.mrb[0].mxu0
        %5740 = vmatprep.mubr.bf16.mxu0 %v4541
        %5741 = vmatmul.mubr.bf16.gmra.mrb[0].mxu0 %v4477
        %v5742 = vpop.f32.mrb[0].mxu0
        %v5743 = vadd.f32 %v5582, %v5742
        %v5744 = vpop.f32.mrb[0].mxu0
        %v5745 = vpop.f32.mrb[0].mxu0
        %v5746 = vadd.f32 %v5585, %v5745
        %v5747 = vpop.f32.mrb[0].mxu0
        %5748 = vmatprep.mubr.bf16.mxu0 %v4542
        %5749 = vmatmul.mubr.bf16.gmra.mrb[0].mxu0 %v4478
        %v5750 = vpop.f32.mrb[0].mxu0
        %v5751 = vadd.f32 %v5590, %v5750
        %v5752 = vpop.f32.mrb[0].mxu0
        %v5753 = vpop.f32.mrb[0].mxu0
        %v5754 = vadd.f32 %v5593, %v5753
        %v5755 = vpop.f32.mrb[0].mxu0
        %5756 = vmatprep.mubr.bf16.mxu0 %v4543
        %5757 = vmatmul.mubr.bf16.gmra.mrb[0].mxu0 %v4479
        %v5758 = vpop.f32.mrb[0].mxu0
        %v5759 = vadd.f32 %v5598, %v5758
        %v5760 = vpop.f32.mrb[0].mxu0
        %v5761 = vpop.f32.mrb[0].mxu0
        %v5762 = vadd.f32 %v5601, %v5761
        %v5763 = vpop.f32.mrb[0].mxu0
        %5764 = vmatprep.mubr.bf16.mxu0 %v4544
        %5765 = vmatmul.mubr.bf16.gmra.mrb[0].mxu0 %v4480
        %v5766 = vpop.f32.mrb[0].mxu0
        %v5767 = vadd.f32 %v5606, %v5766
        %v5768 = vpop.f32.mrb[0].mxu0
        %v5769 = vpop.f32.mrb[0].mxu0
        %v5770 = vadd.f32 %v5609, %v5769
        %v5771 = vpop.f32.mrb[0].mxu0
        %5772 = vmatprep.mubr.bf16.mxu0 %v4572
        %5773 = vmatmul.mubr.bf16.gmra.mrb[0].mxu0 %v4568
        %v5774 = vpop.f32.mrb[0].mxu0
        %v5775 = vadd.f32 %v5614, %v5774
        %v5776 = vpop.f32.mrb[0].mxu0
        %v5777 = vpop.f32.mrb[0].mxu0
        %v5778 = vadd.f32 %v5617, %v5777
        %v5779 = vpop.f32.mrb[0].mxu0
        %5780 = vdwg.mxu0
        %5781 = vmatprep.subr.bf16.mxu0 0
        %5782 = vmatpush1.bf16.msra.mxu0 %v5186
        %5783 = vmatprep.subr.bf16.mxu0 0
        %5784 = vmatpush1.bf16.msra.mxu0 %v5187
        %5785 = vmatprep.subr.bf16.mxu0 0
        %5786 = vmatpush1.bf16.msra.mxu0 %v5188
        %5787 = vmatprep.subr.bf16.mxu0 0
        %5788 = vmatpush1.bf16.msra.mxu0 %v5189
        %5789 = vmatprep.subr.bf16.mxu0 0
        %5790 = vmatpush1.bf16.msra.mxu0 %v5190
        %5791 = vmatprep.subr.bf16.mxu0 0
        %5792 = vmatpush1.bf16.msra.mxu0 %v5191
        %5793 = vmatprep.subr.bf16.mxu0 0
        %5794 = vmatpush1.bf16.msra.mxu0 %v5192
        %5795 = vmatprep.subr.bf16.mxu0 0
        %5796 = vmatpush1.bf16.msra.mxu0 %v5193
        %5797 = vmatprep.subr.bf16.mxu0 0
        %5798 = vmatpush1.bf16.msra.mxu0 %v5194
        %5799 = vmatprep.subr.bf16.mxu0 0
        %5800 = vmatpush1.bf16.msra.mxu0 %v5195
        %5801 = vmatprep.subr.bf16.mxu0 0
        %5802 = vmatpush1.bf16.msra.mxu0 %v5196
        %5803 = vmatprep.subr.bf16.mxu0 0
        %5804 = vmatpush1.bf16.msra.mxu0 %v5197
        %5805 = vmatprep.subr.bf16.mxu0 0
        %5806 = vmatpush1.bf16.msra.mxu0 %v5198
        %5807 = vmatprep.subr.bf16.mxu0 0
        %5808 = vmatpush1.bf16.msra.mxu0 %v5199
        %5809 = vmatprep.subr.bf16.mxu0 0
        %5810 = vmatpush1.bf16.msra.mxu0 %v5200
        %5811 = vmatprep.subr.bf16.mxu0 0
        %5812 = vmatpush1.bf16.msra.mxu0 %v5201
        %5813 = vmatprep.mubr.bf16.mxu0 %v4467
        %5814 = vmatmul.mubr.bf16.gmra.mrb[0].mxu0 %v4403
        %v5815 = vpop.f32.mrb[0].mxu0
        %v5816 = vadd.f32 %v5655, %v5815
        %v5817 = vpop.f32.mrb[0].mxu0
        %v5818 = vpop.f32.mrb[0].mxu0
        %v5819 = vadd.f32 %v5658, %v5818
        %v5820 = vpop.f32.mrb[0].mxu0
        %5821 = vmatprep.mubr.bf16.mxu0 %v4468
        %5822 = vmatmul.mubr.bf16.gmra.mrb[0].mxu0 %v4404
        %v5823 = vpop.f32.mrb[0].mxu0
        %v5824 = vadd.f32 %v5663, %v5823
        %v5825 = vpop.f32.mrb[0].mxu0
        %v5826 = vpop.f32.mrb[0].mxu0
        %v5827 = vadd.f32 %v5666, %v5826
        %v5828 = vpop.f32.mrb[0].mxu0
        %5829 = vmatprep.mubr.bf16.mxu0 %v4469
        %5830 = vmatmul.mubr.bf16.gmra.mrb[0].mxu0 %v4405
        %v5831 = vpop.f32.mrb[0].mxu0
        %v5832 = vadd.f32 %v5671, %v5831
        %v5833 = vpop.f32.mrb[0].mxu0
        %v5834 = vpop.f32.mrb[0].mxu0
        %v5835 = vadd.f32 %v5674, %v5834
        %v5836 = vpop.f32.mrb[0].mxu0
        %5837 = vmatprep.mubr.bf16.mxu0 %v4470
        %5838 = vmatmul.mubr.bf16.gmra.mrb[0].mxu0 %v4406
        %v5839 = vpop.f32.mrb[0].mxu0
        %v5840 = vadd.f32 %v5679, %v5839
        %v5841 = vpop.f32.mrb[0].mxu0
        %v5842 = vpop.f32.mrb[0].mxu0
        %v5843 = vadd.f32 %v5682, %v5842
        %v5844 = vpop.f32.mrb[0].mxu0
        %5845 = vmatprep.mubr.bf16.mxu0 %v4471
        %5846 = vmatmul.mubr.bf16.gmra.mrb[0].mxu0 %v4407
        %v5847 = vpop.f32.mrb[0].mxu0
        %v5848 = vadd.f32 %v5687, %v5847
        %v5849 = vpop.f32.mrb[0].mxu0
        %v5850 = vpop.f32.mrb[0].mxu0
        %v5851 = vadd.f32 %v5690, %v5850
        %v5852 = vpop.f32.mrb[0].mxu0
        %5853 = vmatprep.mubr.bf16.mxu0 %v4472
        %5854 = vmatmul.mubr.bf16.gmra.mrb[0].mxu0 %v4408
        %v5855 = vpop.f32.mrb[0].mxu0
        %v5856 = vadd.f32 %v5695, %v5855
        %v5857 = vpop.f32.mrb[0].mxu0
        %v5858 = vpop.f32.mrb[0].mxu0
        %v5859 = vadd.f32 %v5698, %v5858
        %v5860 = vpop.f32.mrb[0].mxu0
        %5861 = vmatprep.mubr.bf16.mxu0 %v4473
        %5862 = vmatmul.mubr.bf16.gmra.mrb[0].mxu0 %v4409
        %v5863 = vpop.f32.mrb[0].mxu0
        %v5864 = vadd.f32 %v5703, %v5863
        %v5865 = vpop.f32.mrb[0].mxu0
        %v5866 = vpop.f32.mrb[0].mxu0
        %v5867 = vadd.f32 %v5706, %v5866
        %v5868 = vpop.f32.mrb[0].mxu0
        %5869 = vmatprep.mubr.bf16.mxu0 %v4474
        %5870 = vmatmul.mubr.bf16.gmra.mrb[0].mxu0 %v4410
        %v5871 = vpop.f32.mrb[0].mxu0
        %v5872 = vadd.f32 %v5711, %v5871
        %v5873 = vpop.f32.mrb[0].mxu0
        %v5874 = vpop.f32.mrb[0].mxu0
        %v5875 = vadd.f32 %v5714, %v5874
        %v5876 = vpop.f32.mrb[0].mxu0
        %5877 = vmatprep.mubr.bf16.mxu0 %v4475
        %5878 = vmatmul.mubr.bf16.gmra.mrb[0].mxu0 %v4411
        %v5879 = vpop.f32.mrb[0].mxu0
        %v5880 = vadd.f32 %v5719, %v5879
        %v5881 = vpop.f32.mrb[0].mxu0
        %v5882 = vpop.f32.mrb[0].mxu0
        %v5883 = vadd.f32 %v5722, %v5882
        %v5884 = vpop.f32.mrb[0].mxu0
        %5885 = vmatprep.mubr.bf16.mxu0 %v4476
        %5886 = vmatmul.mubr.bf16.gmra.mrb[0].mxu0 %v4412
        %v5887 = vpop.f32.mrb[0].mxu0
        %v5888 = vadd.f32 %v5727, %v5887
        %v5889 = vpop.f32.mrb[0].mxu0
        %v5890 = vpop.f32.mrb[0].mxu0
        %v5891 = vadd.f32 %v5730, %v5890
        %v5892 = vpop.f32.mrb[0].mxu0
        %5893 = vmatprep.mubr.bf16.mxu0 %v4477
        %5894 = vmatmul.mubr.bf16.gmra.mrb[0].mxu0 %v4413
        %v5895 = vpop.f32.mrb[0].mxu0
        %v5896 = vadd.f32 %v5735, %v5895
        %v5897 = vpop.f32.mrb[0].mxu0
        %v5898 = vpop.f32.mrb[0].mxu0
        %v5899 = vadd.f32 %v5738, %v5898
        %v5900 = vpop.f32.mrb[0].mxu0
        %5901 = vmatprep.mubr.bf16.mxu0 %v4478
        %5902 = vmatmul.mubr.bf16.gmra.mrb[0].mxu0 %v4414
        %v5903 = vpop.f32.mrb[0].mxu0
        %v5904 = vadd.f32 %v5743, %v5903
        %v5905 = vpop.f32.mrb[0].mxu0
        %v5906 = vpop.f32.mrb[0].mxu0
        %v5907 = vadd.f32 %v5746, %v5906
        %v5908 = vpop.f32.mrb[0].mxu0
        %5909 = vmatprep.mubr.bf16.mxu0 %v4479
        %5910 = vmatmul.mubr.bf16.gmra.mrb[0].mxu0 %v4415
        %v5911 = vpop.f32.mrb[0].mxu0
        %v5912 = vadd.f32 %v5751, %v5911
        %v5913 = vpop.f32.mrb[0].mxu0
        %v5914 = vpop.f32.mrb[0].mxu0
        %v5915 = vadd.f32 %v5754, %v5914
        %v5916 = vpop.f32.mrb[0].mxu0
        %5917 = vmatprep.mubr.bf16.mxu0 %v4480
        %5918 = vmatmul.mubr.bf16.gmra.mrb[0].mxu0 %v4416
        %v5919 = vpop.f32.mrb[0].mxu0
        %v5920 = vadd.f32 %v5759, %v5919
        %v5921 = vpop.f32.mrb[0].mxu0
        %v5922 = vpop.f32.mrb[0].mxu0
        %v5923 = vadd.f32 %v5762, %v5922
        %v5924 = vpop.f32.mrb[0].mxu0
        %5925 = vmatprep.mubr.bf16.mxu0 %v4568
        %5926 = vmatmul.mubr.bf16.gmra.mrb[0].mxu0 %v4564
        %v5927 = vpop.f32.mrb[0].mxu0
        %v5928 = vadd.f32 %v5767, %v5927
        %v5929 = vpop.f32.mrb[0].mxu0
        %v5930 = vpop.f32.mrb[0].mxu0
        %v5931 = vadd.f32 %v5770, %v5930
        %v5932 = vpop.f32.mrb[0].mxu0
        %5933 = vmatprep.mubr.bf16.mxu0 %v4581
        %5934 = vmatmul.mubr.bf16.gmra.mrb[0].mxu0 %v4577
        %v5935 = vpop.f32.mrb[0].mxu0
        %v5936 = vadd.f32 %v5775, %v5935
        %v5937 = vpop.f32.mrb[0].mxu0
        %v5938 = vpop.f32.mrb[0].mxu0
        %v5939 = vadd.f32 %v5778, %v5938
        %v5940 = vpop.f32.mrb[0].mxu0
        %5941 = vdwg.mxu0
        %5942 = vmatprep.subr.bf16.mxu0 0
        %5943 = vmatpush1.bf16.msra.mxu0 %v5202
        %5944 = vmatprep.subr.bf16.mxu0 0
        %5945 = vmatpush1.bf16.msra.mxu0 %v5203
        %5946 = vmatprep.subr.bf16.mxu0 0
        %5947 = vmatpush1.bf16.msra.mxu0 %v5204
        %5948 = vmatprep.subr.bf16.mxu0 0
        %5949 = vmatpush1.bf16.msra.mxu0 %v5205
        %5950 = vmatprep.subr.bf16.mxu0 0
        %5951 = vmatpush1.bf16.msra.mxu0 %v5206
        %5952 = vmatprep.subr.bf16.mxu0 0
        %5953 = vmatpush1.bf16.msra.mxu0 %v5207
        %5954 = vmatprep.subr.bf16.mxu0 0
        %5955 = vmatpush1.bf16.msra.mxu0 %v5208
        %5956 = vmatprep.subr.bf16.mxu0 0
        %5957 = vmatpush1.bf16.msra.mxu0 %v5209
        %5958 = vmatprep.subr.bf16.mxu0 0
        %5959 = vmatpush1.bf16.msra.mxu0 %v5210
        %5960 = vmatprep.subr.bf16.mxu0 0
        %5961 = vmatpush1.bf16.msra.mxu0 %v5211
        %5962 = vmatprep.subr.bf16.mxu0 0
        %5963 = vmatpush1.bf16.msra.mxu0 %v5212
        %5964 = vmatprep.subr.bf16.mxu0 0
        %5965 = vmatpush1.bf16.msra.mxu0 %v5213
        %5966 = vmatprep.subr.bf16.mxu0 0
        %5967 = vmatpush1.bf16.msra.mxu0 %v5214
        %5968 = vmatprep.subr.bf16.mxu0 0
        %5969 = vmatpush1.bf16.msra.mxu0 %v5215
        %5970 = vmatprep.subr.bf16.mxu0 0
        %5971 = vmatpush1.bf16.msra.mxu0 %v5216
        %5972 = vmatprep.subr.bf16.mxu0 0
        %5973 = vmatpush1.bf16.msra.mxu0 %v5217
        %5974 = vmatprep.mubr.bf16.mxu0 %v4619
        %5975 = vmatmul.mubr.bf16.gmra.mrb[0].mxu0 %v4531
        %v5976 = vpop.f32.mrb[0].mxu0
        %v5977 = vadd.f32 %v5816, %v5976
        %v5978 = vpop.f32.mrb[0].mxu0
        %v5979 = vpop.f32.mrb[0].mxu0
        %v5980 = vadd.f32 %v5819, %v5979
        %v5981 = vpop.f32.mrb[0].mxu0
        %5982 = vmatprep.mubr.bf16.mxu0 %v4620
        %5983 = vmatmul.mubr.bf16.gmra.mrb[0].mxu0 %v4532
        %v5984 = vpop.f32.mrb[0].mxu0
        %v5985 = vadd.f32 %v5824, %v5984
        %v5986 = vpop.f32.mrb[0].mxu0
        %v5987 = vpop.f32.mrb[0].mxu0
        %v5988 = vadd.f32 %v5827, %v5987
        %v5989 = vpop.f32.mrb[0].mxu0
        %5990 = vmatprep.mubr.bf16.mxu0 %v4621
        %5991 = vmatmul.mubr.bf16.gmra.mrb[0].mxu0 %v4533
        %v5992 = vpop.f32.mrb[0].mxu0
        %v5993 = vadd.f32 %v5832, %v5992
        %v5994 = vpop.f32.mrb[0].mxu0
        %v5995 = vpop.f32.mrb[0].mxu0
        %v5996 = vadd.f32 %v5835, %v5995
        %v5997 = vpop.f32.mrb[0].mxu0
        %5998 = vmatprep.mubr.bf16.mxu0 %v4622
        %5999 = vmatmul.mubr.bf16.gmra.mrb[0].mxu0 %v4534
        %v6000 = vpop.f32.mrb[0].mxu0
        %v6001 = vadd.f32 %v5840, %v6000
        %v6002 = vpop.f32.mrb[0].mxu0
        %v6003 = vpop.f32.mrb[0].mxu0
        %v6004 = vadd.f32 %v5843, %v6003
        %v6005 = vpop.f32.mrb[0].mxu0
        %6006 = vmatprep.mubr.bf16.mxu0 %v4623
        %6007 = vmatmul.mubr.bf16.gmra.mrb[0].mxu0 %v4535
        %v6008 = vpop.f32.mrb[0].mxu0
        %v6009 = vadd.f32 %v5848, %v6008
        %v6010 = vpop.f32.mrb[0].mxu0
        %v6011 = vpop.f32.mrb[0].mxu0
        %v6012 = vadd.f32 %v5851, %v6011
        %v6013 = vpop.f32.mrb[0].mxu0
        %6014 = vmatprep.mubr.bf16.mxu0 %v4624
        %6015 = vmatmul.mubr.bf16.gmra.mrb[0].mxu0 %v4536
        %v6016 = vpop.f32.mrb[0].mxu0
        %v6017 = vadd.f32 %v5856, %v6016
        %v6018 = vpop.f32.mrb[0].mxu0
        %v6019 = vpop.f32.mrb[0].mxu0
        %v6020 = vadd.f32 %v5859, %v6019
        %v6021 = vpop.f32.mrb[0].mxu0
        %6022 = vmatprep.mubr.bf16.mxu0 %v4625
        %6023 = vmatmul.mubr.bf16.gmra.mrb[0].mxu0 %v4537
        %v6024 = vpop.f32.mrb[0].mxu0
        %v6025 = vadd.f32 %v5864, %v6024
        %v6026 = vpop.f32.mrb[0].mxu0
        %v6027 = vpop.f32.mrb[0].mxu0
        %v6028 = vadd.f32 %v5867, %v6027
        %v6029 = vpop.f32.mrb[0].mxu0
        %6030 = vmatprep.mubr.bf16.mxu0 %v4626
        %6031 = vmatmul.mubr.bf16.gmra.mrb[0].mxu0 %v4538
        %v6032 = vpop.f32.mrb[0].mxu0
        %v6033 = vadd.f32 %v5872, %v6032
        %v6034 = vpop.f32.mrb[0].mxu0
        %v6035 = vpop.f32.mrb[0].mxu0
        %v6036 = vadd.f32 %v5875, %v6035
        %v6037 = vpop.f32.mrb[0].mxu0
        %6038 = vmatprep.mubr.bf16.mxu0 %v4627
        %6039 = vmatmul.mubr.bf16.gmra.mrb[0].mxu0 %v4539
        %v6040 = vpop.f32.mrb[0].mxu0
        %v6041 = vadd.f32 %v5880, %v6040
        %v6042 = vpop.f32.mrb[0].mxu0
        %v6043 = vpop.f32.mrb[0].mxu0
        %v6044 = vadd.f32 %v5883, %v6043
        %v6045 = vpop.f32.mrb[0].mxu0
        %6046 = vmatprep.mubr.bf16.mxu0 %v4628
        %6047 = vmatmul.mubr.bf16.gmra.mrb[0].mxu0 %v4540
        %v6048 = vpop.f32.mrb[0].mxu0
        %v6049 = vadd.f32 %v5888, %v6048
        %v6050 = vpop.f32.mrb[0].mxu0
        %v6051 = vpop.f32.mrb[0].mxu0
        %v6052 = vadd.f32 %v5891, %v6051
        %v6053 = vpop.f32.mrb[0].mxu0
        %6054 = vmatprep.mubr.bf16.mxu0 %v4629
        %6055 = vmatmul.mubr.bf16.gmra.mrb[0].mxu0 %v4541
        %v6056 = vpop.f32.mrb[0].mxu0
        %v6057 = vadd.f32 %v5896, %v6056
        %v6058 = vpop.f32.mrb[0].mxu0
        %v6059 = vpop.f32.mrb[0].mxu0
        %v6060 = vadd.f32 %v5899, %v6059
        %v6061 = vpop.f32.mrb[0].mxu0
        %6062 = vmatprep.mubr.bf16.mxu0 %v4630
        %6063 = vmatmul.mubr.bf16.gmra.mrb[0].mxu0 %v4542
        %v6064 = vpop.f32.mrb[0].mxu0
        %v6065 = vadd.f32 %v5904, %v6064
        %v6066 = vpop.f32.mrb[0].mxu0
        %v6067 = vpop.f32.mrb[0].mxu0
        %v6068 = vadd.f32 %v5907, %v6067
        %v6069 = vpop.f32.mrb[0].mxu0
        %6070 = vmatprep.mubr.bf16.mxu0 %v4631
        %6071 = vmatmul.mubr.bf16.gmra.mrb[0].mxu0 %v4543
        %v6072 = vpop.f32.mrb[0].mxu0
        %v6073 = vadd.f32 %v5912, %v6072
        %v6074 = vpop.f32.mrb[0].mxu0
        %v6075 = vpop.f32.mrb[0].mxu0
        %v6076 = vadd.f32 %v5915, %v6075
        %v6077 = vpop.f32.mrb[0].mxu0
        %6078 = vmatprep.mubr.bf16.mxu0 %v4632
        %6079 = vmatmul.mubr.bf16.gmra.mrb[0].mxu0 %v4544
        %v6080 = vpop.f32.mrb[0].mxu0
        %v6081 = vadd.f32 %v5920, %v6080
        %v6082 = vpop.f32.mrb[0].mxu0
        %v6083 = vpop.f32.mrb[0].mxu0
        %v6084 = vadd.f32 %v5923, %v6083
        %v6085 = vpop.f32.mrb[0].mxu0
        %6086 = vmatprep.mubr.bf16.mxu0 %v4633
        %6087 = vmatmul.mubr.bf16.gmra.mrb[0].mxu0 %v4572
        %v6088 = vpop.f32.mrb[0].mxu0
        %v6089 = vadd.f32 %v5928, %v6088
        %v6090 = vpop.f32.mrb[0].mxu0
        %v6091 = vpop.f32.mrb[0].mxu0
        %v6092 = vadd.f32 %v5931, %v6091
        %v6093 = vpop.f32.mrb[0].mxu0
        %6094 = vmatprep.mubr.bf16.mxu0 %v4634
        %6095 = vmatmul.mubr.bf16.gmra.mrb[0].mxu0 %v4585
        %v6096 = vpop.f32.mrb[0].mxu0
        %v6097 = vadd.f32 %v5936, %v6096
        %v6098 = vpop.f32.mrb[0].mxu0
        %v6099 = vpop.f32.mrb[0].mxu0
        %v6100 = vadd.f32 %v5939, %v6099
        %v6101 = vpop.f32.mrb[0].mxu0
        %6102 = vdwg.mxu0
        %v6103 = vadd.f32 %v5977, %v5985
        %v6104 = vadd.f32 %v5980, %v5988
        %v6105 = vadd.f32 %v5993, %v6001
        %v6106 = vadd.f32 %v5996, %v6004
        %v6107 = vadd.f32 %v6009, %v6017
        %v6108 = vadd.f32 %v6012, %v6020
        %v6109 = vadd.f32 %v6025, %v6033
        %v6110 = vadd.f32 %v6028, %v6036
        %v6111 = vadd.f32 %v6041, %v6049
        %v6112 = vadd.f32 %v6044, %v6052
        %v6113 = vadd.f32 %v6057, %v6065
        %v6114 = vadd.f32 %v6060, %v6068
        %v6115 = vadd.f32 %v6073, %v6081
        %v6116 = vadd.f32 %v6076, %v6084
        %v6117 = vadd.f32 %v6089, %v6097
        %v6118 = vadd.f32 %v6092, %v6100
        %6119 = vst [vmem:[#allocation3] sm:$0xff] %v6103
        %6120 = vst [vmem:[#allocation3 + $0x8] sm:$0xff] %v6104
        %6121 = vst [vmem:[#allocation3 + $0x10] sm:$0xff] %v6105
        %6122 = vst [vmem:[#allocation3 + $0x18] sm:$0xff] %v6106
        %6123 = vst [vmem:[#allocation3 + $0x20] sm:$0xff] %v6107
        %6124 = vst [vmem:[#allocation3 + $0x28] sm:$0xff] %v6108
        %6125 = vst [vmem:[#allocation3 + $0x30] sm:$0xff] %v6109
        %6126 = vst [vmem:[#allocation3 + $0x38] sm:$0xff] %v6110
        %6127 = vst [vmem:[#allocation3 + $0x40] sm:$0xff] %v6111
        %6128 = vst [vmem:[#allocation3 + $0x48] sm:$0xff] %v6112
        %6129 = vst [vmem:[#allocation3 + $0x50] sm:$0xff] %v6113
        %6130 = vst [vmem:[#allocation3 + $0x58] sm:$0xff] %v6114
        %6131 = vst [vmem:[#allocation3 + $0x60] sm:$0xff] %v6115
        %6132 = vst [vmem:[#allocation3 + $0x68] sm:$0xff] %v6116
        %6133 = vst [vmem:[#allocation3 + $0x70] sm:$0xff] %v6117
        %6134 = vst [vmem:[#allocation3 + $0x78] sm:$0xff] %v6118
        %v6135 = vld [vmem:[#allocation3] ss:$2 sm:$0xff]
        %s6136 = scalar_lea.vmem [#allocation3], 16
        %v6137 = vld [vmem:[%s6136] ss:$2 sm:$0xff]
        %s6138 = scalar_lea.vmem [#allocation3], 32
        %v6139 = vld [vmem:[%s6138] ss:$2 sm:$0xff]
        %s6140 = scalar_lea.vmem [#allocation3], 48
        %v6141 = vld [vmem:[%s6140] ss:$2 sm:$0xff]
        %s6142 = scalar_lea.vmem [#allocation3], 64
        %v6143 = vld [vmem:[%s6142] ss:$2 sm:$0xff]
        %s6144 = scalar_lea.vmem [#allocation3], 80
        %v6145 = vld [vmem:[%s6144] ss:$2 sm:$0xff]
        %s6146 = scalar_lea.vmem [#allocation3], 96
        %v6147 = vld [vmem:[%s6146] ss:$2 sm:$0xff]
        %s6148 = scalar_lea.vmem [#allocation3], 112
        %v6149 = vld [vmem:[%s6148] ss:$2 sm:$0xff]
        %s6150 = scalar_lea.vmem [#allocation3], 1
        %v6151 = vld [vmem:[%s6150] ss:$2 sm:$0xff]
        %s6152 = scalar_lea.vmem [#allocation3], 17
        %v6153 = vld [vmem:[%s6152] ss:$2 sm:$0xff]
        %s6154 = scalar_lea.vmem [#allocation3], 33
        %v6155 = vld [vmem:[%s6154] ss:$2 sm:$0xff]
        %s6156 = scalar_lea.vmem [#allocation3], 49
        %v6157 = vld [vmem:[%s6156] ss:$2 sm:$0xff]
        %s6158 = scalar_lea.vmem [#allocation3], 65
        %v6159 = vld [vmem:[%s6158] ss:$2 sm:$0xff]
        %s6160 = scalar_lea.vmem [#allocation3], 81
        %v6161 = vld [vmem:[%s6160] ss:$2 sm:$0xff]
        %s6162 = scalar_lea.vmem [#allocation3], 97
        %v6163 = vld [vmem:[%s6162] ss:$2 sm:$0xff]
        %s6164 = scalar_lea.vmem [#allocation3], 113
        %v6165 = vld [vmem:[%s6164] ss:$2 sm:$0xff]
        %v6166 = vadd.f32 %v6135, %v6151
        %v6167 = vadd.f32 %v6137, %v6153
        %v6168 = vadd.f32 %v6139, %v6155
        %v6169 = vadd.f32 %v6141, %v6157
        %v6170 = vadd.f32 %v6143, %v6159
        %v6171 = vadd.f32 %v6145, %v6161
        %v6172 = vadd.f32 %v6147, %v6163
        %v6173 = vadd.f32 %v6149, %v6165
        %v6174 = vmul.f32 %v6166, 0.25
        %v6175 = vmul.f32 %v6167, 0.25
        %v6176 = vmul.f32 %v6168, 0.25
        %v6177 = vmul.f32 %v6169, 0.25
        %v6178 = vmul.f32 %v6170, 0.25
        %v6179 = vmul.f32 %v6171, 0.25
        %v6180 = vmul.f32 %v6172, 0.25
        %v6181 = vmul.f32 %v6173, 0.25
        %6182 = vst [vmem:[%s232] sm:$0xff] %v6174
        %6183 = vst [vmem:[%s232 + $0x8] sm:$0xff] %v6175
        %6184 = vst [vmem:[%s232 + $0x10] sm:$0xff] %v6176
        %6185 = vst [vmem:[%s232 + $0x18] sm:$0xff] %v6177
        %6186 = vst [vmem:[%s232 + $0x20] sm:$0xff] %v6178
        %6187 = vst [vmem:[%s232 + $0x28] sm:$0xff] %v6179
        %6188 = vst [vmem:[%s232 + $0x30] sm:$0xff] %v6180
        %6189 = vst [vmem:[%s232 + $0x38] sm:$0xff] %v6181
        %s6190 = sand.u32 %s138, 1
        %s6191 = scalar_lea.sflag [#allocation6], %s6190
        %s6192 = sand.u32 %s138, 1
        %s6193 = smul.addr %s6192, 64
        %s6194 = scalar_lea.vmem [#allocation7], %s6193
        // Predicated region
        $region45: #{tpu_custom_call.1} parent=39 // pred_check
          %p6195 = pneg %p148
        $region46: #{tpu_custom_call.1} parent=39 // pred_check_branch
          %6197 = sbr.rel (%p6195) target = $region48
        $region47: #{tpu_custom_call.1} parent=39 // pred_region
          %s6199 = ssub.s32 1024, 1024
          %6200 = vsyncadd %s6191, %s6199
          %s6201 = smul.addr %s20, 8
          %s6202 = smul.addr %s6201, 128
          %s6203 = scalar_lea.hbm %s5, %s6202
          %s6204 = sshll.u32 %s6194, 4
          %s6205 = int_to_ptr.vmem [resolvable:$true] %s6204
          %6210 = dma.vmem_to_hbm [thread:$0]  %s6205, 1024, %s6203, %s6191, 128, 128, 8
        $region48: #{tpu_custom_call.1} parent=39 // pred_fallthru
          _
      $region40: #{tpu_custom_call.1} parent=5 // pred_fallthru
        _
      %p6211 = scmp.le.s32.totalorder 2, %s15
      // Predicated region
      $region49: #{tpu_custom_call.1} parent=5 // pred_check
        %p6212 = pneg %p6211
      $region50: #{tpu_custom_call.1} parent=5 // pred_check_branch
        %6214 = sbr.rel (%p6212) target = $region52
      $region51: #{tpu_custom_call.1} parent=5 // pred_region
        %s6215 = ssub.s32 %s15, 2
        // Predicated region
        $region53: #{tpu_custom_call.1} parent=51 // pred_check
          %p6216 = pneg %p154
        $region54: #{tpu_custom_call.1} parent=51 // pred_check_branch
          %6218 = sbr.rel (%p6216) target = $region56
        $region55: #{tpu_custom_call.1} parent=51 // pred_region
          %s6219 = sand.u32 %s139, 1
          %s6220 = scalar_lea.sflag [#allocation6], %s6219
          %s6221 = sand.u32 %s139, 1
          %s6222 = smul.addr %s6221, 64
          %s6223 = scalar_lea.vmem [#allocation7], %s6222
          %6224 = dma.done %s6220, 1024
        $region56: #{tpu_custom_call.1} parent=51 // pred_fallthru
          _
      $region52: #{tpu_custom_call.1} parent=5 // pred_fallthru
        _
    $region6: #{tpu_custom_call.1} parent=1 // loop_footer
      %s19 = sadd.s32 1, %s15
    $region7: #{tpu_custom_call.1} parent=1 // loop_footer_branch
      %14 = sbr.rel target = $region3
    $region8: #{tpu_custom_call.1} parent=1 // loop_exit
      _
    %6225 = vsyncpa [#allocation5], 1
    %s6226 = scalar_lea.sflag [#allocation5], 1
    %6227 = vsyncpa %s6226, 1
    %6228 = vsyncpa [#allocation6], 1
    %s6229 = scalar_lea.sflag [#allocation6], 1
    %6230 = vsyncpa %s6229, 1

</llo_original>
